<compile_context>
chip_gen: v5e
topology: v5e:2x2
jax: 0.10.0
libtpu: 0.0.40
codegen_flags: <defaults>
</compile_context>

<pallas_src>
import functools

import numpy as np

import jax
import jax.numpy as jnp
from jax.experimental import pallas as pl
from jax.experimental.pallas import tpu as pltpu


def net_kernel(state_ref, mask_ref, w1_ref, b1_ref, w2_ref, b2_ref, out_ref, *,
               sobelx, sobely, H, W, steps):
    C, B, N = state_ref.shape          # N == H * W, lane-dense last axis

    # ---- hoisted once: interior mask + every learned scalar (SMEM reads) ----
    mask = mask_ref[...]                                        # (B, N) f32
    w1 = [[w1_ref[o, ci] for ci in range(3 * C)] for o in range(C)]
    b1 = [b1_ref[o] for o in range(C)]
    w2 = [[w2_ref[o, ci] for ci in range(C)] for o in range(C)]
    b2 = [b2_ref[o] for o in range(C)]

    # Non-zero taps of the (constant) 3x3 kernels, baked at trace time.
    def taps(k):
        out = []
        for ky in range(3):
            for kx in range(3):
                coeff = float(k[ky, kx])
                if coeff != 0.0:
                    out.append(((ky - 1) * W + (kx - 1), coeff))
        return out

    taps_x = taps(sobelx)
    taps_y = taps(sobely)
    offsets = sorted({off for off, _ in taps_x + taps_y if off != 0})

    def shifted(x, off):
        # y[:, i] == x[:, i + off] for every interior (h, w); wrapped values
        # land only on border pixels which `mask` zeroes.
        return pltpu.roll(x, (-off) % N, 1)

    def depthwise(center, nbrs, tap_list):
        acc = None
        for off, coeff in tap_list:
            term = center if off == 0 else nbrs[off]
            if coeff != 1.0:
                term = term * coeff
            acc = term if acc is None else acc + term
        return acc if acc is not None else jnp.zeros_like(center)

    cur = [state_ref[c] for c in range(C)]                      # C x (B, N)

    # steps is small (4), so a Python unroll is fine.  If steps_to_unroll ever
    # grows beyond ~8, switch to lax.fori_loop carrying a stacked (C, B, N).
    for _ in range(steps):
        acc1 = [None] * C
        for c in range(C):
            nbrs = {off: shifted(cur[c], off) for off in offsets}
            sx_c = mask * depthwise(cur[c], nbrs, taps_x)
            sy_c = mask * depthwise(cur[c], nbrs, taps_y)
            # Fused conv1 accumulation; cat order is [sobelx | sobely | state].
            for o in range(C):
                t = (w1[o][c] * sx_c + w1[o][C + c] * sy_c
                     + w1[o][2 * C + c] * cur[c])
                acc1[o] = t if acc1[o] is None else acc1[o] + t

        h1 = [jnp.maximum(acc1[o] + b1[o], 0.0) for o in range(C)]

        h2 = []
        for o in range(C):
            s = w2[o][0] * h1[0]
            for ci in range(1, C):
                s = s + w2[o][ci] * h1[ci]
            h2.append(s + b2[o])

        cur = [cur[c] + jnp.tanh(h2[c]) for c in range(C)]

    for c in range(C):                                          # lane-dense stores
        out_ref[c] = cur[c]


def make_net_forward(sobelx, sobely, *, steps):
    """Returns a jitted (state, w1, b1, w2, b2) -> new_state (NCHW) function."""
    sobelx = np.asarray(sobelx, dtype=np.float32)
    sobely = np.asarray(sobely, dtype=np.float32)

    @jax.jit
    def fwd(state, w1, b1, w2, b2):
        B, C, H, W = state.shape
        N = H * W

        # Interior mask ([..., 1:-1, 1:-1]) in the flattened layout (constant).
        m = np.zeros((H, W), np.float32)
        if H > 2 and W > 2:
            m[1:-1, 1:-1] = 1.0
        mask = jnp.asarray(np.tile(m.reshape(1, N), (B, 1)))

        # Lane-dense layout: channel-major rows, flattened spatial on lanes.
        x2 = jnp.transpose(state.reshape(B, C, N), (1, 0, 2))    # (C, B, N)

        vmem = pl.BlockSpec(memory_space=pltpu.MemorySpace.VMEM)
        smem = pl.BlockSpec(memory_space=pltpu.MemorySpace.SMEM)
        out2 = pl.pallas_call(
            functools.partial(net_kernel, sobelx=sobelx, sobely=sobely,
                              H=H, W=W, steps=steps),
            out_shape=jax.ShapeDtypeStruct((C, B, N), jnp.float32),
            in_specs=[vmem, vmem, smem, smem, smem, smem],
            out_specs=vmem,
            input_output_aliases={0: 0},     # reuse the state buffer for output
        )(x2, mask, w1, b1, w2, b2)

        return jnp.transpose(out2, (1, 0, 2)).reshape(B, C, H, W)

    return fwd


def net_reference(state, sobelx, sobely, w1, b1, w2, b2, *, steps):
    """Pure-JAX reference matching the PyTorch forward."""
    B, C, H, W = state.shape
    sobelx = jnp.asarray(sobelx, jnp.float32)
    sobely = jnp.asarray(sobely, jnp.float32)
    out = state
    for _ in range(steps):
        identity = out

        def depthwise(x, k):
            acc = jnp.zeros((B, C, H - 2, W - 2), jnp.float32)
            for dy in range(3):
                for dx in range(3):
                    acc = acc + k[dy, dx] * x[:, :, dy:dy + H - 2, dx:dx + W - 2]
            z = jnp.zeros((B, C, H, W), jnp.float32)
            return z.at[:, :, 1:-1, 1:-1].set(acc)

        sx = depthwise(out, sobelx)
        sy = depthwise(out, sobely)
        cat = jnp.concatenate([sx, sy, out], axis=1)
        h1 = jnp.einsum("oc,bchw->bohw", w1, cat) + b1[None, :, None, None]
        h1 = jnp.maximum(h1, 0.0)
        h2 = jnp.einsum("oc,bchw->bohw", w2, h1) + b2[None, :, None, None]
        out = identity + jnp.tanh(h2)
    return out


if __name__ == "__main__":
    # state_depth is forced to 3 by the module's hard-coded zero bias of length 3.
    B, C, H, W = 2, 3, 16, 16
    steps = 4

    key = jax.random.PRNGKey(0)
    k_state, k_w1, k_b1, k_w2, k_b2 = jax.random.split(key, 5)

    state = jax.random.normal(k_state, (B, C, H, W), dtype=jnp.float32)

    sobelx = np.array([[-1., 0., 1.], [-2., 0., 2.], [-1., 0., 1.]], np.float32)
    sobely = sobelx.T.copy()   # .transpose(2, 3) of the (C,1,3,3) kernel

    # Deterministic stand-ins for nn.Conv2d(9,3,1) / nn.Conv2d(3,3,1) params.
    w1 = jax.random.uniform(k_w1, (C, 3 * C), jnp.float32, -0.3, 0.3)
    b1 = jax.random.uniform(k_b1, (C,), jnp.float32, -0.3, 0.3)
    w2 = jax.random.uniform(k_w2, (C, C), jnp.float32, -0.5, 0.5)
    b2 = jax.random.uniform(k_b2, (C,), jnp.float32, -0.5, 0.5)

    fwd = make_net_forward(sobelx, sobely, steps=steps)
    out = jax.block_until_ready(fwd(state, w1, b1, w2, b2))

    ref = net_reference(state, sobelx, sobely, w1, b1, w2, b2, steps=steps)
    assert out.shape == (B, C, H, W)
    max_err = float(jnp.max(jnp.abs(out - ref)))
    assert jnp.allclose(out, ref, rtol=2e-3, atol=2e-3), max_err

    print("KERNEL_OK")
</pallas_src>

<mosaic_0001>
module attributes {stable_mosaic.version = 11 : i64} {
  func.func @net_kernel(%arg0: memref<3x2x256xf32, #tpu.memory_space<vmem>>, %arg1: memref<2x256xf32, #tpu.memory_space<vmem>>, %arg2: memref<3x9xf32, #tpu.memory_space<smem>>, %arg3: memref<3xf32, #tpu.memory_space<smem>>, %arg4: memref<3x3xf32, #tpu.memory_space<smem>>, %arg5: memref<3xf32, #tpu.memory_space<smem>>, %arg6: memref<3x2x256xf32, #tpu.memory_space<vmem>>) attributes {dimension_semantics = [], scalar_prefetch = 0 : i64, scratch_operands = 0 : i64, tpu.core_type = #tpu.core_type<tc>} {
    %c0 = arith.constant 0 : index
    %c0_0 = arith.constant 0 : index
    %0 = vector.load %arg1[%c0, %c0_0] : memref<2x256xf32, #tpu.memory_space<vmem>>, vector<2x256xf32>
    %c0_1 = arith.constant 0 : index
    %c0_2 = arith.constant 0 : index
    %1 = memref.load %arg2[%c0_1, %c0_2] : memref<3x9xf32, #tpu.memory_space<smem>>
    %c0_3 = arith.constant 0 : index
    %c1 = arith.constant 1 : index
    %2 = memref.load %arg2[%c0_3, %c1] : memref<3x9xf32, #tpu.memory_space<smem>>
    %c0_4 = arith.constant 0 : index
    %c2 = arith.constant 2 : index
    %3 = memref.load %arg2[%c0_4, %c2] : memref<3x9xf32, #tpu.memory_space<smem>>
    %c0_5 = arith.constant 0 : index
    %c3 = arith.constant 3 : index
    %4 = memref.load %arg2[%c0_5, %c3] : memref<3x9xf32, #tpu.memory_space<smem>>
    %c0_6 = arith.constant 0 : index
    %c4 = arith.constant 4 : index
    %5 = memref.load %arg2[%c0_6, %c4] : memref<3x9xf32, #tpu.memory_space<smem>>
    %c0_7 = arith.constant 0 : index
    %c5 = arith.constant 5 : index
    %6 = memref.load %arg2[%c0_7, %c5] : memref<3x9xf32, #tpu.memory_space<smem>>
    %c0_8 = arith.constant 0 : index
    %c6 = arith.constant 6 : index
    %7 = memref.load %arg2[%c0_8, %c6] : memref<3x9xf32, #tpu.memory_space<smem>>
    %c0_9 = arith.constant 0 : index
    %c7 = arith.constant 7 : index
    %8 = memref.load %arg2[%c0_9, %c7] : memref<3x9xf32, #tpu.memory_space<smem>>
    %c0_10 = arith.constant 0 : index
    %c8 = arith.constant 8 : index
    %9 = memref.load %arg2[%c0_10, %c8] : memref<3x9xf32, #tpu.memory_space<smem>>
    %c1_11 = arith.constant 1 : index
    %c0_12 = arith.constant 0 : index
    %10 = memref.load %arg2[%c1_11, %c0_12] : memref<3x9xf32, #tpu.memory_space<smem>>
    %c1_13 = arith.constant 1 : index
    %c1_14 = arith.constant 1 : index
    %11 = memref.load %arg2[%c1_13, %c1_14] : memref<3x9xf32, #tpu.memory_space<smem>>
    %c1_15 = arith.constant 1 : index
    %c2_16 = arith.constant 2 : index
    %12 = memref.load %arg2[%c1_15, %c2_16] : memref<3x9xf32, #tpu.memory_space<smem>>
    %c1_17 = arith.constant 1 : index
    %c3_18 = arith.constant 3 : index
    %13 = memref.load %arg2[%c1_17, %c3_18] : memref<3x9xf32, #tpu.memory_space<smem>>
    %c1_19 = arith.constant 1 : index
    %c4_20 = arith.constant 4 : index
    %14 = memref.load %arg2[%c1_19, %c4_20] : memref<3x9xf32, #tpu.memory_space<smem>>
    %c1_21 = arith.constant 1 : index
    %c5_22 = arith.constant 5 : index
    %15 = memref.load %arg2[%c1_21, %c5_22] : memref<3x9xf32, #tpu.memory_space<smem>>
    %c1_23 = arith.constant 1 : index
    %c6_24 = arith.constant 6 : index
    %16 = memref.load %arg2[%c1_23, %c6_24] : memref<3x9xf32, #tpu.memory_space<smem>>
    %c1_25 = arith.constant 1 : index
    %c7_26 = arith.constant 7 : index
    %17 = memref.load %arg2[%c1_25, %c7_26] : memref<3x9xf32, #tpu.memory_space<smem>>
    %c1_27 = arith.constant 1 : index
    %c8_28 = arith.constant 8 : index
    %18 = memref.load %arg2[%c1_27, %c8_28] : memref<3x9xf32, #tpu.memory_space<smem>>
    %c2_29 = arith.constant 2 : index
    %c0_30 = arith.constant 0 : index
    %19 = memref.load %arg2[%c2_29, %c0_30] : memref<3x9xf32, #tpu.memory_space<smem>>
    %c2_31 = arith.constant 2 : index
    %c1_32 = arith.constant 1 : index
    %20 = memref.load %arg2[%c2_31, %c1_32] : memref<3x9xf32, #tpu.memory_space<smem>>
    %c2_33 = arith.constant 2 : index
    %c2_34 = arith.constant 2 : index
    %21 = memref.load %arg2[%c2_33, %c2_34] : memref<3x9xf32, #tpu.memory_space<smem>>
    %c2_35 = arith.constant 2 : index
    %c3_36 = arith.constant 3 : index
    %22 = memref.load %arg2[%c2_35, %c3_36] : memref<3x9xf32, #tpu.memory_space<smem>>
    %c2_37 = arith.constant 2 : index
    %c4_38 = arith.constant 4 : index
    %23 = memref.load %arg2[%c2_37, %c4_38] : memref<3x9xf32, #tpu.memory_space<smem>>
    %c2_39 = arith.constant 2 : index
    %c5_40 = arith.constant 5 : index
    %24 = memref.load %arg2[%c2_39, %c5_40] : memref<3x9xf32, #tpu.memory_space<smem>>
    %c2_41 = arith.constant 2 : index
    %c6_42 = arith.constant 6 : index
    %25 = memref.load %arg2[%c2_41, %c6_42] : memref<3x9xf32, #tpu.memory_space<smem>>
    %c2_43 = arith.constant 2 : index
    %c7_44 = arith.constant 7 : index
    %26 = memref.load %arg2[%c2_43, %c7_44] : memref<3x9xf32, #tpu.memory_space<smem>>
    %c2_45 = arith.constant 2 : index
    %c8_46 = arith.constant 8 : index
    %27 = memref.load %arg2[%c2_45, %c8_46] : memref<3x9xf32, #tpu.memory_space<smem>>
    %c0_47 = arith.constant 0 : index
    %28 = memref.load %arg3[%c0_47] : memref<3xf32, #tpu.memory_space<smem>>
    %c1_48 = arith.constant 1 : index
    %29 = memref.load %arg3[%c1_48] : memref<3xf32, #tpu.memory_space<smem>>
    %c2_49 = arith.constant 2 : index
    %30 = memref.load %arg3[%c2_49] : memref<3xf32, #tpu.memory_space<smem>>
    %c0_50 = arith.constant 0 : index
    %c0_51 = arith.constant 0 : index
    %31 = memref.load %arg4[%c0_50, %c0_51] : memref<3x3xf32, #tpu.memory_space<smem>>
    %c0_52 = arith.constant 0 : index
    %c1_53 = arith.constant 1 : index
    %32 = memref.load %arg4[%c0_52, %c1_53] : memref<3x3xf32, #tpu.memory_space<smem>>
    %c0_54 = arith.constant 0 : index
    %c2_55 = arith.constant 2 : index
    %33 = memref.load %arg4[%c0_54, %c2_55] : memref<3x3xf32, #tpu.memory_space<smem>>
    %c1_56 = arith.constant 1 : index
    %c0_57 = arith.constant 0 : index
    %34 = memref.load %arg4[%c1_56, %c0_57] : memref<3x3xf32, #tpu.memory_space<smem>>
    %c1_58 = arith.constant 1 : index
    %c1_59 = arith.constant 1 : index
    %35 = memref.load %arg4[%c1_58, %c1_59] : memref<3x3xf32, #tpu.memory_space<smem>>
    %c1_60 = arith.constant 1 : index
    %c2_61 = arith.constant 2 : index
    %36 = memref.load %arg4[%c1_60, %c2_61] : memref<3x3xf32, #tpu.memory_space<smem>>
    %c2_62 = arith.constant 2 : index
    %c0_63 = arith.constant 0 : index
    %37 = memref.load %arg4[%c2_62, %c0_63] : memref<3x3xf32, #tpu.memory_space<smem>>
    %c2_64 = arith.constant 2 : index
    %c1_65 = arith.constant 1 : index
    %38 = memref.load %arg4[%c2_64, %c1_65] : memref<3x3xf32, #tpu.memory_space<smem>>
    %c2_66 = arith.constant 2 : index
    %c2_67 = arith.constant 2 : index
    %39 = memref.load %arg4[%c2_66, %c2_67] : memref<3x3xf32, #tpu.memory_space<smem>>
    %c0_68 = arith.constant 0 : index
    %40 = memref.load %arg5[%c0_68] : memref<3xf32, #tpu.memory_space<smem>>
    %c1_69 = arith.constant 1 : index
    %41 = memref.load %arg5[%c1_69] : memref<3xf32, #tpu.memory_space<smem>>
    %c2_70 = arith.constant 2 : index
    %42 = memref.load %arg5[%c2_70] : memref<3xf32, #tpu.memory_space<smem>>
    %c0_71 = arith.constant 0 : index
    %c0_72 = arith.constant 0 : index
    %c0_73 = arith.constant 0 : index
    %43 = vector.load %arg0[%c0_71, %c0_72, %c0_73] : memref<3x2x256xf32, #tpu.memory_space<vmem>>, vector<1x2x256xf32>
    %44 = vector.shape_cast %43 : vector<1x2x256xf32> to vector<2x256xf32>
    %c1_74 = arith.constant 1 : index
    %c0_75 = arith.constant 0 : index
    %c0_76 = arith.constant 0 : index
    %45 = vector.load %arg0[%c1_74, %c0_75, %c0_76] : memref<3x2x256xf32, #tpu.memory_space<vmem>>, vector<1x2x256xf32>
    %46 = vector.shape_cast %45 : vector<1x2x256xf32> to vector<2x256xf32>
    %c2_77 = arith.constant 2 : index
    %c0_78 = arith.constant 0 : index
    %c0_79 = arith.constant 0 : index
    %47 = vector.load %arg0[%c2_77, %c0_78, %c0_79] : memref<3x2x256xf32, #tpu.memory_space<vmem>>, vector<1x2x256xf32>
    %48 = vector.shape_cast %47 : vector<1x2x256xf32> to vector<2x256xf32>
    %c17_i32 = arith.constant 17 : i32
    %49 = tpu.dynamic_rotate %44 by %c17_i32 dim 1 : vector<2x256xf32>, i32 -> vector<2x256xf32>
    %c16_i32 = arith.constant 16 : i32
    %50 = tpu.dynamic_rotate %44 by %c16_i32 dim 1 : vector<2x256xf32>, i32 -> vector<2x256xf32>
    %c15_i32 = arith.constant 15 : i32
    %51 = tpu.dynamic_rotate %44 by %c15_i32 dim 1 : vector<2x256xf32>, i32 -> vector<2x256xf32>
    %c1_i32 = arith.constant 1 : i32
    %52 = tpu.dynamic_rotate %44 by %c1_i32 dim 1 : vector<2x256xf32>, i32 -> vector<2x256xf32>
    %c255_i32 = arith.constant 255 : i32
    %53 = tpu.dynamic_rotate %44 by %c255_i32 dim 1 : vector<2x256xf32>, i32 -> vector<2x256xf32>
    %c241_i32 = arith.constant 241 : i32
    %54 = tpu.dynamic_rotate %44 by %c241_i32 dim 1 : vector<2x256xf32>, i32 -> vector<2x256xf32>
    %c240_i32 = arith.constant 240 : i32
    %55 = tpu.dynamic_rotate %44 by %c240_i32 dim 1 : vector<2x256xf32>, i32 -> vector<2x256xf32>
    %c239_i32 = arith.constant 239 : i32
    %56 = tpu.dynamic_rotate %44 by %c239_i32 dim 1 : vector<2x256xf32>, i32 -> vector<2x256xf32>
    %cst = arith.constant -1.000000e+00 : f32
    %57 = vector.broadcast %cst : f32 to vector<2x256xf32>
    %58 = arith.mulf %49, %57 : vector<2x256xf32>
    %59 = arith.addf %58, %51 : vector<2x256xf32>
    %cst_80 = arith.constant -2.000000e+00 : f32
    %60 = vector.broadcast %cst_80 : f32 to vector<2x256xf32>
    %61 = arith.mulf %52, %60 : vector<2x256xf32>
    %62 = arith.addf %59, %61 : vector<2x256xf32>
    %cst_81 = arith.constant 2.000000e+00 : f32
    %63 = vector.broadcast %cst_81 : f32 to vector<2x256xf32>
    %64 = arith.mulf %53, %63 : vector<2x256xf32>
    %65 = arith.addf %62, %64 : vector<2x256xf32>
    %cst_82 = arith.constant -1.000000e+00 : f32
    %66 = vector.broadcast %cst_82 : f32 to vector<2x256xf32>
    %67 = arith.mulf %54, %66 : vector<2x256xf32>
    %68 = arith.addf %65, %67 : vector<2x256xf32>
    %69 = arith.addf %68, %56 : vector<2x256xf32>
    %70 = arith.mulf %0, %69 : vector<2x256xf32>
    %cst_83 = arith.constant -1.000000e+00 : f32
    %71 = vector.broadcast %cst_83 : f32 to vector<2x256xf32>
    %72 = arith.mulf %49, %71 : vector<2x256xf32>
    %cst_84 = arith.constant -2.000000e+00 : f32
    %73 = vector.broadcast %cst_84 : f32 to vector<2x256xf32>
    %74 = arith.mulf %50, %73 : vector<2x256xf32>
    %75 = arith.addf %72, %74 : vector<2x256xf32>
    %cst_85 = arith.constant -1.000000e+00 : f32
    %76 = vector.broadcast %cst_85 : f32 to vector<2x256xf32>
    %77 = arith.mulf %51, %76 : vector<2x256xf32>
    %78 = arith.addf %75, %77 : vector<2x256xf32>
    %79 = arith.addf %78, %54 : vector<2x256xf32>
    %cst_86 = arith.constant 2.000000e+00 : f32
    %80 = vector.broadcast %cst_86 : f32 to vector<2x256xf32>
    %81 = arith.mulf %55, %80 : vector<2x256xf32>
    %82 = arith.addf %79, %81 : vector<2x256xf32>
    %83 = arith.addf %82, %56 : vector<2x256xf32>
    %84 = arith.mulf %0, %83 : vector<2x256xf32>
    %85 = vector.broadcast %1 : f32 to vector<2x256xf32>
    %86 = arith.mulf %85, %70 : vector<2x256xf32>
    %87 = vector.broadcast %4 : f32 to vector<2x256xf32>
    %88 = arith.mulf %87, %84 : vector<2x256xf32>
    %89 = arith.addf %86, %88 : vector<2x256xf32>
    %90 = vector.broadcast %7 : f32 to vector<2x256xf32>
    %91 = arith.mulf %90, %44 : vector<2x256xf32>
    %92 = arith.addf %89, %91 : vector<2x256xf32>
    %93 = vector.broadcast %10 : f32 to vector<2x256xf32>
    %94 = arith.mulf %93, %70 : vector<2x256xf32>
    %95 = vector.broadcast %13 : f32 to vector<2x256xf32>
    %96 = arith.mulf %95, %84 : vector<2x256xf32>
    %97 = arith.addf %94, %96 : vector<2x256xf32>
    %98 = vector.broadcast %16 : f32 to vector<2x256xf32>
    %99 = arith.mulf %98, %44 : vector<2x256xf32>
    %100 = arith.addf %97, %99 : vector<2x256xf32>
    %101 = vector.broadcast %19 : f32 to vector<2x256xf32>
    %102 = arith.mulf %101, %70 : vector<2x256xf32>
    %103 = vector.broadcast %22 : f32 to vector<2x256xf32>
    %104 = arith.mulf %103, %84 : vector<2x256xf32>
    %105 = arith.addf %102, %104 : vector<2x256xf32>
    %106 = vector.broadcast %25 : f32 to vector<2x256xf32>
    %107 = arith.mulf %106, %44 : vector<2x256xf32>
    %108 = arith.addf %105, %107 : vector<2x256xf32>
    %c17_i32_87 = arith.constant 17 : i32
    %109 = tpu.dynamic_rotate %46 by %c17_i32_87 dim 1 : vector<2x256xf32>, i32 -> vector<2x256xf32>
    %c16_i32_88 = arith.constant 16 : i32
    %110 = tpu.dynamic_rotate %46 by %c16_i32_88 dim 1 : vector<2x256xf32>, i32 -> vector<2x256xf32>
    %c15_i32_89 = arith.constant 15 : i32
    %111 = tpu.dynamic_rotate %46 by %c15_i32_89 dim 1 : vector<2x256xf32>, i32 -> vector<2x256xf32>
    %c1_i32_90 = arith.constant 1 : i32
    %112 = tpu.dynamic_rotate %46 by %c1_i32_90 dim 1 : vector<2x256xf32>, i32 -> vector<2x256xf32>
    %c255_i32_91 = arith.constant 255 : i32
    %113 = tpu.dynamic_rotate %46 by %c255_i32_91 dim 1 : vector<2x256xf32>, i32 -> vector<2x256xf32>
    %c241_i32_92 = arith.constant 241 : i32
    %114 = tpu.dynamic_rotate %46 by %c241_i32_92 dim 1 : vector<2x256xf32>, i32 -> vector<2x256xf32>
    %c240_i32_93 = arith.constant 240 : i32
    %115 = tpu.dynamic_rotate %46 by %c240_i32_93 dim 1 : vector<2x256xf32>, i32 -> vector<2x256xf32>
    %c239_i32_94 = arith.constant 239 : i32
    %116 = tpu.dynamic_rotate %46 by %c239_i32_94 dim 1 : vector<2x256xf32>, i32 -> vector<2x256xf32>
    %cst_95 = arith.constant -1.000000e+00 : f32
    %117 = vector.broadcast %cst_95 : f32 to vector<2x256xf32>
    %118 = arith.mulf %109, %117 : vector<2x256xf32>
    %119 = arith.addf %118, %111 : vector<2x256xf32>
    %cst_96 = arith.constant -2.000000e+00 : f32
    %120 = vector.broadcast %cst_96 : f32 to vector<2x256xf32>
    %121 = arith.mulf %112, %120 : vector<2x256xf32>
    %122 = arith.addf %119, %121 : vector<2x256xf32>
    %cst_97 = arith.constant 2.000000e+00 : f32
    %123 = vector.broadcast %cst_97 : f32 to vector<2x256xf32>
    %124 = arith.mulf %113, %123 : vector<2x256xf32>
    %125 = arith.addf %122, %124 : vector<2x256xf32>
    %cst_98 = arith.constant -1.000000e+00 : f32
    %126 = vector.broadcast %cst_98 : f32 to vector<2x256xf32>
    %127 = arith.mulf %114, %126 : vector<2x256xf32>
    %128 = arith.addf %125, %127 : vector<2x256xf32>
    %129 = arith.addf %128, %116 : vector<2x256xf32>
    %130 = arith.mulf %0, %129 : vector<2x256xf32>
    %cst_99 = arith.constant -1.000000e+00 : f32
    %131 = vector.broadcast %cst_99 : f32 to vector<2x256xf32>
    %132 = arith.mulf %109, %131 : vector<2x256xf32>
    %cst_100 = arith.constant -2.000000e+00 : f32
    %133 = vector.broadcast %cst_100 : f32 to vector<2x256xf32>
    %134 = arith.mulf %110, %133 : vector<2x256xf32>
    %135 = arith.addf %132, %134 : vector<2x256xf32>
    %cst_101 = arith.constant -1.000000e+00 : f32
    %136 = vector.broadcast %cst_101 : f32 to vector<2x256xf32>
    %137 = arith.mulf %111, %136 : vector<2x256xf32>
    %138 = arith.addf %135, %137 : vector<2x256xf32>
    %139 = arith.addf %138, %114 : vector<2x256xf32>
    %cst_102 = arith.constant 2.000000e+00 : f32
    %140 = vector.broadcast %cst_102 : f32 to vector<2x256xf32>
    %141 = arith.mulf %115, %140 : vector<2x256xf32>
    %142 = arith.addf %139, %141 : vector<2x256xf32>
    %143 = arith.addf %142, %116 : vector<2x256xf32>
    %144 = arith.mulf %0, %143 : vector<2x256xf32>
    %145 = vector.broadcast %2 : f32 to vector<2x256xf32>
    %146 = arith.mulf %145, %130 : vector<2x256xf32>
    %147 = vector.broadcast %5 : f32 to vector<2x256xf32>
    %148 = arith.mulf %147, %144 : vector<2x256xf32>
    %149 = arith.addf %146, %148 : vector<2x256xf32>
    %150 = vector.broadcast %8 : f32 to vector<2x256xf32>
    %151 = arith.mulf %150, %46 : vector<2x256xf32>
    %152 = arith.addf %149, %151 : vector<2x256xf32>
    %153 = arith.addf %92, %152 : vector<2x256xf32>
    %154 = vector.broadcast %11 : f32 to vector<2x256xf32>
    %155 = arith.mulf %154, %130 : vector<2x256xf32>
    %156 = vector.broadcast %14 : f32 to vector<2x256xf32>
    %157 = arith.mulf %156, %144 : vector<2x256xf32>
    %158 = arith.addf %155, %157 : vector<2x256xf32>
    %159 = vector.broadcast %17 : f32 to vector<2x256xf32>
    %160 = arith.mulf %159, %46 : vector<2x256xf32>
    %161 = arith.addf %158, %160 : vector<2x256xf32>
    %162 = arith.addf %100, %161 : vector<2x256xf32>
    %163 = vector.broadcast %20 : f32 to vector<2x256xf32>
    %164 = arith.mulf %163, %130 : vector<2x256xf32>
    %165 = vector.broadcast %23 : f32 to vector<2x256xf32>
    %166 = arith.mulf %165, %144 : vector<2x256xf32>
    %167 = arith.addf %164, %166 : vector<2x256xf32>
    %168 = vector.broadcast %26 : f32 to vector<2x256xf32>
    %169 = arith.mulf %168, %46 : vector<2x256xf32>
    %170 = arith.addf %167, %169 : vector<2x256xf32>
    %171 = arith.addf %108, %170 : vector<2x256xf32>
    %c17_i32_103 = arith.constant 17 : i32
    %172 = tpu.dynamic_rotate %48 by %c17_i32_103 dim 1 : vector<2x256xf32>, i32 -> vector<2x256xf32>
    %c16_i32_104 = arith.constant 16 : i32
    %173 = tpu.dynamic_rotate %48 by %c16_i32_104 dim 1 : vector<2x256xf32>, i32 -> vector<2x256xf32>
    %c15_i32_105 = arith.constant 15 : i32
    %174 = tpu.dynamic_rotate %48 by %c15_i32_105 dim 1 : vector<2x256xf32>, i32 -> vector<2x256xf32>
    %c1_i32_106 = arith.constant 1 : i32
    %175 = tpu.dynamic_rotate %48 by %c1_i32_106 dim 1 : vector<2x256xf32>, i32 -> vector<2x256xf32>
    %c255_i32_107 = arith.constant 255 : i32
    %176 = tpu.dynamic_rotate %48 by %c255_i32_107 dim 1 : vector<2x256xf32>, i32 -> vector<2x256xf32>
    %c241_i32_108 = arith.constant 241 : i32
    %177 = tpu.dynamic_rotate %48 by %c241_i32_108 dim 1 : vector<2x256xf32>, i32 -> vector<2x256xf32>
    %c240_i32_109 = arith.constant 240 : i32
    %178 = tpu.dynamic_rotate %48 by %c240_i32_109 dim 1 : vector<2x256xf32>, i32 -> vector<2x256xf32>
    %c239_i32_110 = arith.constant 239 : i32
    %179 = tpu.dynamic_rotate %48 by %c239_i32_110 dim 1 : vector<2x256xf32>, i32 -> vector<2x256xf32>
    %cst_111 = arith.constant -1.000000e+00 : f32
    %180 = vector.broadcast %cst_111 : f32 to vector<2x256xf32>
    %181 = arith.mulf %172, %180 : vector<2x256xf32>
    %182 = arith.addf %181, %174 : vector<2x256xf32>
    %cst_112 = arith.constant -2.000000e+00 : f32
    %183 = vector.broadcast %cst_112 : f32 to vector<2x256xf32>
    %184 = arith.mulf %175, %183 : vector<2x256xf32>
    %185 = arith.addf %182, %184 : vector<2x256xf32>
    %cst_113 = arith.constant 2.000000e+00 : f32
    %186 = vector.broadcast %cst_113 : f32 to vector<2x256xf32>
    %187 = arith.mulf %176, %186 : vector<2x256xf32>
    %188 = arith.addf %185, %187 : vector<2x256xf32>
    %cst_114 = arith.constant -1.000000e+00 : f32
    %189 = vector.broadcast %cst_114 : f32 to vector<2x256xf32>
    %190 = arith.mulf %177, %189 : vector<2x256xf32>
    %191 = arith.addf %188, %190 : vector<2x256xf32>
    %192 = arith.addf %191, %179 : vector<2x256xf32>
    %193 = arith.mulf %0, %192 : vector<2x256xf32>
    %cst_115 = arith.constant -1.000000e+00 : f32
    %194 = vector.broadcast %cst_115 : f32 to vector<2x256xf32>
    %195 = arith.mulf %172, %194 : vector<2x256xf32>
    %cst_116 = arith.constant -2.000000e+00 : f32
    %196 = vector.broadcast %cst_116 : f32 to vector<2x256xf32>
    %197 = arith.mulf %173, %196 : vector<2x256xf32>
    %198 = arith.addf %195, %197 : vector<2x256xf32>
    %cst_117 = arith.constant -1.000000e+00 : f32
    %199 = vector.broadcast %cst_117 : f32 to vector<2x256xf32>
    %200 = arith.mulf %174, %199 : vector<2x256xf32>
    %201 = arith.addf %198, %200 : vector<2x256xf32>
    %202 = arith.addf %201, %177 : vector<2x256xf32>
    %cst_118 = arith.constant 2.000000e+00 : f32
    %203 = vector.broadcast %cst_118 : f32 to vector<2x256xf32>
    %204 = arith.mulf %178, %203 : vector<2x256xf32>
    %205 = arith.addf %202, %204 : vector<2x256xf32>
    %206 = arith.addf %205, %179 : vector<2x256xf32>
    %207 = arith.mulf %0, %206 : vector<2x256xf32>
    %208 = vector.broadcast %3 : f32 to vector<2x256xf32>
    %209 = arith.mulf %208, %193 : vector<2x256xf32>
    %210 = vector.broadcast %6 : f32 to vector<2x256xf32>
    %211 = arith.mulf %210, %207 : vector<2x256xf32>
    %212 = arith.addf %209, %211 : vector<2x256xf32>
    %213 = vector.broadcast %9 : f32 to vector<2x256xf32>
    %214 = arith.mulf %213, %48 : vector<2x256xf32>
    %215 = arith.addf %212, %214 : vector<2x256xf32>
    %216 = arith.addf %153, %215 : vector<2x256xf32>
    %217 = vector.broadcast %12 : f32 to vector<2x256xf32>
    %218 = arith.mulf %217, %193 : vector<2x256xf32>
    %219 = vector.broadcast %15 : f32 to vector<2x256xf32>
    %220 = arith.mulf %219, %207 : vector<2x256xf32>
    %221 = arith.addf %218, %220 : vector<2x256xf32>
    %222 = vector.broadcast %18 : f32 to vector<2x256xf32>
    %223 = arith.mulf %222, %48 : vector<2x256xf32>
    %224 = arith.addf %221, %223 : vector<2x256xf32>
    %225 = arith.addf %162, %224 : vector<2x256xf32>
    %226 = vector.broadcast %21 : f32 to vector<2x256xf32>
    %227 = arith.mulf %226, %193 : vector<2x256xf32>
    %228 = vector.broadcast %24 : f32 to vector<2x256xf32>
    %229 = arith.mulf %228, %207 : vector<2x256xf32>
    %230 = arith.addf %227, %229 : vector<2x256xf32>
    %231 = vector.broadcast %27 : f32 to vector<2x256xf32>
    %232 = arith.mulf %231, %48 : vector<2x256xf32>
    %233 = arith.addf %230, %232 : vector<2x256xf32>
    %234 = arith.addf %171, %233 : vector<2x256xf32>
    %235 = vector.broadcast %28 : f32 to vector<2x256xf32>
    %236 = arith.addf %216, %235 : vector<2x256xf32>
    %cst_119 = arith.constant 0.000000e+00 : f32
    %237 = vector.broadcast %cst_119 : f32 to vector<2x256xf32>
    %238 = arith.maximumf %236, %237 : vector<2x256xf32>
    %239 = vector.broadcast %29 : f32 to vector<2x256xf32>
    %240 = arith.addf %225, %239 : vector<2x256xf32>
    %cst_120 = arith.constant 0.000000e+00 : f32
    %241 = vector.broadcast %cst_120 : f32 to vector<2x256xf32>
    %242 = arith.maximumf %240, %241 : vector<2x256xf32>
    %243 = vector.broadcast %30 : f32 to vector<2x256xf32>
    %244 = arith.addf %234, %243 : vector<2x256xf32>
    %cst_121 = arith.constant 0.000000e+00 : f32
    %245 = vector.broadcast %cst_121 : f32 to vector<2x256xf32>
    %246 = arith.maximumf %244, %245 : vector<2x256xf32>
    %247 = vector.broadcast %31 : f32 to vector<2x256xf32>
    %248 = arith.mulf %247, %238 : vector<2x256xf32>
    %249 = vector.broadcast %32 : f32 to vector<2x256xf32>
    %250 = arith.mulf %249, %242 : vector<2x256xf32>
    %251 = arith.addf %248, %250 : vector<2x256xf32>
    %252 = vector.broadcast %33 : f32 to vector<2x256xf32>
    %253 = arith.mulf %252, %246 : vector<2x256xf32>
    %254 = arith.addf %251, %253 : vector<2x256xf32>
    %255 = vector.broadcast %40 : f32 to vector<2x256xf32>
    %256 = arith.addf %254, %255 : vector<2x256xf32>
    %257 = vector.broadcast %34 : f32 to vector<2x256xf32>
    %258 = arith.mulf %257, %238 : vector<2x256xf32>
    %259 = vector.broadcast %35 : f32 to vector<2x256xf32>
    %260 = arith.mulf %259, %242 : vector<2x256xf32>
    %261 = arith.addf %258, %260 : vector<2x256xf32>
    %262 = vector.broadcast %36 : f32 to vector<2x256xf32>
    %263 = arith.mulf %262, %246 : vector<2x256xf32>
    %264 = arith.addf %261, %263 : vector<2x256xf32>
    %265 = vector.broadcast %41 : f32 to vector<2x256xf32>
    %266 = arith.addf %264, %265 : vector<2x256xf32>
    %267 = vector.broadcast %37 : f32 to vector<2x256xf32>
    %268 = arith.mulf %267, %238 : vector<2x256xf32>
    %269 = vector.broadcast %38 : f32 to vector<2x256xf32>
    %270 = arith.mulf %269, %242 : vector<2x256xf32>
    %271 = arith.addf %268, %270 : vector<2x256xf32>
    %272 = vector.broadcast %39 : f32 to vector<2x256xf32>
    %273 = arith.mulf %272, %246 : vector<2x256xf32>
    %274 = arith.addf %271, %273 : vector<2x256xf32>
    %275 = vector.broadcast %42 : f32 to vector<2x256xf32>
    %276 = arith.addf %274, %275 : vector<2x256xf32>
    %277 = math.tanh %256 : vector<2x256xf32>
    %278 = arith.addf %44, %277 : vector<2x256xf32>
    %279 = math.tanh %266 : vector<2x256xf32>
    %280 = arith.addf %46, %279 : vector<2x256xf32>
    %281 = math.tanh %276 : vector<2x256xf32>
    %282 = arith.addf %48, %281 : vector<2x256xf32>
    %c17_i32_122 = arith.constant 17 : i32
    %283 = tpu.dynamic_rotate %278 by %c17_i32_122 dim 1 : vector<2x256xf32>, i32 -> vector<2x256xf32>
    %c16_i32_123 = arith.constant 16 : i32
    %284 = tpu.dynamic_rotate %278 by %c16_i32_123 dim 1 : vector<2x256xf32>, i32 -> vector<2x256xf32>
    %c15_i32_124 = arith.constant 15 : i32
    %285 = tpu.dynamic_rotate %278 by %c15_i32_124 dim 1 : vector<2x256xf32>, i32 -> vector<2x256xf32>
    %c1_i32_125 = arith.constant 1 : i32
    %286 = tpu.dynamic_rotate %278 by %c1_i32_125 dim 1 : vector<2x256xf32>, i32 -> vector<2x256xf32>
    %c255_i32_126 = arith.constant 255 : i32
    %287 = tpu.dynamic_rotate %278 by %c255_i32_126 dim 1 : vector<2x256xf32>, i32 -> vector<2x256xf32>
    %c241_i32_127 = arith.constant 241 : i32
    %288 = tpu.dynamic_rotate %278 by %c241_i32_127 dim 1 : vector<2x256xf32>, i32 -> vector<2x256xf32>
    %c240_i32_128 = arith.constant 240 : i32
    %289 = tpu.dynamic_rotate %278 by %c240_i32_128 dim 1 : vector<2x256xf32>, i32 -> vector<2x256xf32>
    %c239_i32_129 = arith.constant 239 : i32
    %290 = tpu.dynamic_rotate %278 by %c239_i32_129 dim 1 : vector<2x256xf32>, i32 -> vector<2x256xf32>
    %cst_130 = arith.constant -1.000000e+00 : f32
    %291 = vector.broadcast %cst_130 : f32 to vector<2x256xf32>
    %292 = arith.mulf %283, %291 : vector<2x256xf32>
    %293 = arith.addf %292, %285 : vector<2x256xf32>
    %cst_131 = arith.constant -2.000000e+00 : f32
    %294 = vector.broadcast %cst_131 : f32 to vector<2x256xf32>
    %295 = arith.mulf %286, %294 : vector<2x256xf32>
    %296 = arith.addf %293, %295 : vector<2x256xf32>
    %cst_132 = arith.constant 2.000000e+00 : f32
    %297 = vector.broadcast %cst_132 : f32 to vector<2x256xf32>
    %298 = arith.mulf %287, %297 : vector<2x256xf32>
    %299 = arith.addf %296, %298 : vector<2x256xf32>
    %cst_133 = arith.constant -1.000000e+00 : f32
    %300 = vector.broadcast %cst_133 : f32 to vector<2x256xf32>
    %301 = arith.mulf %288, %300 : vector<2x256xf32>
    %302 = arith.addf %299, %301 : vector<2x256xf32>
    %303 = arith.addf %302, %290 : vector<2x256xf32>
    %304 = arith.mulf %0, %303 : vector<2x256xf32>
    %cst_134 = arith.constant -1.000000e+00 : f32
    %305 = vector.broadcast %cst_134 : f32 to vector<2x256xf32>
    %306 = arith.mulf %283, %305 : vector<2x256xf32>
    %cst_135 = arith.constant -2.000000e+00 : f32
    %307 = vector.broadcast %cst_135 : f32 to vector<2x256xf32>
    %308 = arith.mulf %284, %307 : vector<2x256xf32>
    %309 = arith.addf %306, %308 : vector<2x256xf32>
    %cst_136 = arith.constant -1.000000e+00 : f32
    %310 = vector.broadcast %cst_136 : f32 to vector<2x256xf32>
    %311 = arith.mulf %285, %310 : vector<2x256xf32>
    %312 = arith.addf %309, %311 : vector<2x256xf32>
    %313 = arith.addf %312, %288 : vector<2x256xf32>
    %cst_137 = arith.constant 2.000000e+00 : f32
    %314 = vector.broadcast %cst_137 : f32 to vector<2x256xf32>
    %315 = arith.mulf %289, %314 : vector<2x256xf32>
    %316 = arith.addf %313, %315 : vector<2x256xf32>
    %317 = arith.addf %316, %290 : vector<2x256xf32>
    %318 = arith.mulf %0, %317 : vector<2x256xf32>
    %319 = vector.broadcast %1 : f32 to vector<2x256xf32>
    %320 = arith.mulf %319, %304 : vector<2x256xf32>
    %321 = vector.broadcast %4 : f32 to vector<2x256xf32>
    %322 = arith.mulf %321, %318 : vector<2x256xf32>
    %323 = arith.addf %320, %322 : vector<2x256xf32>
    %324 = vector.broadcast %7 : f32 to vector<2x256xf32>
    %325 = arith.mulf %324, %278 : vector<2x256xf32>
    %326 = arith.addf %323, %325 : vector<2x256xf32>
    %327 = vector.broadcast %10 : f32 to vector<2x256xf32>
    %328 = arith.mulf %327, %304 : vector<2x256xf32>
    %329 = vector.broadcast %13 : f32 to vector<2x256xf32>
    %330 = arith.mulf %329, %318 : vector<2x256xf32>
    %331 = arith.addf %328, %330 : vector<2x256xf32>
    %332 = vector.broadcast %16 : f32 to vector<2x256xf32>
    %333 = arith.mulf %332, %278 : vector<2x256xf32>
    %334 = arith.addf %331, %333 : vector<2x256xf32>
    %335 = vector.broadcast %19 : f32 to vector<2x256xf32>
    %336 = arith.mulf %335, %304 : vector<2x256xf32>
    %337 = vector.broadcast %22 : f32 to vector<2x256xf32>
    %338 = arith.mulf %337, %318 : vector<2x256xf32>
    %339 = arith.addf %336, %338 : vector<2x256xf32>
    %340 = vector.broadcast %25 : f32 to vector<2x256xf32>
    %341 = arith.mulf %340, %278 : vector<2x256xf32>
    %342 = arith.addf %339, %341 : vector<2x256xf32>
    %c17_i32_138 = arith.constant 17 : i32
    %343 = tpu.dynamic_rotate %280 by %c17_i32_138 dim 1 : vector<2x256xf32>, i32 -> vector<2x256xf32>
    %c16_i32_139 = arith.constant 16 : i32
    %344 = tpu.dynamic_rotate %280 by %c16_i32_139 dim 1 : vector<2x256xf32>, i32 -> vector<2x256xf32>
    %c15_i32_140 = arith.constant 15 : i32
    %345 = tpu.dynamic_rotate %280 by %c15_i32_140 dim 1 : vector<2x256xf32>, i32 -> vector<2x256xf32>
    %c1_i32_141 = arith.constant 1 : i32
    %346 = tpu.dynamic_rotate %280 by %c1_i32_141 dim 1 : vector<2x256xf32>, i32 -> vector<2x256xf32>
    %c255_i32_142 = arith.constant 255 : i32
    %347 = tpu.dynamic_rotate %280 by %c255_i32_142 dim 1 : vector<2x256xf32>, i32 -> vector<2x256xf32>
    %c241_i32_143 = arith.constant 241 : i32
    %348 = tpu.dynamic_rotate %280 by %c241_i32_143 dim 1 : vector<2x256xf32>, i32 -> vector<2x256xf32>
    %c240_i32_144 = arith.constant 240 : i32
    %349 = tpu.dynamic_rotate %280 by %c240_i32_144 dim 1 : vector<2x256xf32>, i32 -> vector<2x256xf32>
    %c239_i32_145 = arith.constant 239 : i32
    %350 = tpu.dynamic_rotate %280 by %c239_i32_145 dim 1 : vector<2x256xf32>, i32 -> vector<2x256xf32>
    %cst_146 = arith.constant -1.000000e+00 : f32
    %351 = vector.broadcast %cst_146 : f32 to vector<2x256xf32>
    %352 = arith.mulf %343, %351 : vector<2x256xf32>
    %353 = arith.addf %352, %345 : vector<2x256xf32>
    %cst_147 = arith.constant -2.000000e+00 : f32
    %354 = vector.broadcast %cst_147 : f32 to vector<2x256xf32>
    %355 = arith.mulf %346, %354 : vector<2x256xf32>
    %356 = arith.addf %353, %355 : vector<2x256xf32>
    %cst_148 = arith.constant 2.000000e+00 : f32
    %357 = vector.broadcast %cst_148 : f32 to vector<2x256xf32>
    %358 = arith.mulf %347, %357 : vector<2x256xf32>
    %359 = arith.addf %356, %358 : vector<2x256xf32>
    %cst_149 = arith.constant -1.000000e+00 : f32
    %360 = vector.broadcast %cst_149 : f32 to vector<2x256xf32>
    %361 = arith.mulf %348, %360 : vector<2x256xf32>
    %362 = arith.addf %359, %361 : vector<2x256xf32>
    %363 = arith.addf %362, %350 : vector<2x256xf32>
    %364 = arith.mulf %0, %363 : vector<2x256xf32>
    %cst_150 = arith.constant -1.000000e+00 : f32
    %365 = vector.broadcast %cst_150 : f32 to vector<2x256xf32>
    %366 = arith.mulf %343, %365 : vector<2x256xf32>
    %cst_151 = arith.constant -2.000000e+00 : f32
    %367 = vector.broadcast %cst_151 : f32 to vector<2x256xf32>
    %368 = arith.mulf %344, %367 : vector<2x256xf32>
    %369 = arith.addf %366, %368 : vector<2x256xf32>
    %cst_152 = arith.constant -1.000000e+00 : f32
    %370 = vector.broadcast %cst_152 : f32 to vector<2x256xf32>
    %371 = arith.mulf %345, %370 : vector<2x256xf32>
    %372 = arith.addf %369, %371 : vector<2x256xf32>
    %373 = arith.addf %372, %348 : vector<2x256xf32>
    %cst_153 = arith.constant 2.000000e+00 : f32
    %374 = vector.broadcast %cst_153 : f32 to vector<2x256xf32>
    %375 = arith.mulf %349, %374 : vector<2x256xf32>
    %376 = arith.addf %373, %375 : vector<2x256xf32>
    %377 = arith.addf %376, %350 : vector<2x256xf32>
    %378 = arith.mulf %0, %377 : vector<2x256xf32>
    %379 = vector.broadcast %2 : f32 to vector<2x256xf32>
    %380 = arith.mulf %379, %364 : vector<2x256xf32>
    %381 = vector.broadcast %5 : f32 to vector<2x256xf32>
    %382 = arith.mulf %381, %378 : vector<2x256xf32>
    %383 = arith.addf %380, %382 : vector<2x256xf32>
    %384 = vector.broadcast %8 : f32 to vector<2x256xf32>
    %385 = arith.mulf %384, %280 : vector<2x256xf32>
    %386 = arith.addf %383, %385 : vector<2x256xf32>
    %387 = arith.addf %326, %386 : vector<2x256xf32>
    %388 = vector.broadcast %11 : f32 to vector<2x256xf32>
    %389 = arith.mulf %388, %364 : vector<2x256xf32>
    %390 = vector.broadcast %14 : f32 to vector<2x256xf32>
    %391 = arith.mulf %390, %378 : vector<2x256xf32>
    %392 = arith.addf %389, %391 : vector<2x256xf32>
    %393 = vector.broadcast %17 : f32 to vector<2x256xf32>
    %394 = arith.mulf %393, %280 : vector<2x256xf32>
    %395 = arith.addf %392, %394 : vector<2x256xf32>
    %396 = arith.addf %334, %395 : vector<2x256xf32>
    %397 = vector.broadcast %20 : f32 to vector<2x256xf32>
    %398 = arith.mulf %397, %364 : vector<2x256xf32>
    %399 = vector.broadcast %23 : f32 to vector<2x256xf32>
    %400 = arith.mulf %399, %378 : vector<2x256xf32>
    %401 = arith.addf %398, %400 : vector<2x256xf32>
    %402 = vector.broadcast %26 : f32 to vector<2x256xf32>
    %403 = arith.mulf %402, %280 : vector<2x256xf32>
    %404 = arith.addf %401, %403 : vector<2x256xf32>
    %405 = arith.addf %342, %404 : vector<2x256xf32>
    %c17_i32_154 = arith.constant 17 : i32
    %406 = tpu.dynamic_rotate %282 by %c17_i32_154 dim 1 : vector<2x256xf32>, i32 -> vector<2x256xf32>
    %c16_i32_155 = arith.constant 16 : i32
    %407 = tpu.dynamic_rotate %282 by %c16_i32_155 dim 1 : vector<2x256xf32>, i32 -> vector<2x256xf32>
    %c15_i32_156 = arith.constant 15 : i32
    %408 = tpu.dynamic_rotate %282 by %c15_i32_156 dim 1 : vector<2x256xf32>, i32 -> vector<2x256xf32>
    %c1_i32_157 = arith.constant 1 : i32
    %409 = tpu.dynamic_rotate %282 by %c1_i32_157 dim 1 : vector<2x256xf32>, i32 -> vector<2x256xf32>
    %c255_i32_158 = arith.constant 255 : i32
    %410 = tpu.dynamic_rotate %282 by %c255_i32_158 dim 1 : vector<2x256xf32>, i32 -> vector<2x256xf32>
    %c241_i32_159 = arith.constant 241 : i32
    %411 = tpu.dynamic_rotate %282 by %c241_i32_159 dim 1 : vector<2x256xf32>, i32 -> vector<2x256xf32>
    %c240_i32_160 = arith.constant 240 : i32
    %412 = tpu.dynamic_rotate %282 by %c240_i32_160 dim 1 : vector<2x256xf32>, i32 -> vector<2x256xf32>
    %c239_i32_161 = arith.constant 239 : i32
    %413 = tpu.dynamic_rotate %282 by %c239_i32_161 dim 1 : vector<2x256xf32>, i32 -> vector<2x256xf32>
    %cst_162 = arith.constant -1.000000e+00 : f32
    %414 = vector.broadcast %cst_162 : f32 to vector<2x256xf32>
    %415 = arith.mulf %406, %414 : vector<2x256xf32>
    %416 = arith.addf %415, %408 : vector<2x256xf32>
    %cst_163 = arith.constant -2.000000e+00 : f32
    %417 = vector.broadcast %cst_163 : f32 to vector<2x256xf32>
    %418 = arith.mulf %409, %417 : vector<2x256xf32>
    %419 = arith.addf %416, %418 : vector<2x256xf32>
    %cst_164 = arith.constant 2.000000e+00 : f32
    %420 = vector.broadcast %cst_164 : f32 to vector<2x256xf32>
    %421 = arith.mulf %410, %420 : vector<2x256xf32>
    %422 = arith.addf %419, %421 : vector<2x256xf32>
    %cst_165 = arith.constant -1.000000e+00 : f32
    %423 = vector.broadcast %cst_165 : f32 to vector<2x256xf32>
    %424 = arith.mulf %411, %423 : vector<2x256xf32>
    %425 = arith.addf %422, %424 : vector<2x256xf32>
    %426 = arith.addf %425, %413 : vector<2x256xf32>
    %427 = arith.mulf %0, %426 : vector<2x256xf32>
    %cst_166 = arith.constant -1.000000e+00 : f32
    %428 = vector.broadcast %cst_166 : f32 to vector<2x256xf32>
    %429 = arith.mulf %406, %428 : vector<2x256xf32>
    %cst_167 = arith.constant -2.000000e+00 : f32
    %430 = vector.broadcast %cst_167 : f32 to vector<2x256xf32>
    %431 = arith.mulf %407, %430 : vector<2x256xf32>
    %432 = arith.addf %429, %431 : vector<2x256xf32>
    %cst_168 = arith.constant -1.000000e+00 : f32
    %433 = vector.broadcast %cst_168 : f32 to vector<2x256xf32>
    %434 = arith.mulf %408, %433 : vector<2x256xf32>
    %435 = arith.addf %432, %434 : vector<2x256xf32>
    %436 = arith.addf %435, %411 : vector<2x256xf32>
    %cst_169 = arith.constant 2.000000e+00 : f32
    %437 = vector.broadcast %cst_169 : f32 to vector<2x256xf32>
    %438 = arith.mulf %412, %437 : vector<2x256xf32>
    %439 = arith.addf %436, %438 : vector<2x256xf32>
    %440 = arith.addf %439, %413 : vector<2x256xf32>
    %441 = arith.mulf %0, %440 : vector<2x256xf32>
    %442 = vector.broadcast %3 : f32 to vector<2x256xf32>
    %443 = arith.mulf %442, %427 : vector<2x256xf32>
    %444 = vector.broadcast %6 : f32 to vector<2x256xf32>
    %445 = arith.mulf %444, %441 : vector<2x256xf32>
    %446 = arith.addf %443, %445 : vector<2x256xf32>
    %447 = vector.broadcast %9 : f32 to vector<2x256xf32>
    %448 = arith.mulf %447, %282 : vector<2x256xf32>
    %449 = arith.addf %446, %448 : vector<2x256xf32>
    %450 = arith.addf %387, %449 : vector<2x256xf32>
    %451 = vector.broadcast %12 : f32 to vector<2x256xf32>
    %452 = arith.mulf %451, %427 : vector<2x256xf32>
    %453 = vector.broadcast %15 : f32 to vector<2x256xf32>
    %454 = arith.mulf %453, %441 : vector<2x256xf32>
    %455 = arith.addf %452, %454 : vector<2x256xf32>
    %456 = vector.broadcast %18 : f32 to vector<2x256xf32>
    %457 = arith.mulf %456, %282 : vector<2x256xf32>
    %458 = arith.addf %455, %457 : vector<2x256xf32>
    %459 = arith.addf %396, %458 : vector<2x256xf32>
    %460 = vector.broadcast %21 : f32 to vector<2x256xf32>
    %461 = arith.mulf %460, %427 : vector<2x256xf32>
    %462 = vector.broadcast %24 : f32 to vector<2x256xf32>
    %463 = arith.mulf %462, %441 : vector<2x256xf32>
    %464 = arith.addf %461, %463 : vector<2x256xf32>
    %465 = vector.broadcast %27 : f32 to vector<2x256xf32>
    %466 = arith.mulf %465, %282 : vector<2x256xf32>
    %467 = arith.addf %464, %466 : vector<2x256xf32>
    %468 = arith.addf %405, %467 : vector<2x256xf32>
    %469 = vector.broadcast %28 : f32 to vector<2x256xf32>
    %470 = arith.addf %450, %469 : vector<2x256xf32>
    %cst_170 = arith.constant 0.000000e+00 : f32
    %471 = vector.broadcast %cst_170 : f32 to vector<2x256xf32>
    %472 = arith.maximumf %470, %471 : vector<2x256xf32>
    %473 = vector.broadcast %29 : f32 to vector<2x256xf32>
    %474 = arith.addf %459, %473 : vector<2x256xf32>
    %cst_171 = arith.constant 0.000000e+00 : f32
    %475 = vector.broadcast %cst_171 : f32 to vector<2x256xf32>
    %476 = arith.maximumf %474, %475 : vector<2x256xf32>
    %477 = vector.broadcast %30 : f32 to vector<2x256xf32>
    %478 = arith.addf %468, %477 : vector<2x256xf32>
    %cst_172 = arith.constant 0.000000e+00 : f32
    %479 = vector.broadcast %cst_172 : f32 to vector<2x256xf32>
    %480 = arith.maximumf %478, %479 : vector<2x256xf32>
    %481 = vector.broadcast %31 : f32 to vector<2x256xf32>
    %482 = arith.mulf %481, %472 : vector<2x256xf32>
    %483 = vector.broadcast %32 : f32 to vector<2x256xf32>
    %484 = arith.mulf %483, %476 : vector<2x256xf32>
    %485 = arith.addf %482, %484 : vector<2x256xf32>
    %486 = vector.broadcast %33 : f32 to vector<2x256xf32>
    %487 = arith.mulf %486, %480 : vector<2x256xf32>
    %488 = arith.addf %485, %487 : vector<2x256xf32>
    %489 = vector.broadcast %40 : f32 to vector<2x256xf32>
    %490 = arith.addf %488, %489 : vector<2x256xf32>
    %491 = vector.broadcast %34 : f32 to vector<2x256xf32>
    %492 = arith.mulf %491, %472 : vector<2x256xf32>
    %493 = vector.broadcast %35 : f32 to vector<2x256xf32>
    %494 = arith.mulf %493, %476 : vector<2x256xf32>
    %495 = arith.addf %492, %494 : vector<2x256xf32>
    %496 = vector.broadcast %36 : f32 to vector<2x256xf32>
    %497 = arith.mulf %496, %480 : vector<2x256xf32>
    %498 = arith.addf %495, %497 : vector<2x256xf32>
    %499 = vector.broadcast %41 : f32 to vector<2x256xf32>
    %500 = arith.addf %498, %499 : vector<2x256xf32>
    %501 = vector.broadcast %37 : f32 to vector<2x256xf32>
    %502 = arith.mulf %501, %472 : vector<2x256xf32>
    %503 = vector.broadcast %38 : f32 to vector<2x256xf32>
    %504 = arith.mulf %503, %476 : vector<2x256xf32>
    %505 = arith.addf %502, %504 : vector<2x256xf32>
    %506 = vector.broadcast %39 : f32 to vector<2x256xf32>
    %507 = arith.mulf %506, %480 : vector<2x256xf32>
    %508 = arith.addf %505, %507 : vector<2x256xf32>
    %509 = vector.broadcast %42 : f32 to vector<2x256xf32>
    %510 = arith.addf %508, %509 : vector<2x256xf32>
    %511 = math.tanh %490 : vector<2x256xf32>
    %512 = arith.addf %278, %511 : vector<2x256xf32>
    %513 = math.tanh %500 : vector<2x256xf32>
    %514 = arith.addf %280, %513 : vector<2x256xf32>
    %515 = math.tanh %510 : vector<2x256xf32>
    %516 = arith.addf %282, %515 : vector<2x256xf32>
    %c17_i32_173 = arith.constant 17 : i32
    %517 = tpu.dynamic_rotate %512 by %c17_i32_173 dim 1 : vector<2x256xf32>, i32 -> vector<2x256xf32>
    %c16_i32_174 = arith.constant 16 : i32
    %518 = tpu.dynamic_rotate %512 by %c16_i32_174 dim 1 : vector<2x256xf32>, i32 -> vector<2x256xf32>
    %c15_i32_175 = arith.constant 15 : i32
    %519 = tpu.dynamic_rotate %512 by %c15_i32_175 dim 1 : vector<2x256xf32>, i32 -> vector<2x256xf32>
    %c1_i32_176 = arith.constant 1 : i32
    %520 = tpu.dynamic_rotate %512 by %c1_i32_176 dim 1 : vector<2x256xf32>, i32 -> vector<2x256xf32>
    %c255_i32_177 = arith.constant 255 : i32
    %521 = tpu.dynamic_rotate %512 by %c255_i32_177 dim 1 : vector<2x256xf32>, i32 -> vector<2x256xf32>
    %c241_i32_178 = arith.constant 241 : i32
    %522 = tpu.dynamic_rotate %512 by %c241_i32_178 dim 1 : vector<2x256xf32>, i32 -> vector<2x256xf32>
    %c240_i32_179 = arith.constant 240 : i32
    %523 = tpu.dynamic_rotate %512 by %c240_i32_179 dim 1 : vector<2x256xf32>, i32 -> vector<2x256xf32>
    %c239_i32_180 = arith.constant 239 : i32
    %524 = tpu.dynamic_rotate %512 by %c239_i32_180 dim 1 : vector<2x256xf32>, i32 -> vector<2x256xf32>
    %cst_181 = arith.constant -1.000000e+00 : f32
    %525 = vector.broadcast %cst_181 : f32 to vector<2x256xf32>
    %526 = arith.mulf %517, %525 : vector<2x256xf32>
    %527 = arith.addf %526, %519 : vector<2x256xf32>
    %cst_182 = arith.constant -2.000000e+00 : f32
    %528 = vector.broadcast %cst_182 : f32 to vector<2x256xf32>
    %529 = arith.mulf %520, %528 : vector<2x256xf32>
    %530 = arith.addf %527, %529 : vector<2x256xf32>
    %cst_183 = arith.constant 2.000000e+00 : f32
    %531 = vector.broadcast %cst_183 : f32 to vector<2x256xf32>
    %532 = arith.mulf %521, %531 : vector<2x256xf32>
    %533 = arith.addf %530, %532 : vector<2x256xf32>
    %cst_184 = arith.constant -1.000000e+00 : f32
    %534 = vector.broadcast %cst_184 : f32 to vector<2x256xf32>
    %535 = arith.mulf %522, %534 : vector<2x256xf32>
    %536 = arith.addf %533, %535 : vector<2x256xf32>
    %537 = arith.addf %536, %524 : vector<2x256xf32>
    %538 = arith.mulf %0, %537 : vector<2x256xf32>
    %cst_185 = arith.constant -1.000000e+00 : f32
    %539 = vector.broadcast %cst_185 : f32 to vector<2x256xf32>
    %540 = arith.mulf %517, %539 : vector<2x256xf32>
    %cst_186 = arith.constant -2.000000e+00 : f32
    %541 = vector.broadcast %cst_186 : f32 to vector<2x256xf32>
    %542 = arith.mulf %518, %541 : vector<2x256xf32>
    %543 = arith.addf %540, %542 : vector<2x256xf32>
    %cst_187 = arith.constant -1.000000e+00 : f32
    %544 = vector.broadcast %cst_187 : f32 to vector<2x256xf32>
    %545 = arith.mulf %519, %544 : vector<2x256xf32>
    %546 = arith.addf %543, %545 : vector<2x256xf32>
    %547 = arith.addf %546, %522 : vector<2x256xf32>
    %cst_188 = arith.constant 2.000000e+00 : f32
    %548 = vector.broadcast %cst_188 : f32 to vector<2x256xf32>
    %549 = arith.mulf %523, %548 : vector<2x256xf32>
    %550 = arith.addf %547, %549 : vector<2x256xf32>
    %551 = arith.addf %550, %524 : vector<2x256xf32>
    %552 = arith.mulf %0, %551 : vector<2x256xf32>
    %553 = vector.broadcast %1 : f32 to vector<2x256xf32>
    %554 = arith.mulf %553, %538 : vector<2x256xf32>
    %555 = vector.broadcast %4 : f32 to vector<2x256xf32>
    %556 = arith.mulf %555, %552 : vector<2x256xf32>
    %557 = arith.addf %554, %556 : vector<2x256xf32>
    %558 = vector.broadcast %7 : f32 to vector<2x256xf32>
    %559 = arith.mulf %558, %512 : vector<2x256xf32>
    %560 = arith.addf %557, %559 : vector<2x256xf32>
    %561 = vector.broadcast %10 : f32 to vector<2x256xf32>
    %562 = arith.mulf %561, %538 : vector<2x256xf32>
    %563 = vector.broadcast %13 : f32 to vector<2x256xf32>
    %564 = arith.mulf %563, %552 : vector<2x256xf32>
    %565 = arith.addf %562, %564 : vector<2x256xf32>
    %566 = vector.broadcast %16 : f32 to vector<2x256xf32>
    %567 = arith.mulf %566, %512 : vector<2x256xf32>
    %568 = arith.addf %565, %567 : vector<2x256xf32>
    %569 = vector.broadcast %19 : f32 to vector<2x256xf32>
    %570 = arith.mulf %569, %538 : vector<2x256xf32>
    %571 = vector.broadcast %22 : f32 to vector<2x256xf32>
    %572 = arith.mulf %571, %552 : vector<2x256xf32>
    %573 = arith.addf %570, %572 : vector<2x256xf32>
    %574 = vector.broadcast %25 : f32 to vector<2x256xf32>
    %575 = arith.mulf %574, %512 : vector<2x256xf32>
    %576 = arith.addf %573, %575 : vector<2x256xf32>
    %c17_i32_189 = arith.constant 17 : i32
    %577 = tpu.dynamic_rotate %514 by %c17_i32_189 dim 1 : vector<2x256xf32>, i32 -> vector<2x256xf32>
    %c16_i32_190 = arith.constant 16 : i32
    %578 = tpu.dynamic_rotate %514 by %c16_i32_190 dim 1 : vector<2x256xf32>, i32 -> vector<2x256xf32>
    %c15_i32_191 = arith.constant 15 : i32
    %579 = tpu.dynamic_rotate %514 by %c15_i32_191 dim 1 : vector<2x256xf32>, i32 -> vector<2x256xf32>
    %c1_i32_192 = arith.constant 1 : i32
    %580 = tpu.dynamic_rotate %514 by %c1_i32_192 dim 1 : vector<2x256xf32>, i32 -> vector<2x256xf32>
    %c255_i32_193 = arith.constant 255 : i32
    %581 = tpu.dynamic_rotate %514 by %c255_i32_193 dim 1 : vector<2x256xf32>, i32 -> vector<2x256xf32>
    %c241_i32_194 = arith.constant 241 : i32
    %582 = tpu.dynamic_rotate %514 by %c241_i32_194 dim 1 : vector<2x256xf32>, i32 -> vector<2x256xf32>
    %c240_i32_195 = arith.constant 240 : i32
    %583 = tpu.dynamic_rotate %514 by %c240_i32_195 dim 1 : vector<2x256xf32>, i32 -> vector<2x256xf32>
    %c239_i32_196 = arith.constant 239 : i32
    %584 = tpu.dynamic_rotate %514 by %c239_i32_196 dim 1 : vector<2x256xf32>, i32 -> vector<2x256xf32>
    %cst_197 = arith.constant -1.000000e+00 : f32
    %585 = vector.broadcast %cst_197 : f32 to vector<2x256xf32>
    %586 = arith.mulf %577, %585 : vector<2x256xf32>
    %587 = arith.addf %586, %579 : vector<2x256xf32>
    %cst_198 = arith.constant -2.000000e+00 : f32
    %588 = vector.broadcast %cst_198 : f32 to vector<2x256xf32>
    %589 = arith.mulf %580, %588 : vector<2x256xf32>
    %590 = arith.addf %587, %589 : vector<2x256xf32>
    %cst_199 = arith.constant 2.000000e+00 : f32
    %591 = vector.broadcast %cst_199 : f32 to vector<2x256xf32>
    %592 = arith.mulf %581, %591 : vector<2x256xf32>
    %593 = arith.addf %590, %592 : vector<2x256xf32>
    %cst_200 = arith.constant -1.000000e+00 : f32
    %594 = vector.broadcast %cst_200 : f32 to vector<2x256xf32>
    %595 = arith.mulf %582, %594 : vector<2x256xf32>
    %596 = arith.addf %593, %595 : vector<2x256xf32>
    %597 = arith.addf %596, %584 : vector<2x256xf32>
    %598 = arith.mulf %0, %597 : vector<2x256xf32>
    %cst_201 = arith.constant -1.000000e+00 : f32
    %599 = vector.broadcast %cst_201 : f32 to vector<2x256xf32>
    %600 = arith.mulf %577, %599 : vector<2x256xf32>
    %cst_202 = arith.constant -2.000000e+00 : f32
    %601 = vector.broadcast %cst_202 : f32 to vector<2x256xf32>
    %602 = arith.mulf %578, %601 : vector<2x256xf32>
    %603 = arith.addf %600, %602 : vector<2x256xf32>
    %cst_203 = arith.constant -1.000000e+00 : f32
    %604 = vector.broadcast %cst_203 : f32 to vector<2x256xf32>
    %605 = arith.mulf %579, %604 : vector<2x256xf32>
    %606 = arith.addf %603, %605 : vector<2x256xf32>
    %607 = arith.addf %606, %582 : vector<2x256xf32>
    %cst_204 = arith.constant 2.000000e+00 : f32
    %608 = vector.broadcast %cst_204 : f32 to vector<2x256xf32>
    %609 = arith.mulf %583, %608 : vector<2x256xf32>
    %610 = arith.addf %607, %609 : vector<2x256xf32>
    %611 = arith.addf %610, %584 : vector<2x256xf32>
    %612 = arith.mulf %0, %611 : vector<2x256xf32>
    %613 = vector.broadcast %2 : f32 to vector<2x256xf32>
    %614 = arith.mulf %613, %598 : vector<2x256xf32>
    %615 = vector.broadcast %5 : f32 to vector<2x256xf32>
    %616 = arith.mulf %615, %612 : vector<2x256xf32>
    %617 = arith.addf %614, %616 : vector<2x256xf32>
    %618 = vector.broadcast %8 : f32 to vector<2x256xf32>
    %619 = arith.mulf %618, %514 : vector<2x256xf32>
    %620 = arith.addf %617, %619 : vector<2x256xf32>
    %621 = arith.addf %560, %620 : vector<2x256xf32>
    %622 = vector.broadcast %11 : f32 to vector<2x256xf32>
    %623 = arith.mulf %622, %598 : vector<2x256xf32>
    %624 = vector.broadcast %14 : f32 to vector<2x256xf32>
    %625 = arith.mulf %624, %612 : vector<2x256xf32>
    %626 = arith.addf %623, %625 : vector<2x256xf32>
    %627 = vector.broadcast %17 : f32 to vector<2x256xf32>
    %628 = arith.mulf %627, %514 : vector<2x256xf32>
    %629 = arith.addf %626, %628 : vector<2x256xf32>
    %630 = arith.addf %568, %629 : vector<2x256xf32>
    %631 = vector.broadcast %20 : f32 to vector<2x256xf32>
    %632 = arith.mulf %631, %598 : vector<2x256xf32>
    %633 = vector.broadcast %23 : f32 to vector<2x256xf32>
    %634 = arith.mulf %633, %612 : vector<2x256xf32>
    %635 = arith.addf %632, %634 : vector<2x256xf32>
    %636 = vector.broadcast %26 : f32 to vector<2x256xf32>
    %637 = arith.mulf %636, %514 : vector<2x256xf32>
    %638 = arith.addf %635, %637 : vector<2x256xf32>
    %639 = arith.addf %576, %638 : vector<2x256xf32>
    %c17_i32_205 = arith.constant 17 : i32
    %640 = tpu.dynamic_rotate %516 by %c17_i32_205 dim 1 : vector<2x256xf32>, i32 -> vector<2x256xf32>
    %c16_i32_206 = arith.constant 16 : i32
    %641 = tpu.dynamic_rotate %516 by %c16_i32_206 dim 1 : vector<2x256xf32>, i32 -> vector<2x256xf32>
    %c15_i32_207 = arith.constant 15 : i32
    %642 = tpu.dynamic_rotate %516 by %c15_i32_207 dim 1 : vector<2x256xf32>, i32 -> vector<2x256xf32>
    %c1_i32_208 = arith.constant 1 : i32
    %643 = tpu.dynamic_rotate %516 by %c1_i32_208 dim 1 : vector<2x256xf32>, i32 -> vector<2x256xf32>
    %c255_i32_209 = arith.constant 255 : i32
    %644 = tpu.dynamic_rotate %516 by %c255_i32_209 dim 1 : vector<2x256xf32>, i32 -> vector<2x256xf32>
    %c241_i32_210 = arith.constant 241 : i32
    %645 = tpu.dynamic_rotate %516 by %c241_i32_210 dim 1 : vector<2x256xf32>, i32 -> vector<2x256xf32>
    %c240_i32_211 = arith.constant 240 : i32
    %646 = tpu.dynamic_rotate %516 by %c240_i32_211 dim 1 : vector<2x256xf32>, i32 -> vector<2x256xf32>
    %c239_i32_212 = arith.constant 239 : i32
    %647 = tpu.dynamic_rotate %516 by %c239_i32_212 dim 1 : vector<2x256xf32>, i32 -> vector<2x256xf32>
    %cst_213 = arith.constant -1.000000e+00 : f32
    %648 = vector.broadcast %cst_213 : f32 to vector<2x256xf32>
    %649 = arith.mulf %640, %648 : vector<2x256xf32>
    %650 = arith.addf %649, %642 : vector<2x256xf32>
    %cst_214 = arith.constant -2.000000e+00 : f32
    %651 = vector.broadcast %cst_214 : f32 to vector<2x256xf32>
    %652 = arith.mulf %643, %651 : vector<2x256xf32>
    %653 = arith.addf %650, %652 : vector<2x256xf32>
    %cst_215 = arith.constant 2.000000e+00 : f32
    %654 = vector.broadcast %cst_215 : f32 to vector<2x256xf32>
    %655 = arith.mulf %644, %654 : vector<2x256xf32>
    %656 = arith.addf %653, %655 : vector<2x256xf32>
    %cst_216 = arith.constant -1.000000e+00 : f32
    %657 = vector.broadcast %cst_216 : f32 to vector<2x256xf32>
    %658 = arith.mulf %645, %657 : vector<2x256xf32>
    %659 = arith.addf %656, %658 : vector<2x256xf32>
    %660 = arith.addf %659, %647 : vector<2x256xf32>
    %661 = arith.mulf %0, %660 : vector<2x256xf32>
    %cst_217 = arith.constant -1.000000e+00 : f32
    %662 = vector.broadcast %cst_217 : f32 to vector<2x256xf32>
    %663 = arith.mulf %640, %662 : vector<2x256xf32>
    %cst_218 = arith.constant -2.000000e+00 : f32
    %664 = vector.broadcast %cst_218 : f32 to vector<2x256xf32>
    %665 = arith.mulf %641, %664 : vector<2x256xf32>
    %666 = arith.addf %663, %665 : vector<2x256xf32>
    %cst_219 = arith.constant -1.000000e+00 : f32
    %667 = vector.broadcast %cst_219 : f32 to vector<2x256xf32>
    %668 = arith.mulf %642, %667 : vector<2x256xf32>
    %669 = arith.addf %666, %668 : vector<2x256xf32>
    %670 = arith.addf %669, %645 : vector<2x256xf32>
    %cst_220 = arith.constant 2.000000e+00 : f32
    %671 = vector.broadcast %cst_220 : f32 to vector<2x256xf32>
    %672 = arith.mulf %646, %671 : vector<2x256xf32>
    %673 = arith.addf %670, %672 : vector<2x256xf32>
    %674 = arith.addf %673, %647 : vector<2x256xf32>
    %675 = arith.mulf %0, %674 : vector<2x256xf32>
    %676 = vector.broadcast %3 : f32 to vector<2x256xf32>
    %677 = arith.mulf %676, %661 : vector<2x256xf32>
    %678 = vector.broadcast %6 : f32 to vector<2x256xf32>
    %679 = arith.mulf %678, %675 : vector<2x256xf32>
    %680 = arith.addf %677, %679 : vector<2x256xf32>
    %681 = vector.broadcast %9 : f32 to vector<2x256xf32>
    %682 = arith.mulf %681, %516 : vector<2x256xf32>
    %683 = arith.addf %680, %682 : vector<2x256xf32>
    %684 = arith.addf %621, %683 : vector<2x256xf32>
    %685 = vector.broadcast %12 : f32 to vector<2x256xf32>
    %686 = arith.mulf %685, %661 : vector<2x256xf32>
    %687 = vector.broadcast %15 : f32 to vector<2x256xf32>
    %688 = arith.mulf %687, %675 : vector<2x256xf32>
    %689 = arith.addf %686, %688 : vector<2x256xf32>
    %690 = vector.broadcast %18 : f32 to vector<2x256xf32>
    %691 = arith.mulf %690, %516 : vector<2x256xf32>
    %692 = arith.addf %689, %691 : vector<2x256xf32>
    %693 = arith.addf %630, %692 : vector<2x256xf32>
    %694 = vector.broadcast %21 : f32 to vector<2x256xf32>
    %695 = arith.mulf %694, %661 : vector<2x256xf32>
    %696 = vector.broadcast %24 : f32 to vector<2x256xf32>
    %697 = arith.mulf %696, %675 : vector<2x256xf32>
    %698 = arith.addf %695, %697 : vector<2x256xf32>
    %699 = vector.broadcast %27 : f32 to vector<2x256xf32>
    %700 = arith.mulf %699, %516 : vector<2x256xf32>
    %701 = arith.addf %698, %700 : vector<2x256xf32>
    %702 = arith.addf %639, %701 : vector<2x256xf32>
    %703 = vector.broadcast %28 : f32 to vector<2x256xf32>
    %704 = arith.addf %684, %703 : vector<2x256xf32>
    %cst_221 = arith.constant 0.000000e+00 : f32
    %705 = vector.broadcast %cst_221 : f32 to vector<2x256xf32>
    %706 = arith.maximumf %704, %705 : vector<2x256xf32>
    %707 = vector.broadcast %29 : f32 to vector<2x256xf32>
    %708 = arith.addf %693, %707 : vector<2x256xf32>
    %cst_222 = arith.constant 0.000000e+00 : f32
    %709 = vector.broadcast %cst_222 : f32 to vector<2x256xf32>
    %710 = arith.maximumf %708, %709 : vector<2x256xf32>
    %711 = vector.broadcast %30 : f32 to vector<2x256xf32>
    %712 = arith.addf %702, %711 : vector<2x256xf32>
    %cst_223 = arith.constant 0.000000e+00 : f32
    %713 = vector.broadcast %cst_223 : f32 to vector<2x256xf32>
    %714 = arith.maximumf %712, %713 : vector<2x256xf32>
    %715 = vector.broadcast %31 : f32 to vector<2x256xf32>
    %716 = arith.mulf %715, %706 : vector<2x256xf32>
    %717 = vector.broadcast %32 : f32 to vector<2x256xf32>
    %718 = arith.mulf %717, %710 : vector<2x256xf32>
    %719 = arith.addf %716, %718 : vector<2x256xf32>
    %720 = vector.broadcast %33 : f32 to vector<2x256xf32>
    %721 = arith.mulf %720, %714 : vector<2x256xf32>
    %722 = arith.addf %719, %721 : vector<2x256xf32>
    %723 = vector.broadcast %40 : f32 to vector<2x256xf32>
    %724 = arith.addf %722, %723 : vector<2x256xf32>
    %725 = vector.broadcast %34 : f32 to vector<2x256xf32>
    %726 = arith.mulf %725, %706 : vector<2x256xf32>
    %727 = vector.broadcast %35 : f32 to vector<2x256xf32>
    %728 = arith.mulf %727, %710 : vector<2x256xf32>
    %729 = arith.addf %726, %728 : vector<2x256xf32>
    %730 = vector.broadcast %36 : f32 to vector<2x256xf32>
    %731 = arith.mulf %730, %714 : vector<2x256xf32>
    %732 = arith.addf %729, %731 : vector<2x256xf32>
    %733 = vector.broadcast %41 : f32 to vector<2x256xf32>
    %734 = arith.addf %732, %733 : vector<2x256xf32>
    %735 = vector.broadcast %37 : f32 to vector<2x256xf32>
    %736 = arith.mulf %735, %706 : vector<2x256xf32>
    %737 = vector.broadcast %38 : f32 to vector<2x256xf32>
    %738 = arith.mulf %737, %710 : vector<2x256xf32>
    %739 = arith.addf %736, %738 : vector<2x256xf32>
    %740 = vector.broadcast %39 : f32 to vector<2x256xf32>
    %741 = arith.mulf %740, %714 : vector<2x256xf32>
    %742 = arith.addf %739, %741 : vector<2x256xf32>
    %743 = vector.broadcast %42 : f32 to vector<2x256xf32>
    %744 = arith.addf %742, %743 : vector<2x256xf32>
    %745 = math.tanh %724 : vector<2x256xf32>
    %746 = arith.addf %512, %745 : vector<2x256xf32>
    %747 = math.tanh %734 : vector<2x256xf32>
    %748 = arith.addf %514, %747 : vector<2x256xf32>
    %749 = math.tanh %744 : vector<2x256xf32>
    %750 = arith.addf %516, %749 : vector<2x256xf32>
    %c17_i32_224 = arith.constant 17 : i32
    %751 = tpu.dynamic_rotate %746 by %c17_i32_224 dim 1 : vector<2x256xf32>, i32 -> vector<2x256xf32>
    %c16_i32_225 = arith.constant 16 : i32
    %752 = tpu.dynamic_rotate %746 by %c16_i32_225 dim 1 : vector<2x256xf32>, i32 -> vector<2x256xf32>
    %c15_i32_226 = arith.constant 15 : i32
    %753 = tpu.dynamic_rotate %746 by %c15_i32_226 dim 1 : vector<2x256xf32>, i32 -> vector<2x256xf32>
    %c1_i32_227 = arith.constant 1 : i32
    %754 = tpu.dynamic_rotate %746 by %c1_i32_227 dim 1 : vector<2x256xf32>, i32 -> vector<2x256xf32>
    %c255_i32_228 = arith.constant 255 : i32
    %755 = tpu.dynamic_rotate %746 by %c255_i32_228 dim 1 : vector<2x256xf32>, i32 -> vector<2x256xf32>
    %c241_i32_229 = arith.constant 241 : i32
    %756 = tpu.dynamic_rotate %746 by %c241_i32_229 dim 1 : vector<2x256xf32>, i32 -> vector<2x256xf32>
    %c240_i32_230 = arith.constant 240 : i32
    %757 = tpu.dynamic_rotate %746 by %c240_i32_230 dim 1 : vector<2x256xf32>, i32 -> vector<2x256xf32>
    %c239_i32_231 = arith.constant 239 : i32
    %758 = tpu.dynamic_rotate %746 by %c239_i32_231 dim 1 : vector<2x256xf32>, i32 -> vector<2x256xf32>
    %cst_232 = arith.constant -1.000000e+00 : f32
    %759 = vector.broadcast %cst_232 : f32 to vector<2x256xf32>
    %760 = arith.mulf %751, %759 : vector<2x256xf32>
    %761 = arith.addf %760, %753 : vector<2x256xf32>
    %cst_233 = arith.constant -2.000000e+00 : f32
    %762 = vector.broadcast %cst_233 : f32 to vector<2x256xf32>
    %763 = arith.mulf %754, %762 : vector<2x256xf32>
    %764 = arith.addf %761, %763 : vector<2x256xf32>
    %cst_234 = arith.constant 2.000000e+00 : f32
    %765 = vector.broadcast %cst_234 : f32 to vector<2x256xf32>
    %766 = arith.mulf %755, %765 : vector<2x256xf32>
    %767 = arith.addf %764, %766 : vector<2x256xf32>
    %cst_235 = arith.constant -1.000000e+00 : f32
    %768 = vector.broadcast %cst_235 : f32 to vector<2x256xf32>
    %769 = arith.mulf %756, %768 : vector<2x256xf32>
    %770 = arith.addf %767, %769 : vector<2x256xf32>
    %771 = arith.addf %770, %758 : vector<2x256xf32>
    %772 = arith.mulf %0, %771 : vector<2x256xf32>
    %cst_236 = arith.constant -1.000000e+00 : f32
    %773 = vector.broadcast %cst_236 : f32 to vector<2x256xf32>
    %774 = arith.mulf %751, %773 : vector<2x256xf32>
    %cst_237 = arith.constant -2.000000e+00 : f32
    %775 = vector.broadcast %cst_237 : f32 to vector<2x256xf32>
    %776 = arith.mulf %752, %775 : vector<2x256xf32>
    %777 = arith.addf %774, %776 : vector<2x256xf32>
    %cst_238 = arith.constant -1.000000e+00 : f32
    %778 = vector.broadcast %cst_238 : f32 to vector<2x256xf32>
    %779 = arith.mulf %753, %778 : vector<2x256xf32>
    %780 = arith.addf %777, %779 : vector<2x256xf32>
    %781 = arith.addf %780, %756 : vector<2x256xf32>
    %cst_239 = arith.constant 2.000000e+00 : f32
    %782 = vector.broadcast %cst_239 : f32 to vector<2x256xf32>
    %783 = arith.mulf %757, %782 : vector<2x256xf32>
    %784 = arith.addf %781, %783 : vector<2x256xf32>
    %785 = arith.addf %784, %758 : vector<2x256xf32>
    %786 = arith.mulf %0, %785 : vector<2x256xf32>
    %787 = vector.broadcast %1 : f32 to vector<2x256xf32>
    %788 = arith.mulf %787, %772 : vector<2x256xf32>
    %789 = vector.broadcast %4 : f32 to vector<2x256xf32>
    %790 = arith.mulf %789, %786 : vector<2x256xf32>
    %791 = arith.addf %788, %790 : vector<2x256xf32>
    %792 = vector.broadcast %7 : f32 to vector<2x256xf32>
    %793 = arith.mulf %792, %746 : vector<2x256xf32>
    %794 = arith.addf %791, %793 : vector<2x256xf32>
    %795 = vector.broadcast %10 : f32 to vector<2x256xf32>
    %796 = arith.mulf %795, %772 : vector<2x256xf32>
    %797 = vector.broadcast %13 : f32 to vector<2x256xf32>
    %798 = arith.mulf %797, %786 : vector<2x256xf32>
    %799 = arith.addf %796, %798 : vector<2x256xf32>
    %800 = vector.broadcast %16 : f32 to vector<2x256xf32>
    %801 = arith.mulf %800, %746 : vector<2x256xf32>
    %802 = arith.addf %799, %801 : vector<2x256xf32>
    %803 = vector.broadcast %19 : f32 to vector<2x256xf32>
    %804 = arith.mulf %803, %772 : vector<2x256xf32>
    %805 = vector.broadcast %22 : f32 to vector<2x256xf32>
    %806 = arith.mulf %805, %786 : vector<2x256xf32>
    %807 = arith.addf %804, %806 : vector<2x256xf32>
    %808 = vector.broadcast %25 : f32 to vector<2x256xf32>
    %809 = arith.mulf %808, %746 : vector<2x256xf32>
    %810 = arith.addf %807, %809 : vector<2x256xf32>
    %c17_i32_240 = arith.constant 17 : i32
    %811 = tpu.dynamic_rotate %748 by %c17_i32_240 dim 1 : vector<2x256xf32>, i32 -> vector<2x256xf32>
    %c16_i32_241 = arith.constant 16 : i32
    %812 = tpu.dynamic_rotate %748 by %c16_i32_241 dim 1 : vector<2x256xf32>, i32 -> vector<2x256xf32>
    %c15_i32_242 = arith.constant 15 : i32
    %813 = tpu.dynamic_rotate %748 by %c15_i32_242 dim 1 : vector<2x256xf32>, i32 -> vector<2x256xf32>
    %c1_i32_243 = arith.constant 1 : i32
    %814 = tpu.dynamic_rotate %748 by %c1_i32_243 dim 1 : vector<2x256xf32>, i32 -> vector<2x256xf32>
    %c255_i32_244 = arith.constant 255 : i32
    %815 = tpu.dynamic_rotate %748 by %c255_i32_244 dim 1 : vector<2x256xf32>, i32 -> vector<2x256xf32>
    %c241_i32_245 = arith.constant 241 : i32
    %816 = tpu.dynamic_rotate %748 by %c241_i32_245 dim 1 : vector<2x256xf32>, i32 -> vector<2x256xf32>
    %c240_i32_246 = arith.constant 240 : i32
    %817 = tpu.dynamic_rotate %748 by %c240_i32_246 dim 1 : vector<2x256xf32>, i32 -> vector<2x256xf32>
    %c239_i32_247 = arith.constant 239 : i32
    %818 = tpu.dynamic_rotate %748 by %c239_i32_247 dim 1 : vector<2x256xf32>, i32 -> vector<2x256xf32>
    %cst_248 = arith.constant -1.000000e+00 : f32
    %819 = vector.broadcast %cst_248 : f32 to vector<2x256xf32>
    %820 = arith.mulf %811, %819 : vector<2x256xf32>
    %821 = arith.addf %820, %813 : vector<2x256xf32>
    %cst_249 = arith.constant -2.000000e+00 : f32
    %822 = vector.broadcast %cst_249 : f32 to vector<2x256xf32>
    %823 = arith.mulf %814, %822 : vector<2x256xf32>
    %824 = arith.addf %821, %823 : vector<2x256xf32>
    %cst_250 = arith.constant 2.000000e+00 : f32
    %825 = vector.broadcast %cst_250 : f32 to vector<2x256xf32>
    %826 = arith.mulf %815, %825 : vector<2x256xf32>
    %827 = arith.addf %824, %826 : vector<2x256xf32>
    %cst_251 = arith.constant -1.000000e+00 : f32
    %828 = vector.broadcast %cst_251 : f32 to vector<2x256xf32>
    %829 = arith.mulf %816, %828 : vector<2x256xf32>
    %830 = arith.addf %827, %829 : vector<2x256xf32>
    %831 = arith.addf %830, %818 : vector<2x256xf32>
    %832 = arith.mulf %0, %831 : vector<2x256xf32>
    %cst_252 = arith.constant -1.000000e+00 : f32
    %833 = vector.broadcast %cst_252 : f32 to vector<2x256xf32>
    %834 = arith.mulf %811, %833 : vector<2x256xf32>
    %cst_253 = arith.constant -2.000000e+00 : f32
    %835 = vector.broadcast %cst_253 : f32 to vector<2x256xf32>
    %836 = arith.mulf %812, %835 : vector<2x256xf32>
    %837 = arith.addf %834, %836 : vector<2x256xf32>
    %cst_254 = arith.constant -1.000000e+00 : f32
    %838 = vector.broadcast %cst_254 : f32 to vector<2x256xf32>
    %839 = arith.mulf %813, %838 : vector<2x256xf32>
    %840 = arith.addf %837, %839 : vector<2x256xf32>
    %841 = arith.addf %840, %816 : vector<2x256xf32>
    %cst_255 = arith.constant 2.000000e+00 : f32
    %842 = vector.broadcast %cst_255 : f32 to vector<2x256xf32>
    %843 = arith.mulf %817, %842 : vector<2x256xf32>
    %844 = arith.addf %841, %843 : vector<2x256xf32>
    %845 = arith.addf %844, %818 : vector<2x256xf32>
    %846 = arith.mulf %0, %845 : vector<2x256xf32>
    %847 = vector.broadcast %2 : f32 to vector<2x256xf32>
    %848 = arith.mulf %847, %832 : vector<2x256xf32>
    %849 = vector.broadcast %5 : f32 to vector<2x256xf32>
    %850 = arith.mulf %849, %846 : vector<2x256xf32>
    %851 = arith.addf %848, %850 : vector<2x256xf32>
    %852 = vector.broadcast %8 : f32 to vector<2x256xf32>
    %853 = arith.mulf %852, %748 : vector<2x256xf32>
    %854 = arith.addf %851, %853 : vector<2x256xf32>
    %855 = arith.addf %794, %854 : vector<2x256xf32>
    %856 = vector.broadcast %11 : f32 to vector<2x256xf32>
    %857 = arith.mulf %856, %832 : vector<2x256xf32>
    %858 = vector.broadcast %14 : f32 to vector<2x256xf32>
    %859 = arith.mulf %858, %846 : vector<2x256xf32>
    %860 = arith.addf %857, %859 : vector<2x256xf32>
    %861 = vector.broadcast %17 : f32 to vector<2x256xf32>
    %862 = arith.mulf %861, %748 : vector<2x256xf32>
    %863 = arith.addf %860, %862 : vector<2x256xf32>
    %864 = arith.addf %802, %863 : vector<2x256xf32>
    %865 = vector.broadcast %20 : f32 to vector<2x256xf32>
    %866 = arith.mulf %865, %832 : vector<2x256xf32>
    %867 = vector.broadcast %23 : f32 to vector<2x256xf32>
    %868 = arith.mulf %867, %846 : vector<2x256xf32>
    %869 = arith.addf %866, %868 : vector<2x256xf32>
    %870 = vector.broadcast %26 : f32 to vector<2x256xf32>
    %871 = arith.mulf %870, %748 : vector<2x256xf32>
    %872 = arith.addf %869, %871 : vector<2x256xf32>
    %873 = arith.addf %810, %872 : vector<2x256xf32>
    %c17_i32_256 = arith.constant 17 : i32
    %874 = tpu.dynamic_rotate %750 by %c17_i32_256 dim 1 : vector<2x256xf32>, i32 -> vector<2x256xf32>
    %c16_i32_257 = arith.constant 16 : i32
    %875 = tpu.dynamic_rotate %750 by %c16_i32_257 dim 1 : vector<2x256xf32>, i32 -> vector<2x256xf32>
    %c15_i32_258 = arith.constant 15 : i32
    %876 = tpu.dynamic_rotate %750 by %c15_i32_258 dim 1 : vector<2x256xf32>, i32 -> vector<2x256xf32>
    %c1_i32_259 = arith.constant 1 : i32
    %877 = tpu.dynamic_rotate %750 by %c1_i32_259 dim 1 : vector<2x256xf32>, i32 -> vector<2x256xf32>
    %c255_i32_260 = arith.constant 255 : i32
    %878 = tpu.dynamic_rotate %750 by %c255_i32_260 dim 1 : vector<2x256xf32>, i32 -> vector<2x256xf32>
    %c241_i32_261 = arith.constant 241 : i32
    %879 = tpu.dynamic_rotate %750 by %c241_i32_261 dim 1 : vector<2x256xf32>, i32 -> vector<2x256xf32>
    %c240_i32_262 = arith.constant 240 : i32
    %880 = tpu.dynamic_rotate %750 by %c240_i32_262 dim 1 : vector<2x256xf32>, i32 -> vector<2x256xf32>
    %c239_i32_263 = arith.constant 239 : i32
    %881 = tpu.dynamic_rotate %750 by %c239_i32_263 dim 1 : vector<2x256xf32>, i32 -> vector<2x256xf32>
    %cst_264 = arith.constant -1.000000e+00 : f32
    %882 = vector.broadcast %cst_264 : f32 to vector<2x256xf32>
    %883 = arith.mulf %874, %882 : vector<2x256xf32>
    %884 = arith.addf %883, %876 : vector<2x256xf32>
    %cst_265 = arith.constant -2.000000e+00 : f32
    %885 = vector.broadcast %cst_265 : f32 to vector<2x256xf32>
    %886 = arith.mulf %877, %885 : vector<2x256xf32>
    %887 = arith.addf %884, %886 : vector<2x256xf32>
    %cst_266 = arith.constant 2.000000e+00 : f32
    %888 = vector.broadcast %cst_266 : f32 to vector<2x256xf32>
    %889 = arith.mulf %878, %888 : vector<2x256xf32>
    %890 = arith.addf %887, %889 : vector<2x256xf32>
    %cst_267 = arith.constant -1.000000e+00 : f32
    %891 = vector.broadcast %cst_267 : f32 to vector<2x256xf32>
    %892 = arith.mulf %879, %891 : vector<2x256xf32>
    %893 = arith.addf %890, %892 : vector<2x256xf32>
    %894 = arith.addf %893, %881 : vector<2x256xf32>
    %895 = arith.mulf %0, %894 : vector<2x256xf32>
    %cst_268 = arith.constant -1.000000e+00 : f32
    %896 = vector.broadcast %cst_268 : f32 to vector<2x256xf32>
    %897 = arith.mulf %874, %896 : vector<2x256xf32>
    %cst_269 = arith.constant -2.000000e+00 : f32
    %898 = vector.broadcast %cst_269 : f32 to vector<2x256xf32>
    %899 = arith.mulf %875, %898 : vector<2x256xf32>
    %900 = arith.addf %897, %899 : vector<2x256xf32>
    %cst_270 = arith.constant -1.000000e+00 : f32
    %901 = vector.broadcast %cst_270 : f32 to vector<2x256xf32>
    %902 = arith.mulf %876, %901 : vector<2x256xf32>
    %903 = arith.addf %900, %902 : vector<2x256xf32>
    %904 = arith.addf %903, %879 : vector<2x256xf32>
    %cst_271 = arith.constant 2.000000e+00 : f32
    %905 = vector.broadcast %cst_271 : f32 to vector<2x256xf32>
    %906 = arith.mulf %880, %905 : vector<2x256xf32>
    %907 = arith.addf %904, %906 : vector<2x256xf32>
    %908 = arith.addf %907, %881 : vector<2x256xf32>
    %909 = arith.mulf %0, %908 : vector<2x256xf32>
    %910 = vector.broadcast %3 : f32 to vector<2x256xf32>
    %911 = arith.mulf %910, %895 : vector<2x256xf32>
    %912 = vector.broadcast %6 : f32 to vector<2x256xf32>
    %913 = arith.mulf %912, %909 : vector<2x256xf32>
    %914 = arith.addf %911, %913 : vector<2x256xf32>
    %915 = vector.broadcast %9 : f32 to vector<2x256xf32>
    %916 = arith.mulf %915, %750 : vector<2x256xf32>
    %917 = arith.addf %914, %916 : vector<2x256xf32>
    %918 = arith.addf %855, %917 : vector<2x256xf32>
    %919 = vector.broadcast %12 : f32 to vector<2x256xf32>
    %920 = arith.mulf %919, %895 : vector<2x256xf32>
    %921 = vector.broadcast %15 : f32 to vector<2x256xf32>
    %922 = arith.mulf %921, %909 : vector<2x256xf32>
    %923 = arith.addf %920, %922 : vector<2x256xf32>
    %924 = vector.broadcast %18 : f32 to vector<2x256xf32>
    %925 = arith.mulf %924, %750 : vector<2x256xf32>
    %926 = arith.addf %923, %925 : vector<2x256xf32>
    %927 = arith.addf %864, %926 : vector<2x256xf32>
    %928 = vector.broadcast %21 : f32 to vector<2x256xf32>
    %929 = arith.mulf %928, %895 : vector<2x256xf32>
    %930 = vector.broadcast %24 : f32 to vector<2x256xf32>
    %931 = arith.mulf %930, %909 : vector<2x256xf32>
    %932 = arith.addf %929, %931 : vector<2x256xf32>
    %933 = vector.broadcast %27 : f32 to vector<2x256xf32>
    %934 = arith.mulf %933, %750 : vector<2x256xf32>
    %935 = arith.addf %932, %934 : vector<2x256xf32>
    %936 = arith.addf %873, %935 : vector<2x256xf32>
    %937 = vector.broadcast %28 : f32 to vector<2x256xf32>
    %938 = arith.addf %918, %937 : vector<2x256xf32>
    %cst_272 = arith.constant 0.000000e+00 : f32
    %939 = vector.broadcast %cst_272 : f32 to vector<2x256xf32>
    %940 = arith.maximumf %938, %939 : vector<2x256xf32>
    %941 = vector.broadcast %29 : f32 to vector<2x256xf32>
    %942 = arith.addf %927, %941 : vector<2x256xf32>
    %cst_273 = arith.constant 0.000000e+00 : f32
    %943 = vector.broadcast %cst_273 : f32 to vector<2x256xf32>
    %944 = arith.maximumf %942, %943 : vector<2x256xf32>
    %945 = vector.broadcast %30 : f32 to vector<2x256xf32>
    %946 = arith.addf %936, %945 : vector<2x256xf32>
    %cst_274 = arith.constant 0.000000e+00 : f32
    %947 = vector.broadcast %cst_274 : f32 to vector<2x256xf32>
    %948 = arith.maximumf %946, %947 : vector<2x256xf32>
    %949 = vector.broadcast %31 : f32 to vector<2x256xf32>
    %950 = arith.mulf %949, %940 : vector<2x256xf32>
    %951 = vector.broadcast %32 : f32 to vector<2x256xf32>
    %952 = arith.mulf %951, %944 : vector<2x256xf32>
    %953 = arith.addf %950, %952 : vector<2x256xf32>
    %954 = vector.broadcast %33 : f32 to vector<2x256xf32>
    %955 = arith.mulf %954, %948 : vector<2x256xf32>
    %956 = arith.addf %953, %955 : vector<2x256xf32>
    %957 = vector.broadcast %40 : f32 to vector<2x256xf32>
    %958 = arith.addf %956, %957 : vector<2x256xf32>
    %959 = vector.broadcast %34 : f32 to vector<2x256xf32>
    %960 = arith.mulf %959, %940 : vector<2x256xf32>
    %961 = vector.broadcast %35 : f32 to vector<2x256xf32>
    %962 = arith.mulf %961, %944 : vector<2x256xf32>
    %963 = arith.addf %960, %962 : vector<2x256xf32>
    %964 = vector.broadcast %36 : f32 to vector<2x256xf32>
    %965 = arith.mulf %964, %948 : vector<2x256xf32>
    %966 = arith.addf %963, %965 : vector<2x256xf32>
    %967 = vector.broadcast %41 : f32 to vector<2x256xf32>
    %968 = arith.addf %966, %967 : vector<2x256xf32>
    %969 = vector.broadcast %37 : f32 to vector<2x256xf32>
    %970 = arith.mulf %969, %940 : vector<2x256xf32>
    %971 = vector.broadcast %38 : f32 to vector<2x256xf32>
    %972 = arith.mulf %971, %944 : vector<2x256xf32>
    %973 = arith.addf %970, %972 : vector<2x256xf32>
    %974 = vector.broadcast %39 : f32 to vector<2x256xf32>
    %975 = arith.mulf %974, %948 : vector<2x256xf32>
    %976 = arith.addf %973, %975 : vector<2x256xf32>
    %977 = vector.broadcast %42 : f32 to vector<2x256xf32>
    %978 = arith.addf %976, %977 : vector<2x256xf32>
    %979 = math.tanh %958 : vector<2x256xf32>
    %980 = arith.addf %746, %979 : vector<2x256xf32>
    %981 = math.tanh %968 : vector<2x256xf32>
    %982 = arith.addf %748, %981 : vector<2x256xf32>
    %983 = math.tanh %978 : vector<2x256xf32>
    %984 = arith.addf %750, %983 : vector<2x256xf32>
    %c0_275 = arith.constant 0 : index
    %c0_276 = arith.constant 0 : index
    %c0_277 = arith.constant 0 : index
    %985 = vector.load %arg6[%c0_275, %c0_276, %c0_277] : memref<3x2x256xf32, #tpu.memory_space<vmem>>, vector<1x2x256xf32>
    %986 = vector.shape_cast %985 : vector<1x2x256xf32> to vector<2x256xf32>
    %987 = vector.shape_cast %980 : vector<2x256xf32> to vector<1x2x256xf32>
    tpu.vector_store %arg6[%c0_275, %c0_276, %c0_277], %987 {strides = array<i32>} : memref<3x2x256xf32, #tpu.memory_space<vmem>>, vector<1x2x256xf32>,
    %c1_278 = arith.constant 1 : index
    %c0_279 = arith.constant 0 : index
    %c0_280 = arith.constant 0 : index
    %988 = vector.load %arg6[%c1_278, %c0_279, %c0_280] : memref<3x2x256xf32, #tpu.memory_space<vmem>>, vector<1x2x256xf32>
    %989 = vector.shape_cast %988 : vector<1x2x256xf32> to vector<2x256xf32>
    %990 = vector.shape_cast %982 : vector<2x256xf32> to vector<1x2x256xf32>
    tpu.vector_store %arg6[%c1_278, %c0_279, %c0_280], %990 {strides = array<i32>} : memref<3x2x256xf32, #tpu.memory_space<vmem>>, vector<1x2x256xf32>,
    %c2_281 = arith.constant 2 : index
    %c0_282 = arith.constant 0 : index
    %c0_283 = arith.constant 0 : index
    %991 = vector.load %arg6[%c2_281, %c0_282, %c0_283] : memref<3x2x256xf32, #tpu.memory_space<vmem>>, vector<1x2x256xf32>
    %992 = vector.shape_cast %991 : vector<1x2x256xf32> to vector<2x256xf32>
    %993 = vector.shape_cast %984 : vector<2x256xf32> to vector<1x2x256xf32>
    tpu.vector_store %arg6[%c2_281, %c0_282, %c0_283], %993 {strides = array<i32>} : memref<3x2x256xf32, #tpu.memory_space<vmem>>, vector<1x2x256xf32>,
    return
  }
}

</mosaic_0001>

<llo_original>
// kernel: fwd.1
$region0: #{fwd.1}
  #allocation0 [shape = 'u32[]', space=smem, size = 0x4, offset = 0x4, fixed_abs, tag = 'smem constant byte address 0x4 - core index']
  #allocation1 [shape = 'u32[72,128]{1,0:T(1,128)}', space=vmem, size = 0x9000, scoped, tag = 'internal scratch']
  %s0 = inlined_call_operand.vmem [shape: f32[3,2,256], index: 0, kind: input, shape index: {}, may-alias: {0,6}]
  %s1 = inlined_call_operand.vmem [shape: f32[2,256], index: 1, kind: input, shape index: {}]
  %s2 = inlined_call_operand.vmem [shape: f32[3,9], index: 2, kind: input, shape index: {}]
  %s3 = inlined_call_operand.vmem [shape: f32[3], index: 3, kind: input, shape index: {}]
  %s4 = inlined_call_operand.vmem [shape: f32[3,3], index: 4, kind: input, shape index: {}]
  %s5 = inlined_call_operand.vmem [shape: f32[3], index: 5, kind: input, shape index: {}]
  %s6 = inlined_call_operand.vmem [shape: f32[3,2,256], index: 6, kind: output, shape index: {}, may-alias: {0,6}]
  %s7 = sld [smem:[#allocation0]]
  $region50: #{fwd.1} parent=0
    _
  %s9 = ssub.s32 1, %s7
  %s10 = scalar_select 0, %s9, %s7
  $region1: #{fwd.1} parent=0
    #allocation2 [shape = 'u8[2048]{0}', space=smem, size = 0x800, scoped, tag = 'input window, operand 2, single buffered']
    #allocation3 [shape = 's32[1]{0}', space=sflag, size = 0x4, scoped, tag = 'scoped memory for fwd.1']
    #allocation4 [shape = 'u8[512]{0}', space=smem, size = 0x200, scoped, tag = 'input window, operand 3, single buffered']
    #allocation5 [shape = 's32[1]{0}', space=sflag, size = 0x4, scoped, tag = 'scoped memory for fwd.1']
    #allocation6 [shape = 'u8[2048]{0}', space=smem, size = 0x800, scoped, tag = 'input window, operand 4, single buffered']
    #allocation7 [shape = 'u8[512]{0}', space=smem, size = 0x200, scoped, tag = 'input window, operand 5, single buffered']
    #allocation8 [shape = 's32[1]{0}', space=sflag, size = 0x4, scoped, tag = 'scoped memory for fwd.1']
    %11 = vsyncpa [#allocation3], 0
    %12 = vsyncpa [#allocation5], 0
    %13 = vsyncpa [#allocation8], 0
    // Predicated region
    $region2: #{fwd.1} parent=1 // pred_check
      _
    $region3: #{fwd.1} parent=1 // pred_check_branch
      %15 = sbr.rel (0) target = $region5
    $region4: #{fwd.1} parent=1 // pred_region
      _
    $region5: #{fwd.1} parent=1 // pred_fallthru
      _
    // Predicated region
    $region6: #{fwd.1} parent=1 // pred_check
      _
    $region7: #{fwd.1} parent=1 // pred_check_branch
      %17 = sbr.rel (0) target = $region9
    $region8: #{fwd.1} parent=1 // pred_region
      _
    $region9: #{fwd.1} parent=1 // pred_fallthru
      _
    // Predicated region
    $region10: #{fwd.1} parent=1 // pred_check
      _
    $region11: #{fwd.1} parent=1 // pred_check_branch
      %19 = sbr.rel (0) target = $region13
    $region12: #{fwd.1} parent=1 // pred_region
      %21 = vsyncadd [#allocation3], 0
      %s23 = sshll.u32 %s2, 4
      %s24 = int_to_ptr.vmem [resolvable:$true] %s23
      %26 = dma.vmem_to_smem %s24, 64, [#allocation2], [#allocation3]
    $region13: #{fwd.1} parent=1 // pred_fallthru
      _
    // Predicated region
    $region14: #{fwd.1} parent=1 // pred_check
      _
    $region15: #{fwd.1} parent=1 // pred_check_branch
      %28 = sbr.rel (0) target = $region17
    $region16: #{fwd.1} parent=1 // pred_region
      %30 = vsyncadd [#allocation5], 0
      %s32 = sshll.u32 %s3, 4
      %s33 = int_to_ptr.vmem [resolvable:$true] %s32
      %35 = dma.vmem_to_smem %s33, 16, [#allocation4], [#allocation5]
    $region17: #{fwd.1} parent=1 // pred_fallthru
      _
    // Predicated region
    $region18: #{fwd.1} parent=1 // pred_check
      _
    $region19: #{fwd.1} parent=1 // pred_check_branch
      %37 = sbr.rel (0) target = $region21
    $region20: #{fwd.1} parent=1 // pred_region
      %39 = vsyncadd [#allocation5], 0
      %s41 = sshll.u32 %s4, 4
      %s42 = int_to_ptr.vmem [resolvable:$true] %s41
      %44 = dma.vmem_to_smem %s42, 64, [#allocation6], [#allocation5]
    $region21: #{fwd.1} parent=1 // pred_fallthru
      _
    // Predicated region
    $region22: #{fwd.1} parent=1 // pred_check
      _
    $region23: #{fwd.1} parent=1 // pred_check_branch
      %46 = sbr.rel (0) target = $region25
    $region24: #{fwd.1} parent=1 // pred_region
      %48 = vsyncadd [#allocation8], 0
      %s50 = sshll.u32 %s5, 4
      %s51 = int_to_ptr.vmem [resolvable:$true] %s50
      %53 = dma.vmem_to_smem %s51, 16, [#allocation7], [#allocation8]
    $region25: #{fwd.1} parent=1 // pred_fallthru
      _
    // Predicated region
    $region26: #{fwd.1} parent=1 // pred_check
      _
    $region27: #{fwd.1} parent=1 // pred_check_branch
      %55 = sbr.rel (0) target = $region29
    $region28: #{fwd.1} parent=1 // pred_region
      %57 = dma.done [#allocation3], 64
    $region29: #{fwd.1} parent=1 // pred_fallthru
      _
    // Predicated region
    $region30: #{fwd.1} parent=1 // pred_check
      _
    $region31: #{fwd.1} parent=1 // pred_check_branch
      %59 = sbr.rel (0) target = $region33
    $region32: #{fwd.1} parent=1 // pred_region
      %61 = dma.done [#allocation5], 16
    $region33: #{fwd.1} parent=1 // pred_fallthru
      _
    // Predicated region
    $region34: #{fwd.1} parent=1 // pred_check
      _
    $region35: #{fwd.1} parent=1 // pred_check_branch
      %63 = sbr.rel (0) target = $region37
    $region36: #{fwd.1} parent=1 // pred_region
      %65 = dma.done [#allocation5], 64
    $region37: #{fwd.1} parent=1 // pred_fallthru
      _
    // Predicated region
    $region38: #{fwd.1} parent=1 // pred_check
      _
    $region39: #{fwd.1} parent=1 // pred_check_branch
      %67 = sbr.rel (0) target = $region41
    $region40: #{fwd.1} parent=1 // pred_region
      %69 = dma.done [#allocation8], 16
    $region41: #{fwd.1} parent=1 // pred_fallthru
      _
    %70 = sfence
    %v71 = vld [vmem:[%s1] sm:$0xf]
    %s72 = sld [smem:[#allocation2]]
    %s73 = sld [smem:[#allocation2 + $0x1]]
    %s74 = sld [smem:[#allocation2 + $0x2]]
    %s75 = sld [smem:[#allocation2 + $0x3]]
    %s76 = sld [smem:[#allocation2 + $0x4]]
    %s77 = sld [smem:[#allocation2 + $0x5]]
    %s78 = sld [smem:[#allocation2 + $0x6]]
    %s79 = sld [smem:[#allocation2 + $0x7]]
    %s80 = sld [smem:[#allocation2 + $0x8]]
    %s81 = sld [smem:[#allocation2 + $0x80]]
    %s82 = sld [smem:[#allocation2 + $0x81]]
    %s83 = sld [smem:[#allocation2 + $0x82]]
    %s84 = sld [smem:[#allocation2 + $0x83]]
    %s85 = sld [smem:[#allocation2 + $0x84]]
    %s86 = sld [smem:[#allocation2 + $0x85]]
    %s87 = sld [smem:[#allocation2 + $0x86]]
    %s88 = sld [smem:[#allocation2 + $0x87]]
    %s89 = sld [smem:[#allocation2 + $0x88]]
    %s90 = sld [smem:[#allocation2 + $0x100]]
    %s91 = sld [smem:[#allocation2 + $0x101]]
    %s92 = sld [smem:[#allocation2 + $0x102]]
    %s93 = sld [smem:[#allocation2 + $0x103]]
    %s94 = sld [smem:[#allocation2 + $0x104]]
    %s95 = sld [smem:[#allocation2 + $0x105]]
    %s96 = sld [smem:[#allocation2 + $0x106]]
    %s97 = sld [smem:[#allocation2 + $0x107]]
    %s98 = sld [smem:[#allocation2 + $0x108]]
    %s99 = sld [smem:[#allocation4]]
    %s100 = sld [smem:[#allocation4 + $0x1]]
    %s101 = sld [smem:[#allocation4 + $0x2]]
    %s102 = sld [smem:[#allocation6]]
    %s103 = sld [smem:[#allocation6 + $0x1]]
    %s104 = sld [smem:[#allocation6 + $0x2]]
    %s105 = sld [smem:[#allocation6 + $0x80]]
    %s106 = sld [smem:[#allocation6 + $0x81]]
    %s107 = sld [smem:[#allocation6 + $0x82]]
    %s108 = sld [smem:[#allocation6 + $0x100]]
    %s109 = sld [smem:[#allocation6 + $0x101]]
    %s110 = sld [smem:[#allocation6 + $0x102]]
    %s111 = sld [smem:[#allocation7]]
    %s112 = sld [smem:[#allocation7 + $0x1]]
    %s113 = sld [smem:[#allocation7 + $0x2]]
    %v114 = vld [vmem:[%s0] sm:$0xf]
    %s115 = scalar_lea.vmem %s0, 4
    %v116 = vld [vmem:[%s115] sm:$0xf]
    %s117 = scalar_lea.vmem %s0, 8
    %v118 = vld [vmem:[%s117] sm:$0xf]
    %120 = vst [vmem:[#allocation1] ss:$4 sm:$0xff] %v114
    %v121 = vld.sshfl [vmem:[#allocation1] sm:$0xff pattern:$0x73625140]
    %v122 = vld.sshfl [vmem:[#allocation1 + $0x8] sm:$0xff pattern:$0x73625140]
    %125 = vrot.lane.b32.xlu0 %v121, 17
    %v126 = vpop.permute.xlu0 %125
    %127 = vrot.lane.b32.xlu0 %v122, 17
    %v128 = vpop.permute.xlu0 %127
    %v129 = vlaneseq
    %v130 = vand.u32 %v129, 127
    %vm131 = vcmp.lt.s32.totalorder %v130, 17
    %v132 = vsel %vm131, %v126, %v128
    %v133 = vsel %vm131, %v128, %v126
    %134 = vst [vmem:[#allocation1] ss:$4 sm:$0xff] %v114
    %v135 = vld.sshfl [vmem:[#allocation1] sm:$0xff pattern:$0x73625140]
    %v136 = vld.sshfl [vmem:[#allocation1 + $0x8] sm:$0xff pattern:$0x73625140]
    %139 = vrot.lane.b32.xlu0 %v135, 16
    %v140 = vpop.permute.xlu0 %139
    %141 = vrot.lane.b32.xlu0 %v136, 16
    %v142 = vpop.permute.xlu0 %141
    %vm143 = vcmp.lt.s32.totalorder %v130, 16
    %v144 = vsel %vm143, %v140, %v142
    %v145 = vsel %vm143, %v142, %v140
    %146 = vst [vmem:[#allocation1] ss:$4 sm:$0xff] %v114
    %v147 = vld.sshfl [vmem:[#allocation1] sm:$0xff pattern:$0x73625140]
    %v148 = vld.sshfl [vmem:[#allocation1 + $0x8] sm:$0xff pattern:$0x73625140]
    %151 = vrot.lane.b32.xlu0 %v147, 15
    %v152 = vpop.permute.xlu0 %151
    %153 = vrot.lane.b32.xlu0 %v148, 15
    %v154 = vpop.permute.xlu0 %153
    %vm155 = vcmp.lt.s32.totalorder %v130, 15
    %v156 = vsel %vm155, %v152, %v154
    %v157 = vsel %vm155, %v154, %v152
    %158 = vst [vmem:[#allocation1] ss:$4 sm:$0xff] %v114
    %v159 = vld.sshfl [vmem:[#allocation1] sm:$0xff pattern:$0x73625140]
    %v160 = vld.sshfl [vmem:[#allocation1 + $0x8] sm:$0xff pattern:$0x73625140]
    %163 = vrot.lane.b32.xlu0 %v159, 1
    %v164 = vpop.permute.xlu0 %163
    %165 = vrot.lane.b32.xlu0 %v160, 1
    %v166 = vpop.permute.xlu0 %165
    %vm167 = vcmp.lt.s32.totalorder %v130, 1
    %v168 = vsel %vm167, %v164, %v166
    %v169 = vsel %vm167, %v166, %v164
    %170 = vst [vmem:[#allocation1] ss:$4 sm:$0xff] %v114
    %v171 = vld.sshfl [vmem:[#allocation1] sm:$0xff pattern:$0x73625140]
    %v172 = vld.sshfl [vmem:[#allocation1 + $0x8] sm:$0xff pattern:$0x73625140]
    %175 = vrot.lane.b32.xlu0 %v171, 127
    %v176 = vpop.permute.xlu0 %175
    %177 = vrot.lane.b32.xlu0 %v172, 127
    %v178 = vpop.permute.xlu0 %177
    %vm179 = vcmp.lt.s32.totalorder %v130, 127
    %v180 = vsel %vm179, %v176, %v178
    %v181 = vsel %vm179, %v178, %v176
    %182 = vst [vmem:[#allocation1] ss:$4 sm:$0xff] %v114
    %v183 = vld.sshfl [vmem:[#allocation1] sm:$0xff pattern:$0x73625140]
    %v184 = vld.sshfl [vmem:[#allocation1 + $0x8] sm:$0xff pattern:$0x73625140]
    %187 = vrot.lane.b32.xlu0 %v183, 113
    %v188 = vpop.permute.xlu0 %187
    %189 = vrot.lane.b32.xlu0 %v184, 113
    %v190 = vpop.permute.xlu0 %189
    %vm191 = vcmp.lt.s32.totalorder %v130, 113
    %v192 = vsel %vm191, %v188, %v190
    %v193 = vsel %vm191, %v190, %v188
    %194 = vst [vmem:[#allocation1] ss:$4 sm:$0xff] %v114
    %v195 = vld.sshfl [vmem:[#allocation1] sm:$0xff pattern:$0x73625140]
    %v196 = vld.sshfl [vmem:[#allocation1 + $0x8] sm:$0xff pattern:$0x73625140]
    %199 = vrot.lane.b32.xlu0 %v195, 112
    %v200 = vpop.permute.xlu0 %199
    %201 = vrot.lane.b32.xlu0 %v196, 112
    %v202 = vpop.permute.xlu0 %201
    %vm203 = vcmp.lt.s32.totalorder %v130, 112
    %v204 = vsel %vm203, %v200, %v202
    %v205 = vsel %vm203, %v202, %v200
    %206 = vst [vmem:[#allocation1] ss:$4 sm:$0xff] %v114
    %v207 = vld.sshfl [vmem:[#allocation1] sm:$0xff pattern:$0x73625140]
    %v208 = vld.sshfl [vmem:[#allocation1 + $0x8] sm:$0xff pattern:$0x73625140]
    %211 = vrot.lane.b32.xlu0 %v207, 111
    %v212 = vpop.permute.xlu0 %211
    %213 = vrot.lane.b32.xlu0 %v208, 111
    %v214 = vpop.permute.xlu0 %213
    %vm215 = vcmp.lt.s32.totalorder %v130, 111
    %v216 = vsel %vm215, %v212, %v214
    %v217 = vsel %vm215, %v214, %v212
    %v218 = vmul.f32 %v133, -1.0
    %v219 = vmul.f32 %v132, -1.0
    %v220 = vadd.f32 %v218, %v157
    %v221 = vadd.f32 %v219, %v156
    %v222 = vmul.f32 %v169, -2.0
    %v223 = vmul.f32 %v168, -2.0
    %v224 = vadd.f32 %v220, %v222
    %v225 = vadd.f32 %v221, %v223
    %v226 = vmul.f32 %v180, 2.0
    %v227 = vmul.f32 %v181, 2.0
    %v228 = vadd.f32 %v224, %v226
    %v229 = vadd.f32 %v225, %v227
    %v230 = vmul.f32 %v192, -1.0
    %v231 = vmul.f32 %v193, -1.0
    %v232 = vadd.f32 %v228, %v230
    %v233 = vadd.f32 %v229, %v231
    %v234 = vadd.f32 %v232, %v216
    %v235 = vadd.f32 %v233, %v217
    %v238 = vrot.slane %v235, 6
    %vm239 = vcmask 1041408
    %v240 = vsel %vm239, %v234, %v238
    %v242 = vmul.f32 %v71, %v240
    %v243 = vmul.f32 %v145, -2.0
    %v244 = vmul.f32 %v144, -2.0
    %v245 = vadd.f32 %v218, %v243
    %v246 = vadd.f32 %v219, %v244
    %v247 = vmul.f32 %v157, -1.0
    %v248 = vmul.f32 %v156, -1.0
    %v249 = vadd.f32 %v245, %v247
    %v250 = vadd.f32 %v246, %v248
    %v251 = vadd.f32 %v249, %v192
    %v252 = vadd.f32 %v250, %v193
    %v253 = vmul.f32 %v204, 2.0
    %v254 = vmul.f32 %v205, 2.0
    %v255 = vadd.f32 %v251, %v253
    %v256 = vadd.f32 %v252, %v254
    %v257 = vadd.f32 %v255, %v216
    %v258 = vadd.f32 %v256, %v217
    %v261 = vrot.slane %v258, 6
    %v262 = vsel %vm239, %v257, %v261
    %v264 = vmul.f32 %v71, %v262
    %v265 = vstv %s72
    %v266 = vmul.f32 %v265, %v242
    %v267 = vstv %s75
    %v268 = vmul.f32 %v267, %v264
    %v269 = vadd.f32 %v266, %v268
    %v270 = vstv %s78
    %v271 = vmul.f32 %v270, %v114
    %v272 = vadd.f32 %v269, %v271
    %v273 = vstv %s81
    %v274 = vmul.f32 %v273, %v242
    %v275 = vstv %s84
    %v276 = vmul.f32 %v275, %v264
    %v277 = vadd.f32 %v274, %v276
    %v278 = vstv %s87
    %v279 = vmul.f32 %v278, %v114
    %v280 = vadd.f32 %v277, %v279
    %v281 = vstv %s90
    %v282 = vmul.f32 %v281, %v242
    %v283 = vstv %s93
    %v284 = vmul.f32 %v283, %v264
    %v285 = vadd.f32 %v282, %v284
    %v286 = vstv %s96
    %v287 = vmul.f32 %v286, %v114
    %v288 = vadd.f32 %v285, %v287
    %290 = vst [vmem:[#allocation1] ss:$4 sm:$0xff] %v116
    %v291 = vld.sshfl [vmem:[#allocation1] sm:$0xff pattern:$0x73625140]
    %v292 = vld.sshfl [vmem:[#allocation1 + $0x8] sm:$0xff pattern:$0x73625140]
    %295 = vrot.lane.b32.xlu0 %v291, 17
    %v296 = vpop.permute.xlu0 %295
    %297 = vrot.lane.b32.xlu0 %v292, 17
    %v298 = vpop.permute.xlu0 %297
    %v299 = vsel %vm131, %v296, %v298
    %v300 = vsel %vm131, %v298, %v296
    %301 = vst [vmem:[#allocation1] ss:$4 sm:$0xff] %v116
    %v302 = vld.sshfl [vmem:[#allocation1] sm:$0xff pattern:$0x73625140]
    %v303 = vld.sshfl [vmem:[#allocation1 + $0x8] sm:$0xff pattern:$0x73625140]
    %306 = vrot.lane.b32.xlu0 %v302, 16
    %v307 = vpop.permute.xlu0 %306
    %308 = vrot.lane.b32.xlu0 %v303, 16
    %v309 = vpop.permute.xlu0 %308
    %v310 = vsel %vm143, %v307, %v309
    %v311 = vsel %vm143, %v309, %v307
    %312 = vst [vmem:[#allocation1] ss:$4 sm:$0xff] %v116
    %v313 = vld.sshfl [vmem:[#allocation1] sm:$0xff pattern:$0x73625140]
    %v314 = vld.sshfl [vmem:[#allocation1 + $0x8] sm:$0xff pattern:$0x73625140]
    %317 = vrot.lane.b32.xlu0 %v313, 15
    %v318 = vpop.permute.xlu0 %317
    %319 = vrot.lane.b32.xlu0 %v314, 15
    %v320 = vpop.permute.xlu0 %319
    %v321 = vsel %vm155, %v318, %v320
    %v322 = vsel %vm155, %v320, %v318
    %323 = vst [vmem:[#allocation1] ss:$4 sm:$0xff] %v116
    %v324 = vld.sshfl [vmem:[#allocation1] sm:$0xff pattern:$0x73625140]
    %v325 = vld.sshfl [vmem:[#allocation1 + $0x8] sm:$0xff pattern:$0x73625140]
    %328 = vrot.lane.b32.xlu0 %v324, 1
    %v329 = vpop.permute.xlu0 %328
    %330 = vrot.lane.b32.xlu0 %v325, 1
    %v331 = vpop.permute.xlu0 %330
    %v332 = vsel %vm167, %v329, %v331
    %v333 = vsel %vm167, %v331, %v329
    %334 = vst [vmem:[#allocation1] ss:$4 sm:$0xff] %v116
    %v335 = vld.sshfl [vmem:[#allocation1] sm:$0xff pattern:$0x73625140]
    %v336 = vld.sshfl [vmem:[#allocation1 + $0x8] sm:$0xff pattern:$0x73625140]
    %339 = vrot.lane.b32.xlu0 %v335, 127
    %v340 = vpop.permute.xlu0 %339
    %341 = vrot.lane.b32.xlu0 %v336, 127
    %v342 = vpop.permute.xlu0 %341
    %v343 = vsel %vm179, %v340, %v342
    %v344 = vsel %vm179, %v342, %v340
    %345 = vst [vmem:[#allocation1] ss:$4 sm:$0xff] %v116
    %v346 = vld.sshfl [vmem:[#allocation1] sm:$0xff pattern:$0x73625140]
    %v347 = vld.sshfl [vmem:[#allocation1 + $0x8] sm:$0xff pattern:$0x73625140]
    %350 = vrot.lane.b32.xlu0 %v346, 113
    %v351 = vpop.permute.xlu0 %350
    %352 = vrot.lane.b32.xlu0 %v347, 113
    %v353 = vpop.permute.xlu0 %352
    %v354 = vsel %vm191, %v351, %v353
    %v355 = vsel %vm191, %v353, %v351
    %356 = vst [vmem:[#allocation1] ss:$4 sm:$0xff] %v116
    %v357 = vld.sshfl [vmem:[#allocation1] sm:$0xff pattern:$0x73625140]
    %v358 = vld.sshfl [vmem:[#allocation1 + $0x8] sm:$0xff pattern:$0x73625140]
    %361 = vrot.lane.b32.xlu0 %v357, 112
    %v362 = vpop.permute.xlu0 %361
    %363 = vrot.lane.b32.xlu0 %v358, 112
    %v364 = vpop.permute.xlu0 %363
    %v365 = vsel %vm203, %v362, %v364
    %v366 = vsel %vm203, %v364, %v362
    %367 = vst [vmem:[#allocation1] ss:$4 sm:$0xff] %v116
    %v368 = vld.sshfl [vmem:[#allocation1] sm:$0xff pattern:$0x73625140]
    %v369 = vld.sshfl [vmem:[#allocation1 + $0x8] sm:$0xff pattern:$0x73625140]
    %372 = vrot.lane.b32.xlu0 %v368, 111
    %v373 = vpop.permute.xlu0 %372
    %374 = vrot.lane.b32.xlu0 %v369, 111
    %v375 = vpop.permute.xlu0 %374
    %v376 = vsel %vm215, %v373, %v375
    %v377 = vsel %vm215, %v375, %v373
    %v378 = vmul.f32 %v300, -1.0
    %v379 = vmul.f32 %v299, -1.0
    %v380 = vadd.f32 %v378, %v322
    %v381 = vadd.f32 %v379, %v321
    %v382 = vmul.f32 %v333, -2.0
    %v383 = vmul.f32 %v332, -2.0
    %v384 = vadd.f32 %v380, %v382
    %v385 = vadd.f32 %v381, %v383
    %v386 = vmul.f32 %v343, 2.0
    %v387 = vmul.f32 %v344, 2.0
    %v388 = vadd.f32 %v384, %v386
    %v389 = vadd.f32 %v385, %v387
    %v390 = vmul.f32 %v354, -1.0
    %v391 = vmul.f32 %v355, -1.0
    %v392 = vadd.f32 %v388, %v390
    %v393 = vadd.f32 %v389, %v391
    %v394 = vadd.f32 %v392, %v376
    %v395 = vadd.f32 %v393, %v377
    %v398 = vrot.slane %v395, 6
    %v399 = vsel %vm239, %v394, %v398
    %v401 = vmul.f32 %v71, %v399
    %v402 = vmul.f32 %v311, -2.0
    %v403 = vmul.f32 %v310, -2.0
    %v404 = vadd.f32 %v378, %v402
    %v405 = vadd.f32 %v379, %v403
    %v406 = vmul.f32 %v322, -1.0
    %v407 = vmul.f32 %v321, -1.0
    %v408 = vadd.f32 %v404, %v406
    %v409 = vadd.f32 %v405, %v407
    %v410 = vadd.f32 %v408, %v354
    %v411 = vadd.f32 %v409, %v355
    %v412 = vmul.f32 %v365, 2.0
    %v413 = vmul.f32 %v366, 2.0
    %v414 = vadd.f32 %v410, %v412
    %v415 = vadd.f32 %v411, %v413
    %v416 = vadd.f32 %v414, %v376
    %v417 = vadd.f32 %v415, %v377
    %v420 = vrot.slane %v417, 6
    %v421 = vsel %vm239, %v416, %v420
    %v423 = vmul.f32 %v71, %v421
    %v424 = vstv %s73
    %v425 = vmul.f32 %v424, %v401
    %v426 = vstv %s76
    %v427 = vmul.f32 %v426, %v423
    %v428 = vadd.f32 %v425, %v427
    %v429 = vstv %s79
    %v430 = vmul.f32 %v429, %v116
    %v431 = vadd.f32 %v428, %v430
    %v432 = vadd.f32 %v272, %v431
    %v433 = vstv %s82
    %v434 = vmul.f32 %v433, %v401
    %v435 = vstv %s85
    %v436 = vmul.f32 %v435, %v423
    %v437 = vadd.f32 %v434, %v436
    %v438 = vstv %s88
    %v439 = vmul.f32 %v438, %v116
    %v440 = vadd.f32 %v437, %v439
    %v441 = vadd.f32 %v280, %v440
    %v442 = vstv %s91
    %v443 = vmul.f32 %v442, %v401
    %v444 = vstv %s94
    %v445 = vmul.f32 %v444, %v423
    %v446 = vadd.f32 %v443, %v445
    %v447 = vstv %s97
    %v448 = vmul.f32 %v447, %v116
    %v449 = vadd.f32 %v446, %v448
    %v450 = vadd.f32 %v288, %v449
    %452 = vst [vmem:[#allocation1] ss:$4 sm:$0xff] %v118
    %v453 = vld.sshfl [vmem:[#allocation1] sm:$0xff pattern:$0x73625140]
    %v454 = vld.sshfl [vmem:[#allocation1 + $0x8] sm:$0xff pattern:$0x73625140]
    %457 = vrot.lane.b32.xlu0 %v453, 17
    %v458 = vpop.permute.xlu0 %457
    %459 = vrot.lane.b32.xlu0 %v454, 17
    %v460 = vpop.permute.xlu0 %459
    %v461 = vsel %vm131, %v458, %v460
    %v462 = vsel %vm131, %v460, %v458
    %463 = vst [vmem:[#allocation1] ss:$4 sm:$0xff] %v118
    %v464 = vld.sshfl [vmem:[#allocation1] sm:$0xff pattern:$0x73625140]
    %v465 = vld.sshfl [vmem:[#allocation1 + $0x8] sm:$0xff pattern:$0x73625140]
    %468 = vrot.lane.b32.xlu0 %v464, 16
    %v469 = vpop.permute.xlu0 %468
    %470 = vrot.lane.b32.xlu0 %v465, 16
    %v471 = vpop.permute.xlu0 %470
    %v472 = vsel %vm143, %v469, %v471
    %v473 = vsel %vm143, %v471, %v469
    %474 = vst [vmem:[#allocation1] ss:$4 sm:$0xff] %v118
    %v475 = vld.sshfl [vmem:[#allocation1] sm:$0xff pattern:$0x73625140]
    %v476 = vld.sshfl [vmem:[#allocation1 + $0x8] sm:$0xff pattern:$0x73625140]
    %479 = vrot.lane.b32.xlu0 %v475, 15
    %v480 = vpop.permute.xlu0 %479
    %481 = vrot.lane.b32.xlu0 %v476, 15
    %v482 = vpop.permute.xlu0 %481
    %v483 = vsel %vm155, %v480, %v482
    %v484 = vsel %vm155, %v482, %v480
    %485 = vst [vmem:[#allocation1] ss:$4 sm:$0xff] %v118
    %v486 = vld.sshfl [vmem:[#allocation1] sm:$0xff pattern:$0x73625140]
    %v487 = vld.sshfl [vmem:[#allocation1 + $0x8] sm:$0xff pattern:$0x73625140]
    %490 = vrot.lane.b32.xlu0 %v486, 1
    %v491 = vpop.permute.xlu0 %490
    %492 = vrot.lane.b32.xlu0 %v487, 1
    %v493 = vpop.permute.xlu0 %492
    %v494 = vsel %vm167, %v491, %v493
    %v495 = vsel %vm167, %v493, %v491
    %496 = vst [vmem:[#allocation1] ss:$4 sm:$0xff] %v118
    %v497 = vld.sshfl [vmem:[#allocation1] sm:$0xff pattern:$0x73625140]
    %v498 = vld.sshfl [vmem:[#allocation1 + $0x8] sm:$0xff pattern:$0x73625140]
    %501 = vrot.lane.b32.xlu0 %v497, 127
    %v502 = vpop.permute.xlu0 %501
    %503 = vrot.lane.b32.xlu0 %v498, 127
    %v504 = vpop.permute.xlu0 %503
    %v505 = vsel %vm179, %v502, %v504
    %v506 = vsel %vm179, %v504, %v502
    %507 = vst [vmem:[#allocation1] ss:$4 sm:$0xff] %v118
    %v508 = vld.sshfl [vmem:[#allocation1] sm:$0xff pattern:$0x73625140]
    %v509 = vld.sshfl [vmem:[#allocation1 + $0x8] sm:$0xff pattern:$0x73625140]
    %512 = vrot.lane.b32.xlu0 %v508, 113
    %v513 = vpop.permute.xlu0 %512
    %514 = vrot.lane.b32.xlu0 %v509, 113
    %v515 = vpop.permute.xlu0 %514
    %v516 = vsel %vm191, %v513, %v515
    %v517 = vsel %vm191, %v515, %v513
    %518 = vst [vmem:[#allocation1] ss:$4 sm:$0xff] %v118
    %v519 = vld.sshfl [vmem:[#allocation1] sm:$0xff pattern:$0x73625140]
    %v520 = vld.sshfl [vmem:[#allocation1 + $0x8] sm:$0xff pattern:$0x73625140]
    %523 = vrot.lane.b32.xlu0 %v519, 112
    %v524 = vpop.permute.xlu0 %523
    %525 = vrot.lane.b32.xlu0 %v520, 112
    %v526 = vpop.permute.xlu0 %525
    %v527 = vsel %vm203, %v524, %v526
    %v528 = vsel %vm203, %v526, %v524
    %529 = vst [vmem:[#allocation1] ss:$4 sm:$0xff] %v118
    %v530 = vld.sshfl [vmem:[#allocation1] sm:$0xff pattern:$0x73625140]
    %v531 = vld.sshfl [vmem:[#allocation1 + $0x8] sm:$0xff pattern:$0x73625140]
    %534 = vrot.lane.b32.xlu0 %v530, 111
    %v535 = vpop.permute.xlu0 %534
    %536 = vrot.lane.b32.xlu0 %v531, 111
    %v537 = vpop.permute.xlu0 %536
    %v538 = vsel %vm215, %v535, %v537
    %v539 = vsel %vm215, %v537, %v535
    %v540 = vmul.f32 %v462, -1.0
    %v541 = vmul.f32 %v461, -1.0
    %v542 = vadd.f32 %v540, %v484
    %v543 = vadd.f32 %v541, %v483
    %v544 = vmul.f32 %v495, -2.0
    %v545 = vmul.f32 %v494, -2.0
    %v546 = vadd.f32 %v542, %v544
    %v547 = vadd.f32 %v543, %v545
    %v548 = vmul.f32 %v505, 2.0
    %v549 = vmul.f32 %v506, 2.0
    %v550 = vadd.f32 %v546, %v548
    %v551 = vadd.f32 %v547, %v549
    %v552 = vmul.f32 %v516, -1.0
    %v553 = vmul.f32 %v517, -1.0
    %v554 = vadd.f32 %v550, %v552
    %v555 = vadd.f32 %v551, %v553
    %v556 = vadd.f32 %v554, %v538
    %v557 = vadd.f32 %v555, %v539
    %v560 = vrot.slane %v557, 6
    %v561 = vsel %vm239, %v556, %v560
    %v563 = vmul.f32 %v71, %v561
    %v564 = vmul.f32 %v473, -2.0
    %v565 = vmul.f32 %v472, -2.0
    %v566 = vadd.f32 %v540, %v564
    %v567 = vadd.f32 %v541, %v565
    %v568 = vmul.f32 %v484, -1.0
    %v569 = vmul.f32 %v483, -1.0
    %v570 = vadd.f32 %v566, %v568
    %v571 = vadd.f32 %v567, %v569
    %v572 = vadd.f32 %v570, %v516
    %v573 = vadd.f32 %v571, %v517
    %v574 = vmul.f32 %v527, 2.0
    %v575 = vmul.f32 %v528, 2.0
    %v576 = vadd.f32 %v572, %v574
    %v577 = vadd.f32 %v573, %v575
    %v578 = vadd.f32 %v576, %v538
    %v579 = vadd.f32 %v577, %v539
    %v582 = vrot.slane %v579, 6
    %v583 = vsel %vm239, %v578, %v582
    %v585 = vmul.f32 %v71, %v583
    %v586 = vstv %s74
    %v587 = vmul.f32 %v586, %v563
    %v588 = vstv %s77
    %v589 = vmul.f32 %v588, %v585
    %v590 = vadd.f32 %v587, %v589
    %v591 = vstv %s80
    %v592 = vmul.f32 %v591, %v118
    %v593 = vadd.f32 %v590, %v592
    %v594 = vadd.f32 %v432, %v593
    %v595 = vstv %s83
    %v596 = vmul.f32 %v595, %v563
    %v597 = vstv %s86
    %v598 = vmul.f32 %v597, %v585
    %v599 = vadd.f32 %v596, %v598
    %v600 = vstv %s89
    %v601 = vmul.f32 %v600, %v118
    %v602 = vadd.f32 %v599, %v601
    %v603 = vadd.f32 %v441, %v602
    %v604 = vstv %s92
    %v605 = vmul.f32 %v604, %v563
    %v606 = vstv %s95
    %v607 = vmul.f32 %v606, %v585
    %v608 = vadd.f32 %v605, %v607
    %v609 = vstv %s98
    %v610 = vmul.f32 %v609, %v118
    %v611 = vadd.f32 %v608, %v610
    %v612 = vadd.f32 %v450, %v611
    %v613 = vstv %s99
    %v614 = vadd.f32 %v594, %v613
    %v615 = vmax.f32 %v614, 0.0
    %v616 = vstv %s100
    %v617 = vadd.f32 %v603, %v616
    %v618 = vmax.f32 %v617, 0.0
    %v619 = vstv %s101
    %v620 = vadd.f32 %v612, %v619
    %v621 = vmax.f32 %v620, 0.0
    %v622 = vstv %s102
    %v623 = vmul.f32 %v622, %v615
    %v624 = vstv %s103
    %v625 = vmul.f32 %v624, %v618
    %v626 = vadd.f32 %v623, %v625
    %v627 = vstv %s104
    %v628 = vmul.f32 %v627, %v621
    %v629 = vadd.f32 %v626, %v628
    %v630 = vstv %s111
    %v631 = vadd.f32 %v629, %v630
    %v632 = vstv %s105
    %v633 = vmul.f32 %v632, %v615
    %v634 = vstv %s106
    %v635 = vmul.f32 %v634, %v618
    %v636 = vadd.f32 %v633, %v635
    %v637 = vstv %s107
    %v638 = vmul.f32 %v637, %v621
    %v639 = vadd.f32 %v636, %v638
    %v640 = vstv %s112
    %v641 = vadd.f32 %v639, %v640
    %v642 = vstv %s108
    %v643 = vmul.f32 %v642, %v615
    %v644 = vstv %s109
    %v645 = vmul.f32 %v644, %v618
    %v646 = vadd.f32 %v643, %v645
    %v647 = vstv %s110
    %v648 = vmul.f32 %v647, %v621
    %v649 = vadd.f32 %v646, %v648
    %v650 = vstv %s113
    %v651 = vadd.f32 %v649, %v650
    %v652 = vtanh.pop %v631
    %v653 = vadd.f32 %v114, %v652
    %v654 = vtanh.pop %v641
    %v655 = vadd.f32 %v116, %v654
    %v656 = vtanh.pop %v651
    %v657 = vadd.f32 %v118, %v656
    %659 = vst [vmem:[#allocation1] ss:$4 sm:$0xff] %v653
    %v660 = vld.sshfl [vmem:[#allocation1] sm:$0xff pattern:$0x73625140]
    %v661 = vld.sshfl [vmem:[#allocation1 + $0x8] sm:$0xff pattern:$0x73625140]
    %664 = vrot.lane.b32.xlu0 %v660, 17
    %v665 = vpop.permute.xlu0 %664
    %666 = vrot.lane.b32.xlu0 %v661, 17
    %v667 = vpop.permute.xlu0 %666
    %v668 = vsel %vm131, %v665, %v667
    %v669 = vsel %vm131, %v667, %v665
    %670 = vst [vmem:[#allocation1] ss:$4 sm:$0xff] %v653
    %v671 = vld.sshfl [vmem:[#allocation1] sm:$0xff pattern:$0x73625140]
    %v672 = vld.sshfl [vmem:[#allocation1 + $0x8] sm:$0xff pattern:$0x73625140]
    %675 = vrot.lane.b32.xlu0 %v671, 16
    %v676 = vpop.permute.xlu0 %675
    %677 = vrot.lane.b32.xlu0 %v672, 16
    %v678 = vpop.permute.xlu0 %677
    %v679 = vsel %vm143, %v676, %v678
    %v680 = vsel %vm143, %v678, %v676
    %681 = vst [vmem:[#allocation1] ss:$4 sm:$0xff] %v653
    %v682 = vld.sshfl [vmem:[#allocation1] sm:$0xff pattern:$0x73625140]
    %v683 = vld.sshfl [vmem:[#allocation1 + $0x8] sm:$0xff pattern:$0x73625140]
    %686 = vrot.lane.b32.xlu0 %v682, 15
    %v687 = vpop.permute.xlu0 %686
    %688 = vrot.lane.b32.xlu0 %v683, 15
    %v689 = vpop.permute.xlu0 %688
    %v690 = vsel %vm155, %v687, %v689
    %v691 = vsel %vm155, %v689, %v687
    %692 = vst [vmem:[#allocation1] ss:$4 sm:$0xff] %v653
    %v693 = vld.sshfl [vmem:[#allocation1] sm:$0xff pattern:$0x73625140]
    %v694 = vld.sshfl [vmem:[#allocation1 + $0x8] sm:$0xff pattern:$0x73625140]
    %697 = vrot.lane.b32.xlu0 %v693, 1
    %v698 = vpop.permute.xlu0 %697
    %699 = vrot.lane.b32.xlu0 %v694, 1
    %v700 = vpop.permute.xlu0 %699
    %v701 = vsel %vm167, %v698, %v700
    %v702 = vsel %vm167, %v700, %v698
    %703 = vst [vmem:[#allocation1] ss:$4 sm:$0xff] %v653
    %v704 = vld.sshfl [vmem:[#allocation1] sm:$0xff pattern:$0x73625140]
    %v705 = vld.sshfl [vmem:[#allocation1 + $0x8] sm:$0xff pattern:$0x73625140]
    %708 = vrot.lane.b32.xlu0 %v704, 127
    %v709 = vpop.permute.xlu0 %708
    %710 = vrot.lane.b32.xlu0 %v705, 127
    %v711 = vpop.permute.xlu0 %710
    %v712 = vsel %vm179, %v709, %v711
    %v713 = vsel %vm179, %v711, %v709
    %714 = vst [vmem:[#allocation1] ss:$4 sm:$0xff] %v653
    %v715 = vld.sshfl [vmem:[#allocation1] sm:$0xff pattern:$0x73625140]
    %v716 = vld.sshfl [vmem:[#allocation1 + $0x8] sm:$0xff pattern:$0x73625140]
    %719 = vrot.lane.b32.xlu0 %v715, 113
    %v720 = vpop.permute.xlu0 %719
    %721 = vrot.lane.b32.xlu0 %v716, 113
    %v722 = vpop.permute.xlu0 %721
    %v723 = vsel %vm191, %v720, %v722
    %v724 = vsel %vm191, %v722, %v720
    %725 = vst [vmem:[#allocation1] ss:$4 sm:$0xff] %v653
    %v726 = vld.sshfl [vmem:[#allocation1] sm:$0xff pattern:$0x73625140]
    %v727 = vld.sshfl [vmem:[#allocation1 + $0x8] sm:$0xff pattern:$0x73625140]
    %730 = vrot.lane.b32.xlu0 %v726, 112
    %v731 = vpop.permute.xlu0 %730
    %732 = vrot.lane.b32.xlu0 %v727, 112
    %v733 = vpop.permute.xlu0 %732
    %v734 = vsel %vm203, %v731, %v733
    %v735 = vsel %vm203, %v733, %v731
    %736 = vst [vmem:[#allocation1] ss:$4 sm:$0xff] %v653
    %v737 = vld.sshfl [vmem:[#allocation1] sm:$0xff pattern:$0x73625140]
    %v738 = vld.sshfl [vmem:[#allocation1 + $0x8] sm:$0xff pattern:$0x73625140]
    %741 = vrot.lane.b32.xlu0 %v737, 111
    %v742 = vpop.permute.xlu0 %741
    %743 = vrot.lane.b32.xlu0 %v738, 111
    %v744 = vpop.permute.xlu0 %743
    %v745 = vsel %vm215, %v742, %v744
    %v746 = vsel %vm215, %v744, %v742
    %v747 = vmul.f32 %v669, -1.0
    %v748 = vmul.f32 %v668, -1.0
    %v749 = vadd.f32 %v747, %v691
    %v750 = vadd.f32 %v748, %v690
    %v751 = vmul.f32 %v702, -2.0
    %v752 = vmul.f32 %v701, -2.0
    %v753 = vadd.f32 %v749, %v751
    %v754 = vadd.f32 %v750, %v752
    %v755 = vmul.f32 %v712, 2.0
    %v756 = vmul.f32 %v713, 2.0
    %v757 = vadd.f32 %v753, %v755
    %v758 = vadd.f32 %v754, %v756
    %v759 = vmul.f32 %v723, -1.0
    %v760 = vmul.f32 %v724, -1.0
    %v761 = vadd.f32 %v757, %v759
    %v762 = vadd.f32 %v758, %v760
    %v763 = vadd.f32 %v761, %v745
    %v764 = vadd.f32 %v762, %v746
    %v767 = vrot.slane %v764, 6
    %v768 = vsel %vm239, %v763, %v767
    %v770 = vmul.f32 %v71, %v768
    %v771 = vmul.f32 %v680, -2.0
    %v772 = vmul.f32 %v679, -2.0
    %v773 = vadd.f32 %v747, %v771
    %v774 = vadd.f32 %v748, %v772
    %v775 = vmul.f32 %v691, -1.0
    %v776 = vmul.f32 %v690, -1.0
    %v777 = vadd.f32 %v773, %v775
    %v778 = vadd.f32 %v774, %v776
    %v779 = vadd.f32 %v777, %v723
    %v780 = vadd.f32 %v778, %v724
    %v781 = vmul.f32 %v734, 2.0
    %v782 = vmul.f32 %v735, 2.0
    %v783 = vadd.f32 %v779, %v781
    %v784 = vadd.f32 %v780, %v782
    %v785 = vadd.f32 %v783, %v745
    %v786 = vadd.f32 %v784, %v746
    %v789 = vrot.slane %v786, 6
    %v790 = vsel %vm239, %v785, %v789
    %v792 = vmul.f32 %v71, %v790
    %v793 = vmul.f32 %v265, %v770
    %v794 = vmul.f32 %v267, %v792
    %v795 = vadd.f32 %v793, %v794
    %v796 = vmul.f32 %v270, %v653
    %v797 = vadd.f32 %v795, %v796
    %v798 = vmul.f32 %v273, %v770
    %v799 = vmul.f32 %v275, %v792
    %v800 = vadd.f32 %v798, %v799
    %v801 = vmul.f32 %v278, %v653
    %v802 = vadd.f32 %v800, %v801
    %v803 = vmul.f32 %v281, %v770
    %v804 = vmul.f32 %v283, %v792
    %v805 = vadd.f32 %v803, %v804
    %v806 = vmul.f32 %v286, %v653
    %v807 = vadd.f32 %v805, %v806
    %809 = vst [vmem:[#allocation1] ss:$4 sm:$0xff] %v655
    %v810 = vld.sshfl [vmem:[#allocation1] sm:$0xff pattern:$0x73625140]
    %v811 = vld.sshfl [vmem:[#allocation1 + $0x8] sm:$0xff pattern:$0x73625140]
    %814 = vrot.lane.b32.xlu0 %v810, 17
    %v815 = vpop.permute.xlu0 %814
    %816 = vrot.lane.b32.xlu0 %v811, 17
    %v817 = vpop.permute.xlu0 %816
    %v818 = vsel %vm131, %v815, %v817
    %v819 = vsel %vm131, %v817, %v815
    %820 = vst [vmem:[#allocation1] ss:$4 sm:$0xff] %v655
    %v821 = vld.sshfl [vmem:[#allocation1] sm:$0xff pattern:$0x73625140]
    %v822 = vld.sshfl [vmem:[#allocation1 + $0x8] sm:$0xff pattern:$0x73625140]
    %825 = vrot.lane.b32.xlu0 %v821, 16
    %v826 = vpop.permute.xlu0 %825
    %827 = vrot.lane.b32.xlu0 %v822, 16
    %v828 = vpop.permute.xlu0 %827
    %v829 = vsel %vm143, %v826, %v828
    %v830 = vsel %vm143, %v828, %v826
    %831 = vst [vmem:[#allocation1] ss:$4 sm:$0xff] %v655
    %v832 = vld.sshfl [vmem:[#allocation1] sm:$0xff pattern:$0x73625140]
    %v833 = vld.sshfl [vmem:[#allocation1 + $0x8] sm:$0xff pattern:$0x73625140]
    %836 = vrot.lane.b32.xlu0 %v832, 15
    %v837 = vpop.permute.xlu0 %836
    %838 = vrot.lane.b32.xlu0 %v833, 15
    %v839 = vpop.permute.xlu0 %838
    %v840 = vsel %vm155, %v837, %v839
    %v841 = vsel %vm155, %v839, %v837
    %842 = vst [vmem:[#allocation1] ss:$4 sm:$0xff] %v655
    %v843 = vld.sshfl [vmem:[#allocation1] sm:$0xff pattern:$0x73625140]
    %v844 = vld.sshfl [vmem:[#allocation1 + $0x8] sm:$0xff pattern:$0x73625140]
    %847 = vrot.lane.b32.xlu0 %v843, 1
    %v848 = vpop.permute.xlu0 %847
    %849 = vrot.lane.b32.xlu0 %v844, 1
    %v850 = vpop.permute.xlu0 %849
    %v851 = vsel %vm167, %v848, %v850
    %v852 = vsel %vm167, %v850, %v848
    %853 = vst [vmem:[#allocation1] ss:$4 sm:$0xff] %v655
    %v854 = vld.sshfl [vmem:[#allocation1] sm:$0xff pattern:$0x73625140]
    %v855 = vld.sshfl [vmem:[#allocation1 + $0x8] sm:$0xff pattern:$0x73625140]
    %858 = vrot.lane.b32.xlu0 %v854, 127
    %v859 = vpop.permute.xlu0 %858
    %860 = vrot.lane.b32.xlu0 %v855, 127
    %v861 = vpop.permute.xlu0 %860
    %v862 = vsel %vm179, %v859, %v861
    %v863 = vsel %vm179, %v861, %v859
    %864 = vst [vmem:[#allocation1] ss:$4 sm:$0xff] %v655
    %v865 = vld.sshfl [vmem:[#allocation1] sm:$0xff pattern:$0x73625140]
    %v866 = vld.sshfl [vmem:[#allocation1 + $0x8] sm:$0xff pattern:$0x73625140]
    %869 = vrot.lane.b32.xlu0 %v865, 113
    %v870 = vpop.permute.xlu0 %869
    %871 = vrot.lane.b32.xlu0 %v866, 113
    %v872 = vpop.permute.xlu0 %871
    %v873 = vsel %vm191, %v870, %v872
    %v874 = vsel %vm191, %v872, %v870
    %875 = vst [vmem:[#allocation1] ss:$4 sm:$0xff] %v655
    %v876 = vld.sshfl [vmem:[#allocation1] sm:$0xff pattern:$0x73625140]
    %v877 = vld.sshfl [vmem:[#allocation1 + $0x8] sm:$0xff pattern:$0x73625140]
    %880 = vrot.lane.b32.xlu0 %v876, 112
    %v881 = vpop.permute.xlu0 %880
    %882 = vrot.lane.b32.xlu0 %v877, 112
    %v883 = vpop.permute.xlu0 %882
    %v884 = vsel %vm203, %v881, %v883
    %v885 = vsel %vm203, %v883, %v881
    %886 = vst [vmem:[#allocation1] ss:$4 sm:$0xff] %v655
    %v887 = vld.sshfl [vmem:[#allocation1] sm:$0xff pattern:$0x73625140]
    %v888 = vld.sshfl [vmem:[#allocation1 + $0x8] sm:$0xff pattern:$0x73625140]
    %891 = vrot.lane.b32.xlu0 %v887, 111
    %v892 = vpop.permute.xlu0 %891
    %893 = vrot.lane.b32.xlu0 %v888, 111
    %v894 = vpop.permute.xlu0 %893
    %v895 = vsel %vm215, %v892, %v894
    %v896 = vsel %vm215, %v894, %v892
    %v897 = vmul.f32 %v819, -1.0
    %v898 = vmul.f32 %v818, -1.0
    %v899 = vadd.f32 %v897, %v841
    %v900 = vadd.f32 %v898, %v840
    %v901 = vmul.f32 %v852, -2.0
    %v902 = vmul.f32 %v851, -2.0
    %v903 = vadd.f32 %v899, %v901
    %v904 = vadd.f32 %v900, %v902
    %v905 = vmul.f32 %v862, 2.0
    %v906 = vmul.f32 %v863, 2.0
    %v907 = vadd.f32 %v903, %v905
    %v908 = vadd.f32 %v904, %v906
    %v909 = vmul.f32 %v873, -1.0
    %v910 = vmul.f32 %v874, -1.0
    %v911 = vadd.f32 %v907, %v909
    %v912 = vadd.f32 %v908, %v910
    %v913 = vadd.f32 %v911, %v895
    %v914 = vadd.f32 %v912, %v896
    %v917 = vrot.slane %v914, 6
    %v918 = vsel %vm239, %v913, %v917
    %v920 = vmul.f32 %v71, %v918
    %v921 = vmul.f32 %v830, -2.0
    %v922 = vmul.f32 %v829, -2.0
    %v923 = vadd.f32 %v897, %v921
    %v924 = vadd.f32 %v898, %v922
    %v925 = vmul.f32 %v841, -1.0
    %v926 = vmul.f32 %v840, -1.0
    %v927 = vadd.f32 %v923, %v925
    %v928 = vadd.f32 %v924, %v926
    %v929 = vadd.f32 %v927, %v873
    %v930 = vadd.f32 %v928, %v874
    %v931 = vmul.f32 %v884, 2.0
    %v932 = vmul.f32 %v885, 2.0
    %v933 = vadd.f32 %v929, %v931
    %v934 = vadd.f32 %v930, %v932
    %v935 = vadd.f32 %v933, %v895
    %v936 = vadd.f32 %v934, %v896
    %v939 = vrot.slane %v936, 6
    %v940 = vsel %vm239, %v935, %v939
    %v942 = vmul.f32 %v71, %v940
    %v943 = vmul.f32 %v424, %v920
    %v944 = vmul.f32 %v426, %v942
    %v945 = vadd.f32 %v943, %v944
    %v946 = vmul.f32 %v429, %v655
    %v947 = vadd.f32 %v945, %v946
    %v948 = vadd.f32 %v797, %v947
    %v949 = vmul.f32 %v433, %v920
    %v950 = vmul.f32 %v435, %v942
    %v951 = vadd.f32 %v949, %v950
    %v952 = vmul.f32 %v438, %v655
    %v953 = vadd.f32 %v951, %v952
    %v954 = vadd.f32 %v802, %v953
    %v955 = vmul.f32 %v442, %v920
    %v956 = vmul.f32 %v444, %v942
    %v957 = vadd.f32 %v955, %v956
    %v958 = vmul.f32 %v447, %v655
    %v959 = vadd.f32 %v957, %v958
    %v960 = vadd.f32 %v807, %v959
    %962 = vst [vmem:[#allocation1] ss:$4 sm:$0xff] %v657
    %v963 = vld.sshfl [vmem:[#allocation1] sm:$0xff pattern:$0x73625140]
    %v964 = vld.sshfl [vmem:[#allocation1 + $0x8] sm:$0xff pattern:$0x73625140]
    %967 = vrot.lane.b32.xlu0 %v963, 17
    %v968 = vpop.permute.xlu0 %967
    %969 = vrot.lane.b32.xlu0 %v964, 17
    %v970 = vpop.permute.xlu0 %969
    %v971 = vsel %vm131, %v968, %v970
    %v972 = vsel %vm131, %v970, %v968
    %973 = vst [vmem:[#allocation1] ss:$4 sm:$0xff] %v657
    %v974 = vld.sshfl [vmem:[#allocation1] sm:$0xff pattern:$0x73625140]
    %v975 = vld.sshfl [vmem:[#allocation1 + $0x8] sm:$0xff pattern:$0x73625140]
    %978 = vrot.lane.b32.xlu0 %v974, 16
    %v979 = vpop.permute.xlu0 %978
    %980 = vrot.lane.b32.xlu0 %v975, 16
    %v981 = vpop.permute.xlu0 %980
    %v982 = vsel %vm143, %v979, %v981
    %v983 = vsel %vm143, %v981, %v979
    %984 = vst [vmem:[#allocation1] ss:$4 sm:$0xff] %v657
    %v985 = vld.sshfl [vmem:[#allocation1] sm:$0xff pattern:$0x73625140]
    %v986 = vld.sshfl [vmem:[#allocation1 + $0x8] sm:$0xff pattern:$0x73625140]
    %989 = vrot.lane.b32.xlu0 %v985, 15
    %v990 = vpop.permute.xlu0 %989
    %991 = vrot.lane.b32.xlu0 %v986, 15
    %v992 = vpop.permute.xlu0 %991
    %v993 = vsel %vm155, %v990, %v992
    %v994 = vsel %vm155, %v992, %v990
    %995 = vst [vmem:[#allocation1] ss:$4 sm:$0xff] %v657
    %v996 = vld.sshfl [vmem:[#allocation1] sm:$0xff pattern:$0x73625140]
    %v997 = vld.sshfl [vmem:[#allocation1 + $0x8] sm:$0xff pattern:$0x73625140]
    %1000 = vrot.lane.b32.xlu0 %v996, 1
    %v1001 = vpop.permute.xlu0 %1000
    %1002 = vrot.lane.b32.xlu0 %v997, 1
    %v1003 = vpop.permute.xlu0 %1002
    %v1004 = vsel %vm167, %v1001, %v1003
    %v1005 = vsel %vm167, %v1003, %v1001
    %1006 = vst [vmem:[#allocation1] ss:$4 sm:$0xff] %v657
    %v1007 = vld.sshfl [vmem:[#allocation1] sm:$0xff pattern:$0x73625140]
    %v1008 = vld.sshfl [vmem:[#allocation1 + $0x8] sm:$0xff pattern:$0x73625140]
    %1011 = vrot.lane.b32.xlu0 %v1007, 127
    %v1012 = vpop.permute.xlu0 %1011
    %1013 = vrot.lane.b32.xlu0 %v1008, 127
    %v1014 = vpop.permute.xlu0 %1013
    %v1015 = vsel %vm179, %v1012, %v1014
    %v1016 = vsel %vm179, %v1014, %v1012
    %1017 = vst [vmem:[#allocation1] ss:$4 sm:$0xff] %v657
    %v1018 = vld.sshfl [vmem:[#allocation1] sm:$0xff pattern:$0x73625140]
    %v1019 = vld.sshfl [vmem:[#allocation1 + $0x8] sm:$0xff pattern:$0x73625140]
    %1022 = vrot.lane.b32.xlu0 %v1018, 113
    %v1023 = vpop.permute.xlu0 %1022
    %1024 = vrot.lane.b32.xlu0 %v1019, 113
    %v1025 = vpop.permute.xlu0 %1024
    %v1026 = vsel %vm191, %v1023, %v1025
    %v1027 = vsel %vm191, %v1025, %v1023
    %1028 = vst [vmem:[#allocation1] ss:$4 sm:$0xff] %v657
    %v1029 = vld.sshfl [vmem:[#allocation1] sm:$0xff pattern:$0x73625140]
    %v1030 = vld.sshfl [vmem:[#allocation1 + $0x8] sm:$0xff pattern:$0x73625140]
    %1033 = vrot.lane.b32.xlu0 %v1029, 112
    %v1034 = vpop.permute.xlu0 %1033
    %1035 = vrot.lane.b32.xlu0 %v1030, 112
    %v1036 = vpop.permute.xlu0 %1035
    %v1037 = vsel %vm203, %v1034, %v1036
    %v1038 = vsel %vm203, %v1036, %v1034
    %1039 = vst [vmem:[#allocation1] ss:$4 sm:$0xff] %v657
    %v1040 = vld.sshfl [vmem:[#allocation1] sm:$0xff pattern:$0x73625140]
    %v1041 = vld.sshfl [vmem:[#allocation1 + $0x8] sm:$0xff pattern:$0x73625140]
    %1044 = vrot.lane.b32.xlu0 %v1040, 111
    %v1045 = vpop.permute.xlu0 %1044
    %1046 = vrot.lane.b32.xlu0 %v1041, 111
    %v1047 = vpop.permute.xlu0 %1046
    %v1048 = vsel %vm215, %v1045, %v1047
    %v1049 = vsel %vm215, %v1047, %v1045
    %v1050 = vmul.f32 %v972, -1.0
    %v1051 = vmul.f32 %v971, -1.0
    %v1052 = vadd.f32 %v1050, %v994
    %v1053 = vadd.f32 %v1051, %v993
    %v1054 = vmul.f32 %v1005, -2.0
    %v1055 = vmul.f32 %v1004, -2.0
    %v1056 = vadd.f32 %v1052, %v1054
    %v1057 = vadd.f32 %v1053, %v1055
    %v1058 = vmul.f32 %v1015, 2.0
    %v1059 = vmul.f32 %v1016, 2.0
    %v1060 = vadd.f32 %v1056, %v1058
    %v1061 = vadd.f32 %v1057, %v1059
    %v1062 = vmul.f32 %v1026, -1.0
    %v1063 = vmul.f32 %v1027, -1.0
    %v1064 = vadd.f32 %v1060, %v1062
    %v1065 = vadd.f32 %v1061, %v1063
    %v1066 = vadd.f32 %v1064, %v1048
    %v1067 = vadd.f32 %v1065, %v1049
    %v1070 = vrot.slane %v1067, 6
    %v1071 = vsel %vm239, %v1066, %v1070
    %v1073 = vmul.f32 %v71, %v1071
    %v1074 = vmul.f32 %v983, -2.0
    %v1075 = vmul.f32 %v982, -2.0
    %v1076 = vadd.f32 %v1050, %v1074
    %v1077 = vadd.f32 %v1051, %v1075
    %v1078 = vmul.f32 %v994, -1.0
    %v1079 = vmul.f32 %v993, -1.0
    %v1080 = vadd.f32 %v1076, %v1078
    %v1081 = vadd.f32 %v1077, %v1079
    %v1082 = vadd.f32 %v1080, %v1026
    %v1083 = vadd.f32 %v1081, %v1027
    %v1084 = vmul.f32 %v1037, 2.0
    %v1085 = vmul.f32 %v1038, 2.0
    %v1086 = vadd.f32 %v1082, %v1084
    %v1087 = vadd.f32 %v1083, %v1085
    %v1088 = vadd.f32 %v1086, %v1048
    %v1089 = vadd.f32 %v1087, %v1049
    %v1092 = vrot.slane %v1089, 6
    %v1093 = vsel %vm239, %v1088, %v1092
    %v1095 = vmul.f32 %v71, %v1093
    %v1096 = vmul.f32 %v586, %v1073
    %v1097 = vmul.f32 %v588, %v1095
    %v1098 = vadd.f32 %v1096, %v1097
    %v1099 = vmul.f32 %v591, %v657
    %v1100 = vadd.f32 %v1098, %v1099
    %v1101 = vadd.f32 %v948, %v1100
    %v1102 = vmul.f32 %v595, %v1073
    %v1103 = vmul.f32 %v597, %v1095
    %v1104 = vadd.f32 %v1102, %v1103
    %v1105 = vmul.f32 %v600, %v657
    %v1106 = vadd.f32 %v1104, %v1105
    %v1107 = vadd.f32 %v954, %v1106
    %v1108 = vmul.f32 %v604, %v1073
    %v1109 = vmul.f32 %v606, %v1095
    %v1110 = vadd.f32 %v1108, %v1109
    %v1111 = vmul.f32 %v609, %v657
    %v1112 = vadd.f32 %v1110, %v1111
    %v1113 = vadd.f32 %v960, %v1112
    %v1114 = vadd.f32 %v1101, %v613
    %v1115 = vmax.f32 %v1114, 0.0
    %v1116 = vadd.f32 %v1107, %v616
    %v1117 = vmax.f32 %v1116, 0.0
    %v1118 = vadd.f32 %v1113, %v619
    %v1119 = vmax.f32 %v1118, 0.0
    %v1120 = vmul.f32 %v622, %v1115
    %v1121 = vmul.f32 %v624, %v1117
    %v1122 = vadd.f32 %v1120, %v1121
    %v1123 = vmul.f32 %v627, %v1119
    %v1124 = vadd.f32 %v1122, %v1123
    %v1125 = vadd.f32 %v1124, %v630
    %v1126 = vmul.f32 %v632, %v1115
    %v1127 = vmul.f32 %v634, %v1117
    %v1128 = vadd.f32 %v1126, %v1127
    %v1129 = vmul.f32 %v637, %v1119
    %v1130 = vadd.f32 %v1128, %v1129
    %v1131 = vadd.f32 %v1130, %v640
    %v1132 = vmul.f32 %v642, %v1115
    %v1133 = vmul.f32 %v644, %v1117
    %v1134 = vadd.f32 %v1132, %v1133
    %v1135 = vmul.f32 %v647, %v1119
    %v1136 = vadd.f32 %v1134, %v1135
    %v1137 = vadd.f32 %v1136, %v650
    %v1138 = vtanh.pop %v1125
    %v1139 = vadd.f32 %v653, %v1138
    %v1140 = vtanh.pop %v1131
    %v1141 = vadd.f32 %v655, %v1140
    %v1142 = vtanh.pop %v1137
    %v1143 = vadd.f32 %v657, %v1142
    %1145 = vst [vmem:[#allocation1] ss:$4 sm:$0xff] %v1139
    %v1146 = vld.sshfl [vmem:[#allocation1] sm:$0xff pattern:$0x73625140]
    %v1147 = vld.sshfl [vmem:[#allocation1 + $0x8] sm:$0xff pattern:$0x73625140]
    %1150 = vrot.lane.b32.xlu0 %v1146, 17
    %v1151 = vpop.permute.xlu0 %1150
    %1152 = vrot.lane.b32.xlu0 %v1147, 17
    %v1153 = vpop.permute.xlu0 %1152
    %v1154 = vsel %vm131, %v1151, %v1153
    %v1155 = vsel %vm131, %v1153, %v1151
    %1156 = vst [vmem:[#allocation1] ss:$4 sm:$0xff] %v1139
    %v1157 = vld.sshfl [vmem:[#allocation1] sm:$0xff pattern:$0x73625140]
    %v1158 = vld.sshfl [vmem:[#allocation1 + $0x8] sm:$0xff pattern:$0x73625140]
    %1161 = vrot.lane.b32.xlu0 %v1157, 16
    %v1162 = vpop.permute.xlu0 %1161
    %1163 = vrot.lane.b32.xlu0 %v1158, 16
    %v1164 = vpop.permute.xlu0 %1163
    %v1165 = vsel %vm143, %v1162, %v1164
    %v1166 = vsel %vm143, %v1164, %v1162
    %1167 = vst [vmem:[#allocation1] ss:$4 sm:$0xff] %v1139
    %v1168 = vld.sshfl [vmem:[#allocation1] sm:$0xff pattern:$0x73625140]
    %v1169 = vld.sshfl [vmem:[#allocation1 + $0x8] sm:$0xff pattern:$0x73625140]
    %1172 = vrot.lane.b32.xlu0 %v1168, 15
    %v1173 = vpop.permute.xlu0 %1172
    %1174 = vrot.lane.b32.xlu0 %v1169, 15
    %v1175 = vpop.permute.xlu0 %1174
    %v1176 = vsel %vm155, %v1173, %v1175
    %v1177 = vsel %vm155, %v1175, %v1173
    %1178 = vst [vmem:[#allocation1] ss:$4 sm:$0xff] %v1139
    %v1179 = vld.sshfl [vmem:[#allocation1] sm:$0xff pattern:$0x73625140]
    %v1180 = vld.sshfl [vmem:[#allocation1 + $0x8] sm:$0xff pattern:$0x73625140]
    %1183 = vrot.lane.b32.xlu0 %v1179, 1
    %v1184 = vpop.permute.xlu0 %1183
    %1185 = vrot.lane.b32.xlu0 %v1180, 1
    %v1186 = vpop.permute.xlu0 %1185
    %v1187 = vsel %vm167, %v1184, %v1186
    %v1188 = vsel %vm167, %v1186, %v1184
    %1189 = vst [vmem:[#allocation1] ss:$4 sm:$0xff] %v1139
    %v1190 = vld.sshfl [vmem:[#allocation1] sm:$0xff pattern:$0x73625140]
    %v1191 = vld.sshfl [vmem:[#allocation1 + $0x8] sm:$0xff pattern:$0x73625140]
    %1194 = vrot.lane.b32.xlu0 %v1190, 127
    %v1195 = vpop.permute.xlu0 %1194
    %1196 = vrot.lane.b32.xlu0 %v1191, 127
    %v1197 = vpop.permute.xlu0 %1196
    %v1198 = vsel %vm179, %v1195, %v1197
    %v1199 = vsel %vm179, %v1197, %v1195
    %1200 = vst [vmem:[#allocation1] ss:$4 sm:$0xff] %v1139
    %v1201 = vld.sshfl [vmem:[#allocation1] sm:$0xff pattern:$0x73625140]
    %v1202 = vld.sshfl [vmem:[#allocation1 + $0x8] sm:$0xff pattern:$0x73625140]
    %1205 = vrot.lane.b32.xlu0 %v1201, 113
    %v1206 = vpop.permute.xlu0 %1205
    %1207 = vrot.lane.b32.xlu0 %v1202, 113
    %v1208 = vpop.permute.xlu0 %1207
    %v1209 = vsel %vm191, %v1206, %v1208
    %v1210 = vsel %vm191, %v1208, %v1206
    %1211 = vst [vmem:[#allocation1] ss:$4 sm:$0xff] %v1139
    %v1212 = vld.sshfl [vmem:[#allocation1] sm:$0xff pattern:$0x73625140]
    %v1213 = vld.sshfl [vmem:[#allocation1 + $0x8] sm:$0xff pattern:$0x73625140]
    %1216 = vrot.lane.b32.xlu0 %v1212, 112
    %v1217 = vpop.permute.xlu0 %1216
    %1218 = vrot.lane.b32.xlu0 %v1213, 112
    %v1219 = vpop.permute.xlu0 %1218
    %v1220 = vsel %vm203, %v1217, %v1219
    %v1221 = vsel %vm203, %v1219, %v1217
    %1222 = vst [vmem:[#allocation1] ss:$4 sm:$0xff] %v1139
    %v1223 = vld.sshfl [vmem:[#allocation1] sm:$0xff pattern:$0x73625140]
    %v1224 = vld.sshfl [vmem:[#allocation1 + $0x8] sm:$0xff pattern:$0x73625140]
    %1227 = vrot.lane.b32.xlu0 %v1223, 111
    %v1228 = vpop.permute.xlu0 %1227
    %1229 = vrot.lane.b32.xlu0 %v1224, 111
    %v1230 = vpop.permute.xlu0 %1229
    %v1231 = vsel %vm215, %v1228, %v1230
    %v1232 = vsel %vm215, %v1230, %v1228
    %v1233 = vmul.f32 %v1155, -1.0
    %v1234 = vmul.f32 %v1154, -1.0
    %v1235 = vadd.f32 %v1233, %v1177
    %v1236 = vadd.f32 %v1234, %v1176
    %v1237 = vmul.f32 %v1188, -2.0
    %v1238 = vmul.f32 %v1187, -2.0
    %v1239 = vadd.f32 %v1235, %v1237
    %v1240 = vadd.f32 %v1236, %v1238
    %v1241 = vmul.f32 %v1198, 2.0
    %v1242 = vmul.f32 %v1199, 2.0
    %v1243 = vadd.f32 %v1239, %v1241
    %v1244 = vadd.f32 %v1240, %v1242
    %v1245 = vmul.f32 %v1209, -1.0
    %v1246 = vmul.f32 %v1210, -1.0
    %v1247 = vadd.f32 %v1243, %v1245
    %v1248 = vadd.f32 %v1244, %v1246
    %v1249 = vadd.f32 %v1247, %v1231
    %v1250 = vadd.f32 %v1248, %v1232
    %v1253 = vrot.slane %v1250, 6
    %v1254 = vsel %vm239, %v1249, %v1253
    %v1256 = vmul.f32 %v71, %v1254
    %v1257 = vmul.f32 %v1166, -2.0
    %v1258 = vmul.f32 %v1165, -2.0
    %v1259 = vadd.f32 %v1233, %v1257
    %v1260 = vadd.f32 %v1234, %v1258
    %v1261 = vmul.f32 %v1177, -1.0
    %v1262 = vmul.f32 %v1176, -1.0
    %v1263 = vadd.f32 %v1259, %v1261
    %v1264 = vadd.f32 %v1260, %v1262
    %v1265 = vadd.f32 %v1263, %v1209
    %v1266 = vadd.f32 %v1264, %v1210
    %v1267 = vmul.f32 %v1220, 2.0
    %v1268 = vmul.f32 %v1221, 2.0
    %v1269 = vadd.f32 %v1265, %v1267
    %v1270 = vadd.f32 %v1266, %v1268
    %v1271 = vadd.f32 %v1269, %v1231
    %v1272 = vadd.f32 %v1270, %v1232
    %v1275 = vrot.slane %v1272, 6
    %v1276 = vsel %vm239, %v1271, %v1275
    %v1278 = vmul.f32 %v71, %v1276
    %v1279 = vmul.f32 %v265, %v1256
    %v1280 = vmul.f32 %v267, %v1278
    %v1281 = vadd.f32 %v1279, %v1280
    %v1282 = vmul.f32 %v270, %v1139
    %v1283 = vadd.f32 %v1281, %v1282
    %v1284 = vmul.f32 %v273, %v1256
    %v1285 = vmul.f32 %v275, %v1278
    %v1286 = vadd.f32 %v1284, %v1285
    %v1287 = vmul.f32 %v278, %v1139
    %v1288 = vadd.f32 %v1286, %v1287
    %v1289 = vmul.f32 %v281, %v1256
    %v1290 = vmul.f32 %v283, %v1278
    %v1291 = vadd.f32 %v1289, %v1290
    %v1292 = vmul.f32 %v286, %v1139
    %v1293 = vadd.f32 %v1291, %v1292
    %1295 = vst [vmem:[#allocation1] ss:$4 sm:$0xff] %v1141
    %v1296 = vld.sshfl [vmem:[#allocation1] sm:$0xff pattern:$0x73625140]
    %v1297 = vld.sshfl [vmem:[#allocation1 + $0x8] sm:$0xff pattern:$0x73625140]
    %1300 = vrot.lane.b32.xlu0 %v1296, 17
    %v1301 = vpop.permute.xlu0 %1300
    %1302 = vrot.lane.b32.xlu0 %v1297, 17
    %v1303 = vpop.permute.xlu0 %1302
    %v1304 = vsel %vm131, %v1301, %v1303
    %v1305 = vsel %vm131, %v1303, %v1301
    %1306 = vst [vmem:[#allocation1] ss:$4 sm:$0xff] %v1141
    %v1307 = vld.sshfl [vmem:[#allocation1] sm:$0xff pattern:$0x73625140]
    %v1308 = vld.sshfl [vmem:[#allocation1 + $0x8] sm:$0xff pattern:$0x73625140]
    %1311 = vrot.lane.b32.xlu0 %v1307, 16
    %v1312 = vpop.permute.xlu0 %1311
    %1313 = vrot.lane.b32.xlu0 %v1308, 16
    %v1314 = vpop.permute.xlu0 %1313
    %v1315 = vsel %vm143, %v1312, %v1314
    %v1316 = vsel %vm143, %v1314, %v1312
    %1317 = vst [vmem:[#allocation1] ss:$4 sm:$0xff] %v1141
    %v1318 = vld.sshfl [vmem:[#allocation1] sm:$0xff pattern:$0x73625140]
    %v1319 = vld.sshfl [vmem:[#allocation1 + $0x8] sm:$0xff pattern:$0x73625140]
    %1322 = vrot.lane.b32.xlu0 %v1318, 15
    %v1323 = vpop.permute.xlu0 %1322
    %1324 = vrot.lane.b32.xlu0 %v1319, 15
    %v1325 = vpop.permute.xlu0 %1324
    %v1326 = vsel %vm155, %v1323, %v1325
    %v1327 = vsel %vm155, %v1325, %v1323
    %1328 = vst [vmem:[#allocation1] ss:$4 sm:$0xff] %v1141
    %v1329 = vld.sshfl [vmem:[#allocation1] sm:$0xff pattern:$0x73625140]
    %v1330 = vld.sshfl [vmem:[#allocation1 + $0x8] sm:$0xff pattern:$0x73625140]
    %1333 = vrot.lane.b32.xlu0 %v1329, 1
    %v1334 = vpop.permute.xlu0 %1333
    %1335 = vrot.lane.b32.xlu0 %v1330, 1
    %v1336 = vpop.permute.xlu0 %1335
    %v1337 = vsel %vm167, %v1334, %v1336
    %v1338 = vsel %vm167, %v1336, %v1334
    %1339 = vst [vmem:[#allocation1] ss:$4 sm:$0xff] %v1141
    %v1340 = vld.sshfl [vmem:[#allocation1] sm:$0xff pattern:$0x73625140]
    %v1341 = vld.sshfl [vmem:[#allocation1 + $0x8] sm:$0xff pattern:$0x73625140]
    %1344 = vrot.lane.b32.xlu0 %v1340, 127
    %v1345 = vpop.permute.xlu0 %1344
    %1346 = vrot.lane.b32.xlu0 %v1341, 127
    %v1347 = vpop.permute.xlu0 %1346
    %v1348 = vsel %vm179, %v1345, %v1347
    %v1349 = vsel %vm179, %v1347, %v1345
    %1350 = vst [vmem:[#allocation1] ss:$4 sm:$0xff] %v1141
    %v1351 = vld.sshfl [vmem:[#allocation1] sm:$0xff pattern:$0x73625140]
    %v1352 = vld.sshfl [vmem:[#allocation1 + $0x8] sm:$0xff pattern:$0x73625140]
    %1355 = vrot.lane.b32.xlu0 %v1351, 113
    %v1356 = vpop.permute.xlu0 %1355
    %1357 = vrot.lane.b32.xlu0 %v1352, 113
    %v1358 = vpop.permute.xlu0 %1357
    %v1359 = vsel %vm191, %v1356, %v1358
    %v1360 = vsel %vm191, %v1358, %v1356
    %1361 = vst [vmem:[#allocation1] ss:$4 sm:$0xff] %v1141
    %v1362 = vld.sshfl [vmem:[#allocation1] sm:$0xff pattern:$0x73625140]
    %v1363 = vld.sshfl [vmem:[#allocation1 + $0x8] sm:$0xff pattern:$0x73625140]
    %1366 = vrot.lane.b32.xlu0 %v1362, 112
    %v1367 = vpop.permute.xlu0 %1366
    %1368 = vrot.lane.b32.xlu0 %v1363, 112
    %v1369 = vpop.permute.xlu0 %1368
    %v1370 = vsel %vm203, %v1367, %v1369
    %v1371 = vsel %vm203, %v1369, %v1367
    %1372 = vst [vmem:[#allocation1] ss:$4 sm:$0xff] %v1141
    %v1373 = vld.sshfl [vmem:[#allocation1] sm:$0xff pattern:$0x73625140]
    %v1374 = vld.sshfl [vmem:[#allocation1 + $0x8] sm:$0xff pattern:$0x73625140]
    %1377 = vrot.lane.b32.xlu0 %v1373, 111
    %v1378 = vpop.permute.xlu0 %1377
    %1379 = vrot.lane.b32.xlu0 %v1374, 111
    %v1380 = vpop.permute.xlu0 %1379
    %v1381 = vsel %vm215, %v1378, %v1380
    %v1382 = vsel %vm215, %v1380, %v1378
    %v1383 = vmul.f32 %v1305, -1.0
    %v1384 = vmul.f32 %v1304, -1.0
    %v1385 = vadd.f32 %v1383, %v1327
    %v1386 = vadd.f32 %v1384, %v1326
    %v1387 = vmul.f32 %v1338, -2.0
    %v1388 = vmul.f32 %v1337, -2.0
    %v1389 = vadd.f32 %v1385, %v1387
    %v1390 = vadd.f32 %v1386, %v1388
    %v1391 = vmul.f32 %v1348, 2.0
    %v1392 = vmul.f32 %v1349, 2.0
    %v1393 = vadd.f32 %v1389, %v1391
    %v1394 = vadd.f32 %v1390, %v1392
    %v1395 = vmul.f32 %v1359, -1.0
    %v1396 = vmul.f32 %v1360, -1.0
    %v1397 = vadd.f32 %v1393, %v1395
    %v1398 = vadd.f32 %v1394, %v1396
    %v1399 = vadd.f32 %v1397, %v1381
    %v1400 = vadd.f32 %v1398, %v1382
    %v1403 = vrot.slane %v1400, 6
    %v1404 = vsel %vm239, %v1399, %v1403
    %v1406 = vmul.f32 %v71, %v1404
    %v1407 = vmul.f32 %v1316, -2.0
    %v1408 = vmul.f32 %v1315, -2.0
    %v1409 = vadd.f32 %v1383, %v1407
    %v1410 = vadd.f32 %v1384, %v1408
    %v1411 = vmul.f32 %v1327, -1.0
    %v1412 = vmul.f32 %v1326, -1.0
    %v1413 = vadd.f32 %v1409, %v1411
    %v1414 = vadd.f32 %v1410, %v1412
    %v1415 = vadd.f32 %v1413, %v1359
    %v1416 = vadd.f32 %v1414, %v1360
    %v1417 = vmul.f32 %v1370, 2.0
    %v1418 = vmul.f32 %v1371, 2.0
    %v1419 = vadd.f32 %v1415, %v1417
    %v1420 = vadd.f32 %v1416, %v1418
    %v1421 = vadd.f32 %v1419, %v1381
    %v1422 = vadd.f32 %v1420, %v1382
    %v1425 = vrot.slane %v1422, 6
    %v1426 = vsel %vm239, %v1421, %v1425
    %v1428 = vmul.f32 %v71, %v1426
    %v1429 = vmul.f32 %v424, %v1406
    %v1430 = vmul.f32 %v426, %v1428
    %v1431 = vadd.f32 %v1429, %v1430
    %v1432 = vmul.f32 %v429, %v1141
    %v1433 = vadd.f32 %v1431, %v1432
    %v1434 = vadd.f32 %v1283, %v1433
    %v1435 = vmul.f32 %v433, %v1406
    %v1436 = vmul.f32 %v435, %v1428
    %v1437 = vadd.f32 %v1435, %v1436
    %v1438 = vmul.f32 %v438, %v1141
    %v1439 = vadd.f32 %v1437, %v1438
    %v1440 = vadd.f32 %v1288, %v1439
    %v1441 = vmul.f32 %v442, %v1406
    %v1442 = vmul.f32 %v444, %v1428
    %v1443 = vadd.f32 %v1441, %v1442
    %v1444 = vmul.f32 %v447, %v1141
    %v1445 = vadd.f32 %v1443, %v1444
    %v1446 = vadd.f32 %v1293, %v1445
    %1448 = vst [vmem:[#allocation1] ss:$4 sm:$0xff] %v1143
    %v1449 = vld.sshfl [vmem:[#allocation1] sm:$0xff pattern:$0x73625140]
    %v1450 = vld.sshfl [vmem:[#allocation1 + $0x8] sm:$0xff pattern:$0x73625140]
    %1453 = vrot.lane.b32.xlu0 %v1449, 17
    %v1454 = vpop.permute.xlu0 %1453
    %1455 = vrot.lane.b32.xlu0 %v1450, 17
    %v1456 = vpop.permute.xlu0 %1455
    %v1457 = vsel %vm131, %v1454, %v1456
    %v1458 = vsel %vm131, %v1456, %v1454
    %1459 = vst [vmem:[#allocation1] ss:$4 sm:$0xff] %v1143
    %v1460 = vld.sshfl [vmem:[#allocation1] sm:$0xff pattern:$0x73625140]
    %v1461 = vld.sshfl [vmem:[#allocation1 + $0x8] sm:$0xff pattern:$0x73625140]
    %1464 = vrot.lane.b32.xlu0 %v1460, 16
    %v1465 = vpop.permute.xlu0 %1464
    %1466 = vrot.lane.b32.xlu0 %v1461, 16
    %v1467 = vpop.permute.xlu0 %1466
    %v1468 = vsel %vm143, %v1465, %v1467
    %v1469 = vsel %vm143, %v1467, %v1465
    %1470 = vst [vmem:[#allocation1] ss:$4 sm:$0xff] %v1143
    %v1471 = vld.sshfl [vmem:[#allocation1] sm:$0xff pattern:$0x73625140]
    %v1472 = vld.sshfl [vmem:[#allocation1 + $0x8] sm:$0xff pattern:$0x73625140]
    %1475 = vrot.lane.b32.xlu0 %v1471, 15
    %v1476 = vpop.permute.xlu0 %1475
    %1477 = vrot.lane.b32.xlu0 %v1472, 15
    %v1478 = vpop.permute.xlu0 %1477
    %v1479 = vsel %vm155, %v1476, %v1478
    %v1480 = vsel %vm155, %v1478, %v1476
    %1481 = vst [vmem:[#allocation1] ss:$4 sm:$0xff] %v1143
    %v1482 = vld.sshfl [vmem:[#allocation1] sm:$0xff pattern:$0x73625140]
    %v1483 = vld.sshfl [vmem:[#allocation1 + $0x8] sm:$0xff pattern:$0x73625140]
    %1486 = vrot.lane.b32.xlu0 %v1482, 1
    %v1487 = vpop.permute.xlu0 %1486
    %1488 = vrot.lane.b32.xlu0 %v1483, 1
    %v1489 = vpop.permute.xlu0 %1488
    %v1490 = vsel %vm167, %v1487, %v1489
    %v1491 = vsel %vm167, %v1489, %v1487
    %1492 = vst [vmem:[#allocation1] ss:$4 sm:$0xff] %v1143
    %v1493 = vld.sshfl [vmem:[#allocation1] sm:$0xff pattern:$0x73625140]
    %v1494 = vld.sshfl [vmem:[#allocation1 + $0x8] sm:$0xff pattern:$0x73625140]
    %1497 = vrot.lane.b32.xlu0 %v1493, 127
    %v1498 = vpop.permute.xlu0 %1497
    %1499 = vrot.lane.b32.xlu0 %v1494, 127
    %v1500 = vpop.permute.xlu0 %1499
    %v1501 = vsel %vm179, %v1498, %v1500
    %v1502 = vsel %vm179, %v1500, %v1498
    %1503 = vst [vmem:[#allocation1] ss:$4 sm:$0xff] %v1143
    %v1504 = vld.sshfl [vmem:[#allocation1] sm:$0xff pattern:$0x73625140]
    %v1505 = vld.sshfl [vmem:[#allocation1 + $0x8] sm:$0xff pattern:$0x73625140]
    %1508 = vrot.lane.b32.xlu0 %v1504, 113
    %v1509 = vpop.permute.xlu0 %1508
    %1510 = vrot.lane.b32.xlu0 %v1505, 113
    %v1511 = vpop.permute.xlu0 %1510
    %v1512 = vsel %vm191, %v1509, %v1511
    %v1513 = vsel %vm191, %v1511, %v1509
    %1514 = vst [vmem:[#allocation1] ss:$4 sm:$0xff] %v1143
    %v1515 = vld.sshfl [vmem:[#allocation1] sm:$0xff pattern:$0x73625140]
    %v1516 = vld.sshfl [vmem:[#allocation1 + $0x8] sm:$0xff pattern:$0x73625140]
    %1519 = vrot.lane.b32.xlu0 %v1515, 112
    %v1520 = vpop.permute.xlu0 %1519
    %1521 = vrot.lane.b32.xlu0 %v1516, 112
    %v1522 = vpop.permute.xlu0 %1521
    %v1523 = vsel %vm203, %v1520, %v1522
    %v1524 = vsel %vm203, %v1522, %v1520
    %1525 = vst [vmem:[#allocation1] ss:$4 sm:$0xff] %v1143
    %v1526 = vld.sshfl [vmem:[#allocation1] sm:$0xff pattern:$0x73625140]
    %v1527 = vld.sshfl [vmem:[#allocation1 + $0x8] sm:$0xff pattern:$0x73625140]
    %1530 = vrot.lane.b32.xlu0 %v1526, 111
    %v1531 = vpop.permute.xlu0 %1530
    %1532 = vrot.lane.b32.xlu0 %v1527, 111
    %v1533 = vpop.permute.xlu0 %1532
    %v1534 = vsel %vm215, %v1531, %v1533
    %v1535 = vsel %vm215, %v1533, %v1531
    %v1536 = vmul.f32 %v1458, -1.0
    %v1537 = vmul.f32 %v1457, -1.0
    %v1538 = vadd.f32 %v1536, %v1480
    %v1539 = vadd.f32 %v1537, %v1479
    %v1540 = vmul.f32 %v1491, -2.0
    %v1541 = vmul.f32 %v1490, -2.0
    %v1542 = vadd.f32 %v1538, %v1540
    %v1543 = vadd.f32 %v1539, %v1541
    %v1544 = vmul.f32 %v1501, 2.0
    %v1545 = vmul.f32 %v1502, 2.0
    %v1546 = vadd.f32 %v1542, %v1544
    %v1547 = vadd.f32 %v1543, %v1545
    %v1548 = vmul.f32 %v1512, -1.0
    %v1549 = vmul.f32 %v1513, -1.0
    %v1550 = vadd.f32 %v1546, %v1548
    %v1551 = vadd.f32 %v1547, %v1549
    %v1552 = vadd.f32 %v1550, %v1534
    %v1553 = vadd.f32 %v1551, %v1535
    %v1556 = vrot.slane %v1553, 6
    %v1557 = vsel %vm239, %v1552, %v1556
    %v1559 = vmul.f32 %v71, %v1557
    %v1560 = vmul.f32 %v1469, -2.0
    %v1561 = vmul.f32 %v1468, -2.0
    %v1562 = vadd.f32 %v1536, %v1560
    %v1563 = vadd.f32 %v1537, %v1561
    %v1564 = vmul.f32 %v1480, -1.0
    %v1565 = vmul.f32 %v1479, -1.0
    %v1566 = vadd.f32 %v1562, %v1564
    %v1567 = vadd.f32 %v1563, %v1565
    %v1568 = vadd.f32 %v1566, %v1512
    %v1569 = vadd.f32 %v1567, %v1513
    %v1570 = vmul.f32 %v1523, 2.0
    %v1571 = vmul.f32 %v1524, 2.0
    %v1572 = vadd.f32 %v1568, %v1570
    %v1573 = vadd.f32 %v1569, %v1571
    %v1574 = vadd.f32 %v1572, %v1534
    %v1575 = vadd.f32 %v1573, %v1535
    %v1578 = vrot.slane %v1575, 6
    %v1579 = vsel %vm239, %v1574, %v1578
    %v1581 = vmul.f32 %v71, %v1579
    %v1582 = vmul.f32 %v586, %v1559
    %v1583 = vmul.f32 %v588, %v1581
    %v1584 = vadd.f32 %v1582, %v1583
    %v1585 = vmul.f32 %v591, %v1143
    %v1586 = vadd.f32 %v1584, %v1585
    %v1587 = vadd.f32 %v1434, %v1586
    %v1588 = vmul.f32 %v595, %v1559
    %v1589 = vmul.f32 %v597, %v1581
    %v1590 = vadd.f32 %v1588, %v1589
    %v1591 = vmul.f32 %v600, %v1143
    %v1592 = vadd.f32 %v1590, %v1591
    %v1593 = vadd.f32 %v1440, %v1592
    %v1594 = vmul.f32 %v604, %v1559
    %v1595 = vmul.f32 %v606, %v1581
    %v1596 = vadd.f32 %v1594, %v1595
    %v1597 = vmul.f32 %v609, %v1143
    %v1598 = vadd.f32 %v1596, %v1597
    %v1599 = vadd.f32 %v1446, %v1598
    %v1600 = vadd.f32 %v1587, %v613
    %v1601 = vmax.f32 %v1600, 0.0
    %v1602 = vadd.f32 %v1593, %v616
    %v1603 = vmax.f32 %v1602, 0.0
    %v1604 = vadd.f32 %v1599, %v619
    %v1605 = vmax.f32 %v1604, 0.0
    %v1606 = vmul.f32 %v622, %v1601
    %v1607 = vmul.f32 %v624, %v1603
    %v1608 = vadd.f32 %v1606, %v1607
    %v1609 = vmul.f32 %v627, %v1605
    %v1610 = vadd.f32 %v1608, %v1609
    %v1611 = vadd.f32 %v1610, %v630
    %v1612 = vmul.f32 %v632, %v1601
    %v1613 = vmul.f32 %v634, %v1603
    %v1614 = vadd.f32 %v1612, %v1613
    %v1615 = vmul.f32 %v637, %v1605
    %v1616 = vadd.f32 %v1614, %v1615
    %v1617 = vadd.f32 %v1616, %v640
    %v1618 = vmul.f32 %v642, %v1601
    %v1619 = vmul.f32 %v644, %v1603
    %v1620 = vadd.f32 %v1618, %v1619
    %v1621 = vmul.f32 %v647, %v1605
    %v1622 = vadd.f32 %v1620, %v1621
    %v1623 = vadd.f32 %v1622, %v650
    %v1624 = vtanh.pop %v1611
    %v1625 = vadd.f32 %v1139, %v1624
    %v1626 = vtanh.pop %v1617
    %v1627 = vadd.f32 %v1141, %v1626
    %v1628 = vtanh.pop %v1623
    %v1629 = vadd.f32 %v1143, %v1628
    %1631 = vst [vmem:[#allocation1] ss:$4 sm:$0xff] %v1625
    %v1632 = vld.sshfl [vmem:[#allocation1] sm:$0xff pattern:$0x73625140]
    %v1633 = vld.sshfl [vmem:[#allocation1 + $0x8] sm:$0xff pattern:$0x73625140]
    %1636 = vrot.lane.b32.xlu0 %v1632, 17
    %v1637 = vpop.permute.xlu0 %1636
    %1638 = vrot.lane.b32.xlu0 %v1633, 17
    %v1639 = vpop.permute.xlu0 %1638
    %v1640 = vsel %vm131, %v1637, %v1639
    %v1641 = vsel %vm131, %v1639, %v1637
    %1642 = vst [vmem:[#allocation1] ss:$4 sm:$0xff] %v1625
    %v1643 = vld.sshfl [vmem:[#allocation1] sm:$0xff pattern:$0x73625140]
    %v1644 = vld.sshfl [vmem:[#allocation1 + $0x8] sm:$0xff pattern:$0x73625140]
    %1647 = vrot.lane.b32.xlu0 %v1643, 16
    %v1648 = vpop.permute.xlu0 %1647
    %1649 = vrot.lane.b32.xlu0 %v1644, 16
    %v1650 = vpop.permute.xlu0 %1649
    %v1651 = vsel %vm143, %v1648, %v1650
    %v1652 = vsel %vm143, %v1650, %v1648
    %1653 = vst [vmem:[#allocation1] ss:$4 sm:$0xff] %v1625
    %v1654 = vld.sshfl [vmem:[#allocation1] sm:$0xff pattern:$0x73625140]
    %v1655 = vld.sshfl [vmem:[#allocation1 + $0x8] sm:$0xff pattern:$0x73625140]
    %1658 = vrot.lane.b32.xlu0 %v1654, 15
    %v1659 = vpop.permute.xlu0 %1658
    %1660 = vrot.lane.b32.xlu0 %v1655, 15
    %v1661 = vpop.permute.xlu0 %1660
    %v1662 = vsel %vm155, %v1659, %v1661
    %v1663 = vsel %vm155, %v1661, %v1659
    %1664 = vst [vmem:[#allocation1] ss:$4 sm:$0xff] %v1625
    %v1665 = vld.sshfl [vmem:[#allocation1] sm:$0xff pattern:$0x73625140]
    %v1666 = vld.sshfl [vmem:[#allocation1 + $0x8] sm:$0xff pattern:$0x73625140]
    %1669 = vrot.lane.b32.xlu0 %v1665, 1
    %v1670 = vpop.permute.xlu0 %1669
    %1671 = vrot.lane.b32.xlu0 %v1666, 1
    %v1672 = vpop.permute.xlu0 %1671
    %v1673 = vsel %vm167, %v1670, %v1672
    %v1674 = vsel %vm167, %v1672, %v1670
    %1675 = vst [vmem:[#allocation1] ss:$4 sm:$0xff] %v1625
    %v1676 = vld.sshfl [vmem:[#allocation1] sm:$0xff pattern:$0x73625140]
    %v1677 = vld.sshfl [vmem:[#allocation1 + $0x8] sm:$0xff pattern:$0x73625140]
    %1680 = vrot.lane.b32.xlu0 %v1676, 127
    %v1681 = vpop.permute.xlu0 %1680
    %1682 = vrot.lane.b32.xlu0 %v1677, 127
    %v1683 = vpop.permute.xlu0 %1682
    %v1684 = vsel %vm179, %v1681, %v1683
    %v1685 = vsel %vm179, %v1683, %v1681
    %1686 = vst [vmem:[#allocation1] ss:$4 sm:$0xff] %v1625
    %v1687 = vld.sshfl [vmem:[#allocation1] sm:$0xff pattern:$0x73625140]
    %v1688 = vld.sshfl [vmem:[#allocation1 + $0x8] sm:$0xff pattern:$0x73625140]
    %1691 = vrot.lane.b32.xlu0 %v1687, 113
    %v1692 = vpop.permute.xlu0 %1691
    %1693 = vrot.lane.b32.xlu0 %v1688, 113
    %v1694 = vpop.permute.xlu0 %1693
    %v1695 = vsel %vm191, %v1692, %v1694
    %v1696 = vsel %vm191, %v1694, %v1692
    %1697 = vst [vmem:[#allocation1] ss:$4 sm:$0xff] %v1625
    %v1698 = vld.sshfl [vmem:[#allocation1] sm:$0xff pattern:$0x73625140]
    %v1699 = vld.sshfl [vmem:[#allocation1 + $0x8] sm:$0xff pattern:$0x73625140]
    %1702 = vrot.lane.b32.xlu0 %v1698, 112
    %v1703 = vpop.permute.xlu0 %1702
    %1704 = vrot.lane.b32.xlu0 %v1699, 112
    %v1705 = vpop.permute.xlu0 %1704
    %v1706 = vsel %vm203, %v1703, %v1705
    %v1707 = vsel %vm203, %v1705, %v1703
    %1708 = vst [vmem:[#allocation1] ss:$4 sm:$0xff] %v1625
    %v1709 = vld.sshfl [vmem:[#allocation1] sm:$0xff pattern:$0x73625140]
    %v1710 = vld.sshfl [vmem:[#allocation1 + $0x8] sm:$0xff pattern:$0x73625140]
    %1713 = vrot.lane.b32.xlu0 %v1709, 111
    %v1714 = vpop.permute.xlu0 %1713
    %1715 = vrot.lane.b32.xlu0 %v1710, 111
    %v1716 = vpop.permute.xlu0 %1715
    %v1717 = vsel %vm215, %v1714, %v1716
    %v1718 = vsel %vm215, %v1716, %v1714
    %v1719 = vmul.f32 %v1641, -1.0
    %v1720 = vmul.f32 %v1640, -1.0
    %v1721 = vadd.f32 %v1719, %v1663
    %v1722 = vadd.f32 %v1720, %v1662
    %v1723 = vmul.f32 %v1674, -2.0
    %v1724 = vmul.f32 %v1673, -2.0
    %v1725 = vadd.f32 %v1721, %v1723
    %v1726 = vadd.f32 %v1722, %v1724
    %v1727 = vmul.f32 %v1684, 2.0
    %v1728 = vmul.f32 %v1685, 2.0
    %v1729 = vadd.f32 %v1725, %v1727
    %v1730 = vadd.f32 %v1726, %v1728
    %v1731 = vmul.f32 %v1695, -1.0
    %v1732 = vmul.f32 %v1696, -1.0
    %v1733 = vadd.f32 %v1729, %v1731
    %v1734 = vadd.f32 %v1730, %v1732
    %v1735 = vadd.f32 %v1733, %v1717
    %v1736 = vadd.f32 %v1734, %v1718
    %v1739 = vrot.slane %v1736, 6
    %v1740 = vsel %vm239, %v1735, %v1739
    %v1742 = vmul.f32 %v71, %v1740
    %v1743 = vmul.f32 %v1652, -2.0
    %v1744 = vmul.f32 %v1651, -2.0
    %v1745 = vadd.f32 %v1719, %v1743
    %v1746 = vadd.f32 %v1720, %v1744
    %v1747 = vmul.f32 %v1663, -1.0
    %v1748 = vmul.f32 %v1662, -1.0
    %v1749 = vadd.f32 %v1745, %v1747
    %v1750 = vadd.f32 %v1746, %v1748
    %v1751 = vadd.f32 %v1749, %v1695
    %v1752 = vadd.f32 %v1750, %v1696
    %v1753 = vmul.f32 %v1706, 2.0
    %v1754 = vmul.f32 %v1707, 2.0
    %v1755 = vadd.f32 %v1751, %v1753
    %v1756 = vadd.f32 %v1752, %v1754
    %v1757 = vadd.f32 %v1755, %v1717
    %v1758 = vadd.f32 %v1756, %v1718
    %v1761 = vrot.slane %v1758, 6
    %v1762 = vsel %vm239, %v1757, %v1761
    %v1764 = vmul.f32 %v71, %v1762
    %v1765 = vmul.f32 %v265, %v1742
    %v1766 = vmul.f32 %v267, %v1764
    %v1767 = vadd.f32 %v1765, %v1766
    %v1768 = vmul.f32 %v270, %v1625
    %v1769 = vadd.f32 %v1767, %v1768
    %v1770 = vmul.f32 %v273, %v1742
    %v1771 = vmul.f32 %v275, %v1764
    %v1772 = vadd.f32 %v1770, %v1771
    %v1773 = vmul.f32 %v278, %v1625
    %v1774 = vadd.f32 %v1772, %v1773
    %v1775 = vmul.f32 %v281, %v1742
    %v1776 = vmul.f32 %v283, %v1764
    %v1777 = vadd.f32 %v1775, %v1776
    %v1778 = vmul.f32 %v286, %v1625
    %v1779 = vadd.f32 %v1777, %v1778
    %1781 = vst [vmem:[#allocation1] ss:$4 sm:$0xff] %v1627
    %v1782 = vld.sshfl [vmem:[#allocation1] sm:$0xff pattern:$0x73625140]
    %v1783 = vld.sshfl [vmem:[#allocation1 + $0x8] sm:$0xff pattern:$0x73625140]
    %1786 = vrot.lane.b32.xlu0 %v1782, 17
    %v1787 = vpop.permute.xlu0 %1786
    %1788 = vrot.lane.b32.xlu0 %v1783, 17
    %v1789 = vpop.permute.xlu0 %1788
    %v1790 = vsel %vm131, %v1787, %v1789
    %v1791 = vsel %vm131, %v1789, %v1787
    %1792 = vst [vmem:[#allocation1] ss:$4 sm:$0xff] %v1627
    %v1793 = vld.sshfl [vmem:[#allocation1] sm:$0xff pattern:$0x73625140]
    %v1794 = vld.sshfl [vmem:[#allocation1 + $0x8] sm:$0xff pattern:$0x73625140]
    %1797 = vrot.lane.b32.xlu0 %v1793, 16
    %v1798 = vpop.permute.xlu0 %1797
    %1799 = vrot.lane.b32.xlu0 %v1794, 16
    %v1800 = vpop.permute.xlu0 %1799
    %v1801 = vsel %vm143, %v1798, %v1800
    %v1802 = vsel %vm143, %v1800, %v1798
    %1803 = vst [vmem:[#allocation1] ss:$4 sm:$0xff] %v1627
    %v1804 = vld.sshfl [vmem:[#allocation1] sm:$0xff pattern:$0x73625140]
    %v1805 = vld.sshfl [vmem:[#allocation1 + $0x8] sm:$0xff pattern:$0x73625140]
    %1808 = vrot.lane.b32.xlu0 %v1804, 15
    %v1809 = vpop.permute.xlu0 %1808
    %1810 = vrot.lane.b32.xlu0 %v1805, 15
    %v1811 = vpop.permute.xlu0 %1810
    %v1812 = vsel %vm155, %v1809, %v1811
    %v1813 = vsel %vm155, %v1811, %v1809
    %1814 = vst [vmem:[#allocation1] ss:$4 sm:$0xff] %v1627
    %v1815 = vld.sshfl [vmem:[#allocation1] sm:$0xff pattern:$0x73625140]
    %v1816 = vld.sshfl [vmem:[#allocation1 + $0x8] sm:$0xff pattern:$0x73625140]
    %1819 = vrot.lane.b32.xlu0 %v1815, 1
    %v1820 = vpop.permute.xlu0 %1819
    %1821 = vrot.lane.b32.xlu0 %v1816, 1
    %v1822 = vpop.permute.xlu0 %1821
    %v1823 = vsel %vm167, %v1820, %v1822
    %v1824 = vsel %vm167, %v1822, %v1820
    %1825 = vst [vmem:[#allocation1] ss:$4 sm:$0xff] %v1627
    %v1826 = vld.sshfl [vmem:[#allocation1] sm:$0xff pattern:$0x73625140]
    %v1827 = vld.sshfl [vmem:[#allocation1 + $0x8] sm:$0xff pattern:$0x73625140]
    %1830 = vrot.lane.b32.xlu0 %v1826, 127
    %v1831 = vpop.permute.xlu0 %1830
    %1832 = vrot.lane.b32.xlu0 %v1827, 127
    %v1833 = vpop.permute.xlu0 %1832
    %v1834 = vsel %vm179, %v1831, %v1833
    %v1835 = vsel %vm179, %v1833, %v1831
    %1836 = vst [vmem:[#allocation1] ss:$4 sm:$0xff] %v1627
    %v1837 = vld.sshfl [vmem:[#allocation1] sm:$0xff pattern:$0x73625140]
    %v1838 = vld.sshfl [vmem:[#allocation1 + $0x8] sm:$0xff pattern:$0x73625140]
    %1841 = vrot.lane.b32.xlu0 %v1837, 113
    %v1842 = vpop.permute.xlu0 %1841
    %1843 = vrot.lane.b32.xlu0 %v1838, 113
    %v1844 = vpop.permute.xlu0 %1843
    %v1845 = vsel %vm191, %v1842, %v1844
    %v1846 = vsel %vm191, %v1844, %v1842
    %1847 = vst [vmem:[#allocation1] ss:$4 sm:$0xff] %v1627
    %v1848 = vld.sshfl [vmem:[#allocation1] sm:$0xff pattern:$0x73625140]
    %v1849 = vld.sshfl [vmem:[#allocation1 + $0x8] sm:$0xff pattern:$0x73625140]
    %1852 = vrot.lane.b32.xlu0 %v1848, 112
    %v1853 = vpop.permute.xlu0 %1852
    %1854 = vrot.lane.b32.xlu0 %v1849, 112
    %v1855 = vpop.permute.xlu0 %1854
    %v1856 = vsel %vm203, %v1853, %v1855
    %v1857 = vsel %vm203, %v1855, %v1853
    %1858 = vst [vmem:[#allocation1] ss:$4 sm:$0xff] %v1627
    %v1859 = vld.sshfl [vmem:[#allocation1] sm:$0xff pattern:$0x73625140]
    %v1860 = vld.sshfl [vmem:[#allocation1 + $0x8] sm:$0xff pattern:$0x73625140]
    %1863 = vrot.lane.b32.xlu0 %v1859, 111
    %v1864 = vpop.permute.xlu0 %1863
    %1865 = vrot.lane.b32.xlu0 %v1860, 111
    %v1866 = vpop.permute.xlu0 %1865
    %v1867 = vsel %vm215, %v1864, %v1866
    %v1868 = vsel %vm215, %v1866, %v1864
    %v1869 = vmul.f32 %v1791, -1.0
    %v1870 = vmul.f32 %v1790, -1.0
    %v1871 = vadd.f32 %v1869, %v1813
    %v1872 = vadd.f32 %v1870, %v1812
    %v1873 = vmul.f32 %v1824, -2.0
    %v1874 = vmul.f32 %v1823, -2.0
    %v1875 = vadd.f32 %v1871, %v1873
    %v1876 = vadd.f32 %v1872, %v1874
    %v1877 = vmul.f32 %v1834, 2.0
    %v1878 = vmul.f32 %v1835, 2.0
    %v1879 = vadd.f32 %v1875, %v1877
    %v1880 = vadd.f32 %v1876, %v1878
    %v1881 = vmul.f32 %v1845, -1.0
    %v1882 = vmul.f32 %v1846, -1.0
    %v1883 = vadd.f32 %v1879, %v1881
    %v1884 = vadd.f32 %v1880, %v1882
    %v1885 = vadd.f32 %v1883, %v1867
    %v1886 = vadd.f32 %v1884, %v1868
    %v1889 = vrot.slane %v1886, 6
    %v1890 = vsel %vm239, %v1885, %v1889
    %v1892 = vmul.f32 %v71, %v1890
    %v1893 = vmul.f32 %v1802, -2.0
    %v1894 = vmul.f32 %v1801, -2.0
    %v1895 = vadd.f32 %v1869, %v1893
    %v1896 = vadd.f32 %v1870, %v1894
    %v1897 = vmul.f32 %v1813, -1.0
    %v1898 = vmul.f32 %v1812, -1.0
    %v1899 = vadd.f32 %v1895, %v1897
    %v1900 = vadd.f32 %v1896, %v1898
    %v1901 = vadd.f32 %v1899, %v1845
    %v1902 = vadd.f32 %v1900, %v1846
    %v1903 = vmul.f32 %v1856, 2.0
    %v1904 = vmul.f32 %v1857, 2.0
    %v1905 = vadd.f32 %v1901, %v1903
    %v1906 = vadd.f32 %v1902, %v1904
    %v1907 = vadd.f32 %v1905, %v1867
    %v1908 = vadd.f32 %v1906, %v1868
    %v1911 = vrot.slane %v1908, 6
    %v1912 = vsel %vm239, %v1907, %v1911
    %v1914 = vmul.f32 %v71, %v1912
    %v1915 = vmul.f32 %v424, %v1892
    %v1916 = vmul.f32 %v426, %v1914
    %v1917 = vadd.f32 %v1915, %v1916
    %v1918 = vmul.f32 %v429, %v1627
    %v1919 = vadd.f32 %v1917, %v1918
    %v1920 = vadd.f32 %v1769, %v1919
    %v1921 = vmul.f32 %v433, %v1892
    %v1922 = vmul.f32 %v435, %v1914
    %v1923 = vadd.f32 %v1921, %v1922
    %v1924 = vmul.f32 %v438, %v1627
    %v1925 = vadd.f32 %v1923, %v1924
    %v1926 = vadd.f32 %v1774, %v1925
    %v1927 = vmul.f32 %v442, %v1892
    %v1928 = vmul.f32 %v444, %v1914
    %v1929 = vadd.f32 %v1927, %v1928
    %v1930 = vmul.f32 %v447, %v1627
    %v1931 = vadd.f32 %v1929, %v1930
    %v1932 = vadd.f32 %v1779, %v1931
    %1934 = vst [vmem:[#allocation1] ss:$4 sm:$0xff] %v1629
    %v1935 = vld.sshfl [vmem:[#allocation1] sm:$0xff pattern:$0x73625140]
    %v1936 = vld.sshfl [vmem:[#allocation1 + $0x8] sm:$0xff pattern:$0x73625140]
    %1939 = vrot.lane.b32.xlu0 %v1935, 17
    %v1940 = vpop.permute.xlu0 %1939
    %1941 = vrot.lane.b32.xlu0 %v1936, 17
    %v1942 = vpop.permute.xlu0 %1941
    %v1943 = vsel %vm131, %v1940, %v1942
    %v1944 = vsel %vm131, %v1942, %v1940
    %1945 = vst [vmem:[#allocation1] ss:$4 sm:$0xff] %v1629
    %v1946 = vld.sshfl [vmem:[#allocation1] sm:$0xff pattern:$0x73625140]
    %v1947 = vld.sshfl [vmem:[#allocation1 + $0x8] sm:$0xff pattern:$0x73625140]
    %1950 = vrot.lane.b32.xlu0 %v1946, 16
    %v1951 = vpop.permute.xlu0 %1950
    %1952 = vrot.lane.b32.xlu0 %v1947, 16
    %v1953 = vpop.permute.xlu0 %1952
    %v1954 = vsel %vm143, %v1951, %v1953
    %v1955 = vsel %vm143, %v1953, %v1951
    %1956 = vst [vmem:[#allocation1] ss:$4 sm:$0xff] %v1629
    %v1957 = vld.sshfl [vmem:[#allocation1] sm:$0xff pattern:$0x73625140]
    %v1958 = vld.sshfl [vmem:[#allocation1 + $0x8] sm:$0xff pattern:$0x73625140]
    %1961 = vrot.lane.b32.xlu0 %v1957, 15
    %v1962 = vpop.permute.xlu0 %1961
    %1963 = vrot.lane.b32.xlu0 %v1958, 15
    %v1964 = vpop.permute.xlu0 %1963
    %v1965 = vsel %vm155, %v1962, %v1964
    %v1966 = vsel %vm155, %v1964, %v1962
    %1967 = vst [vmem:[#allocation1] ss:$4 sm:$0xff] %v1629
    %v1968 = vld.sshfl [vmem:[#allocation1] sm:$0xff pattern:$0x73625140]
    %v1969 = vld.sshfl [vmem:[#allocation1 + $0x8] sm:$0xff pattern:$0x73625140]
    %1972 = vrot.lane.b32.xlu0 %v1968, 1
    %v1973 = vpop.permute.xlu0 %1972
    %1974 = vrot.lane.b32.xlu0 %v1969, 1
    %v1975 = vpop.permute.xlu0 %1974
    %v1976 = vsel %vm167, %v1973, %v1975
    %v1977 = vsel %vm167, %v1975, %v1973
    %1978 = vst [vmem:[#allocation1] ss:$4 sm:$0xff] %v1629
    %v1979 = vld.sshfl [vmem:[#allocation1] sm:$0xff pattern:$0x73625140]
    %v1980 = vld.sshfl [vmem:[#allocation1 + $0x8] sm:$0xff pattern:$0x73625140]
    %1983 = vrot.lane.b32.xlu0 %v1979, 127
    %v1984 = vpop.permute.xlu0 %1983
    %1985 = vrot.lane.b32.xlu0 %v1980, 127
    %v1986 = vpop.permute.xlu0 %1985
    %v1987 = vsel %vm179, %v1984, %v1986
    %v1988 = vsel %vm179, %v1986, %v1984
    %1989 = vst [vmem:[#allocation1] ss:$4 sm:$0xff] %v1629
    %v1990 = vld.sshfl [vmem:[#allocation1] sm:$0xff pattern:$0x73625140]
    %v1991 = vld.sshfl [vmem:[#allocation1 + $0x8] sm:$0xff pattern:$0x73625140]
    %1994 = vrot.lane.b32.xlu0 %v1990, 113
    %v1995 = vpop.permute.xlu0 %1994
    %1996 = vrot.lane.b32.xlu0 %v1991, 113
    %v1997 = vpop.permute.xlu0 %1996
    %v1998 = vsel %vm191, %v1995, %v1997
    %v1999 = vsel %vm191, %v1997, %v1995
    %2000 = vst [vmem:[#allocation1] ss:$4 sm:$0xff] %v1629
    %v2001 = vld.sshfl [vmem:[#allocation1] sm:$0xff pattern:$0x73625140]
    %v2002 = vld.sshfl [vmem:[#allocation1 + $0x8] sm:$0xff pattern:$0x73625140]
    %2005 = vrot.lane.b32.xlu0 %v2001, 112
    %v2006 = vpop.permute.xlu0 %2005
    %2007 = vrot.lane.b32.xlu0 %v2002, 112
    %v2008 = vpop.permute.xlu0 %2007
    %v2009 = vsel %vm203, %v2006, %v2008
    %v2010 = vsel %vm203, %v2008, %v2006
    %2011 = vst [vmem:[#allocation1] ss:$4 sm:$0xff] %v1629
    %v2012 = vld.sshfl [vmem:[#allocation1] sm:$0xff pattern:$0x73625140]
    %v2013 = vld.sshfl [vmem:[#allocation1 + $0x8] sm:$0xff pattern:$0x73625140]
    %2016 = vrot.lane.b32.xlu0 %v2012, 111
    %v2017 = vpop.permute.xlu0 %2016
    %2018 = vrot.lane.b32.xlu0 %v2013, 111
    %v2019 = vpop.permute.xlu0 %2018
    %v2020 = vsel %vm215, %v2017, %v2019
    %v2021 = vsel %vm215, %v2019, %v2017
    %v2022 = vmul.f32 %v1944, -1.0
    %v2023 = vmul.f32 %v1943, -1.0
    %v2024 = vadd.f32 %v2022, %v1966
    %v2025 = vadd.f32 %v2023, %v1965
    %v2026 = vmul.f32 %v1977, -2.0
    %v2027 = vmul.f32 %v1976, -2.0
    %v2028 = vadd.f32 %v2024, %v2026
    %v2029 = vadd.f32 %v2025, %v2027
    %v2030 = vmul.f32 %v1987, 2.0
    %v2031 = vmul.f32 %v1988, 2.0
    %v2032 = vadd.f32 %v2028, %v2030
    %v2033 = vadd.f32 %v2029, %v2031
    %v2034 = vmul.f32 %v1998, -1.0
    %v2035 = vmul.f32 %v1999, -1.0
    %v2036 = vadd.f32 %v2032, %v2034
    %v2037 = vadd.f32 %v2033, %v2035
    %v2038 = vadd.f32 %v2036, %v2020
    %v2039 = vadd.f32 %v2037, %v2021
    %v2042 = vrot.slane %v2039, 6
    %v2043 = vsel %vm239, %v2038, %v2042
    %v2045 = vmul.f32 %v71, %v2043
    %v2046 = vmul.f32 %v1955, -2.0
    %v2047 = vmul.f32 %v1954, -2.0
    %v2048 = vadd.f32 %v2022, %v2046
    %v2049 = vadd.f32 %v2023, %v2047
    %v2050 = vmul.f32 %v1966, -1.0
    %v2051 = vmul.f32 %v1965, -1.0
    %v2052 = vadd.f32 %v2048, %v2050
    %v2053 = vadd.f32 %v2049, %v2051
    %v2054 = vadd.f32 %v2052, %v1998
    %v2055 = vadd.f32 %v2053, %v1999
    %v2056 = vmul.f32 %v2009, 2.0
    %v2057 = vmul.f32 %v2010, 2.0
    %v2058 = vadd.f32 %v2054, %v2056
    %v2059 = vadd.f32 %v2055, %v2057
    %v2060 = vadd.f32 %v2058, %v2020
    %v2061 = vadd.f32 %v2059, %v2021
    %v2064 = vrot.slane %v2061, 6
    %v2065 = vsel %vm239, %v2060, %v2064
    %v2067 = vmul.f32 %v71, %v2065
    %v2068 = vmul.f32 %v586, %v2045
    %v2069 = vmul.f32 %v588, %v2067
    %v2070 = vadd.f32 %v2068, %v2069
    %v2071 = vmul.f32 %v591, %v1629
    %v2072 = vadd.f32 %v2070, %v2071
    %v2073 = vadd.f32 %v1920, %v2072
    %v2074 = vmul.f32 %v595, %v2045
    %v2075 = vmul.f32 %v597, %v2067
    %v2076 = vadd.f32 %v2074, %v2075
    %v2077 = vmul.f32 %v600, %v1629
    %v2078 = vadd.f32 %v2076, %v2077
    %v2079 = vadd.f32 %v1926, %v2078
    %v2080 = vmul.f32 %v604, %v2045
    %v2081 = vmul.f32 %v606, %v2067
    %v2082 = vadd.f32 %v2080, %v2081
    %v2083 = vmul.f32 %v609, %v1629
    %v2084 = vadd.f32 %v2082, %v2083
    %v2085 = vadd.f32 %v1932, %v2084
    %v2086 = vadd.f32 %v2073, %v613
    %v2087 = vmax.f32 %v2086, 0.0
    %v2088 = vadd.f32 %v2079, %v616
    %v2089 = vmax.f32 %v2088, 0.0
    %v2090 = vadd.f32 %v2085, %v619
    %v2091 = vmax.f32 %v2090, 0.0
    %v2092 = vmul.f32 %v622, %v2087
    %v2093 = vmul.f32 %v624, %v2089
    %v2094 = vadd.f32 %v2092, %v2093
    %v2095 = vmul.f32 %v627, %v2091
    %v2096 = vadd.f32 %v2094, %v2095
    %v2097 = vadd.f32 %v2096, %v630
    %v2098 = vmul.f32 %v632, %v2087
    %v2099 = vmul.f32 %v634, %v2089
    %v2100 = vadd.f32 %v2098, %v2099
    %v2101 = vmul.f32 %v637, %v2091
    %v2102 = vadd.f32 %v2100, %v2101
    %v2103 = vadd.f32 %v2102, %v640
    %v2104 = vmul.f32 %v642, %v2087
    %v2105 = vmul.f32 %v644, %v2089
    %v2106 = vadd.f32 %v2104, %v2105
    %v2107 = vmul.f32 %v647, %v2091
    %v2108 = vadd.f32 %v2106, %v2107
    %v2109 = vadd.f32 %v2108, %v650
    %v2110 = vtanh.pop %v2097
    %v2111 = vadd.f32 %v1625, %v2110
    %v2112 = vtanh.pop %v2103
    %v2113 = vadd.f32 %v1627, %v2112
    %v2114 = vtanh.pop %v2109
    %v2115 = vadd.f32 %v1629, %v2114
    %2116 = vst [vmem:[%s6] sm:$0xf] %v2111
    %s2117 = scalar_lea.vmem %s6, 4
    %2118 = vst [vmem:[%s2117] sm:$0xf] %v2113
    %s2119 = scalar_lea.vmem %s6, 8
    %2120 = vst [vmem:[%s2119] sm:$0xf] %v2115
    // Predicated region
    $region42: #{fwd.1} parent=1 // pred_check
      _
    $region43: #{fwd.1} parent=1 // pred_check_branch
      %2122 = sbr.rel (0) target = $region45
    $region44: #{fwd.1} parent=1 // pred_region
      _
    $region45: #{fwd.1} parent=1 // pred_fallthru
      _
    // Predicated region
    $region46: #{fwd.1} parent=1 // pred_check
      _
    $region47: #{fwd.1} parent=1 // pred_check_branch
      %2124 = sbr.rel (0) target = $region49
    $region48: #{fwd.1} parent=1 // pred_region
      _
    $region49: #{fwd.1} parent=1 // pred_fallthru
      _
    %2125 = vsyncpa [#allocation3], 1
    %2126 = vsyncpa [#allocation5], 1
    %2127 = vsyncpa [#allocation8], 1

</llo_original>
